<compile_context>
chip_gen: v5e
topology: v5e:2x2
jax: 0.10.0
libtpu: 0.0.40
codegen_flags: <defaults>
</compile_context>

<pallas_src>
import math
import functools

import jax
import jax.numpy as jnp
from jax.experimental import pallas as pl
from jax.experimental.pallas import tpu as pltpu

# Make the pure-JAX reference compute its matmuls at f32 accuracy so it matches the kernel.
jax.config.update("jax_default_matmul_precision", "highest")


# ----------------------------------------------------------------------------- kernel

def _decoder_stack_kernel(x_ref, mask_ref, wqkv_ref, bqkv_ref, wo_ref, bo_ref,
                          ln1g_ref, ln1b_ref, w1_ref, b1_ref, w2_ref, b2_ref,
                          ln2g_ref, ln2b_ref, o_ref, act_ref,
                          *, num_heads, head_dim, T):
    """grid = (batch_block, layer). One grid step == one decoder layer for one batch element.

    Activations live in a persistent VMEM scratch (carried across the sequential layer axis);
    per-layer weights are streamed via BlockSpec index maps."""
    D = num_heads * head_dim
    layer = pl.program_id(1)
    eps = 1e-5

    # Layer 0 of each batch block: load (token + positional) embeddings into the carry.
    @pl.when(layer == 0)
    def _():
        act_ref[...] = x_ref[...]

    h = act_ref[...]                                               # (T, D) f32

    # ---------------- masked multi-head self-attention ----------------
    # Fused QKV projection: one (T, D) @ (D, 3D) MXU pass + one bias broadcast.
    qkv = jnp.dot(h, wqkv_ref[0], preferred_element_type=jnp.float32) + bqkv_ref[0]   # (T, 3D)

    # Head-major split WITHOUT sub-128-lane slicing: minor 2-D transpose, leading-dim reshape,
    # leading-dim slices, and last-two-dim swaps only (all cheap, supported layout ops).
    qkv_t = qkv.T.reshape(3 * num_heads, head_dim, T)              # (3H, hd, T)
    q = jnp.swapaxes(qkv_t[0:num_heads], -1, -2)                   # (H, T, hd)
    k_t = qkv_t[num_heads:2 * num_heads]                           # (H, hd, T)
    v = jnp.swapaxes(qkv_t[2 * num_heads:3 * num_heads], -1, -2)   # (H, T, hd)

    scale = 1.0 / math.sqrt(head_dim)
    # Heads folded into the dot_general batch dim: one scores push + one weighted-sum push.
    s = jnp.einsum("hqd,hdk->hqk", q, k_t,
                   preferred_element_type=jnp.float32) * scale     # (H, T, T)
    s = s + mask_ref[...]                                          # precomputed additive causal mask
    s = s - jnp.max(s, axis=-1, keepdims=True)
    p = jnp.exp(s)
    p = p / jnp.sum(p, axis=-1, keepdims=True)                     # exact softmax (torch parity)
    o = jnp.einsum("hqk,hkd->hqd", p, v,
                   preferred_element_type=jnp.float32)             # (H, T, hd)

    # concat(heads) == merge (H, hd) back into lanes; then ONE (T, D) @ (D, D) out-proj matmul.
    o_flat = jnp.swapaxes(o, -1, -2).reshape(D, T).T               # (T, D)
    attn = jnp.dot(o_flat, wo_ref[0], preferred_element_type=jnp.float32) + bo_ref[0]

    # ---------------- residual + LayerNorm 1 (f32 VPU math) ----------------
    h = h + attn
    mu = jnp.mean(h, axis=-1, keepdims=True)
    var = jnp.mean(jnp.square(h - mu), axis=-1, keepdims=True)
    h = (h - mu) * jax.lax.rsqrt(var + eps) * ln1g_ref[0] + ln1b_ref[0]

    # ---------------- feed-forward (ReLU) ----------------
    f = jnp.dot(h, w1_ref[0], preferred_element_type=jnp.float32) + b1_ref[0]
    f = jnp.maximum(f, 0.0)
    f = jnp.dot(f, w2_ref[0], preferred_element_type=jnp.float32) + b2_ref[0]

    # ---------------- residual + LayerNorm 2 ----------------
    h = h + f
    mu = jnp.mean(h, axis=-1, keepdims=True)
    var = jnp.mean(jnp.square(h - mu), axis=-1, keepdims=True)
    h = (h - mu) * jax.lax.rsqrt(var + eps) * ln2g_ref[0] + ln2b_ref[0]

    act_ref[...] = h                                               # carry to next layer

    @pl.when(layer == pl.num_programs(1) - 1)
    def _():
        o_ref[...] = h.astype(o_ref.dtype)


# ----------------------------------------------------------------------------- wrapper

_LAYER_PARAM_ORDER = ("wqkv", "bqkv", "wo", "bo", "ln1_g", "ln1_b",
                      "w1", "b1", "w2", "b2", "ln2_g", "ln2_b")


def _positional_encoding(seq_len, dim):
    pos = jnp.arange(seq_len, dtype=jnp.float32)[:, None]
    div = jnp.exp(jnp.arange(0, dim, 2, dtype=jnp.float32) * (-math.log(10000.0) / dim))
    pe = jnp.zeros((seq_len, dim), jnp.float32)
    pe = pe.at[:, 0::2].set(jnp.sin(pos * div))
    pe = pe.at[:, 1::2].set(jnp.cos(pos * div[: pe[:, 1::2].shape[1]]))
    return pe


def masked_decoder_forward(input_ids, params, *, num_heads):
    """input_ids: (B, T) int32 tokens. Returns (B, T, D) f32."""
    emb_table = params["emb"]                     # (V, D)
    L, D, _ = params["wqkv"].shape
    B, T = input_ids.shape
    assert D % num_heads == 0
    assert T % 8 == 0, "T must be sublane-aligned (multiple of 8) for the (T, D) block"
    head_dim = D // num_heads

    # Embedding gather + sinusoidal positions are cheap gather/table work -> JAX wrapper.
    x = jnp.take(emb_table, input_ids, axis=0)                       # (B, T, D)
    x = (x + _positional_encoding(T, D)[None]).astype(jnp.float32)
    x = x.reshape(B * T, D)

    # Additive causal mask built ONCE here (not per layer / per grid step inside the kernel).
    causal_mask = jnp.where(jnp.triu(jnp.ones((T, T), bool), k=1),
                            -1e30, 0.0).astype(jnp.float32)          # (T, T)

    kernel = functools.partial(_decoder_stack_kernel,
                               num_heads=num_heads, head_dim=head_dim, T=T)

    def layer_spec(arr):                          # (L, a, b): stream one layer per inner step
        blk = (1,) + arr.shape[1:]
        nd = arr.ndim
        return pl.BlockSpec(blk, lambda b, l, _n=nd: (l,) + (0,) * (_n - 1))

    # One batch element per outer grid step -> 'parallel' axis feeds the 2nd TC on v7x.
    x_spec = pl.BlockSpec((T, D), lambda b, l: (b, 0))
    mask_spec = pl.BlockSpec((T, T), lambda b, l: (0, 0))
    out_spec = pl.BlockSpec((T, D), lambda b, l: (b, 0))

    layer_args = [params[k] for k in _LAYER_PARAM_ORDER]

    out = pl.pallas_call(
        kernel,
        out_shape=jax.ShapeDtypeStruct((B * T, D), jnp.float32),
        grid_spec=pltpu.PrefetchScalarGridSpec(
            num_scalar_prefetch=0,
            grid=(B, L),
            in_specs=[x_spec, mask_spec] + [layer_spec(a) for a in layer_args],
            out_specs=out_spec,
            scratch_shapes=[pltpu.VMEM((T, D), jnp.float32)],        # per-core activation carry
        ),
        compiler_params=pltpu.CompilerParams(
            # batch axis parallel (megacore), layer axis MUST stay sequential (activation carry)
            dimension_semantics=("parallel", "arbitrary"),
            vmem_limit_bytes=32 * 1024 * 1024,
        ),
    )(x, causal_mask, *layer_args)

    return out.reshape(B, T, D)


# ----------------------------------------------------------------------------- reference

def _layer_norm(x, g, b, eps=1e-5):
    mu = jnp.mean(x, axis=-1, keepdims=True)
    var = jnp.mean(jnp.square(x - mu), axis=-1, keepdims=True)
    return (x - mu) * jax.lax.rsqrt(var + eps) * g + b


def masked_decoder_reference(input_ids, params, *, num_heads):
    """Pure-JAX reproduction of the PyTorch MaskedDecoder forward."""
    emb = params["emb"][input_ids]
    B, T, D = emb.shape
    x = emb + _positional_encoding(T, D)[None]
    L = params["wqkv"].shape[0]
    hd = D // num_heads
    mask = jnp.where(jnp.triu(jnp.ones((T, T), bool), k=1), -jnp.inf, 0.0)
    for l in range(L):
        qkv = x @ params["wqkv"][l] + params["bqkv"][l, 0]
        q, k, v = jnp.split(qkv, 3, axis=-1)
        split = lambda z: z.reshape(B, T, num_heads, hd).transpose(0, 2, 1, 3)
        q, k, v = split(q), split(k), split(v)
        s = jnp.einsum("bhqd,bhkd->bhqk", q, k) / math.sqrt(hd) + mask
        p = jax.nn.softmax(s, axis=-1)
        o = jnp.einsum("bhqk,bhkd->bhqd", p, v).transpose(0, 2, 1, 3).reshape(B, T, D)
        attn = o @ params["wo"][l] + params["bo"][l, 0]
        x = _layer_norm(x + attn, params["ln1_g"][l, 0], params["ln1_b"][l, 0])
        f = jnp.maximum(x @ params["w1"][l] + params["b1"][l, 0], 0.0)
        f = f @ params["w2"][l] + params["b2"][l, 0]
        x = _layer_norm(x + f, params["ln2_g"][l, 0], params["ln2_b"][l, 0])
    return x


# ----------------------------------------------------------------------------- main

if __name__ == "__main__":
    V, D, H, L = 50, 32, 4, 2        # vocab, emb dim, heads, layers
    B, T = 2, 8

    _keys = iter(jax.random.split(jax.random.PRNGKey(0), 64))
    nxt = lambda: next(_keys)

    def uni(k, shape, fan_in):
        bnd = 1.0 / math.sqrt(fan_in)
        return jax.random.uniform(k, shape, jnp.float32, -bnd, bnd)

    per_layer = {k: [] for k in _LAYER_PARAM_ORDER}
    for _ in range(L):
        wq, wk, wv = uni(nxt(), (D, D), D), uni(nxt(), (D, D), D), uni(nxt(), (D, D), D)
        bq, bk, bv = uni(nxt(), (1, D), D), uni(nxt(), (1, D), D), uni(nxt(), (1, D), D)
        per_layer["wqkv"].append(jnp.concatenate([wq, wk, wv], axis=1))   # (D, 3D)
        per_layer["bqkv"].append(jnp.concatenate([bq, bk, bv], axis=1))   # (1, 3D)
        per_layer["wo"].append(uni(nxt(), (D, D), D))
        per_layer["bo"].append(uni(nxt(), (1, D), D))
        per_layer["ln1_g"].append(1.0 + 0.1 * jax.random.normal(nxt(), (1, D), jnp.float32))
        per_layer["ln1_b"].append(0.1 * jax.random.normal(nxt(), (1, D), jnp.float32))
        per_layer["w1"].append(uni(nxt(), (D, 4 * D), D))
        per_layer["b1"].append(uni(nxt(), (1, 4 * D), D))
        per_layer["w2"].append(uni(nxt(), (4 * D, D), 4 * D))
        per_layer["b2"].append(uni(nxt(), (1, D), 4 * D))
        per_layer["ln2_g"].append(1.0 + 0.1 * jax.random.normal(nxt(), (1, D), jnp.float32))
        per_layer["ln2_b"].append(0.1 * jax.random.normal(nxt(), (1, D), jnp.float32))

    params = {k: jnp.stack(v) for k, v in per_layer.items()}
    params["emb"] = jax.random.normal(nxt(), (V, D), jnp.float32)

    input_ids = jax.random.randint(nxt(), (B, T), 0, V)

    out = masked_decoder_forward(input_ids, params, num_heads=H)
    out = jax.block_until_ready(out)

    ref = masked_decoder_reference(input_ids, params, num_heads=H)
    assert out.shape == (B, T, D)
    assert bool(jnp.all(jnp.isfinite(out)))
    max_err = float(jnp.max(jnp.abs(out - ref)))
    assert jnp.allclose(out, ref, atol=1e-3, rtol=1e-3), f"max_err={max_err}"

    print("KERNEL_OK")
</pallas_src>

<mosaic_0001>
module attributes {stable_mosaic.version = 11 : i64} {
  func.func @_decoder_stack_kernel(%arg0: i32, %arg1: i32, %arg2: memref<8x32xf32, #tpu.memory_space<vmem>>, %arg3: memref<8x8xf32, #tpu.memory_space<vmem>>, %arg4: memref<1x32x96xf32, #tpu.memory_space<vmem>>, %arg5: memref<1x1x96xf32, #tpu.memory_space<vmem>>, %arg6: memref<1x32x32xf32, #tpu.memory_space<vmem>>, %arg7: memref<1x1x32xf32, #tpu.memory_space<vmem>>, %arg8: memref<1x1x32xf32, #tpu.memory_space<vmem>>, %arg9: memref<1x1x32xf32, #tpu.memory_space<vmem>>, %arg10: memref<1x32x128xf32, #tpu.memory_space<vmem>>, %arg11: memref<1x1x128xf32, #tpu.memory_space<vmem>>, %arg12: memref<1x128x32xf32, #tpu.memory_space<vmem>>, %arg13: memref<1x1x32xf32, #tpu.memory_space<vmem>>, %arg14: memref<1x1x32xf32, #tpu.memory_space<vmem>>, %arg15: memref<1x1x32xf32, #tpu.memory_space<vmem>>, %arg16: memref<8x32xf32, #tpu.memory_space<vmem>>, %arg17: memref<8x32xf32, #tpu.memory_space<vmem>>) attributes {dimension_semantics = [#tpu.dimension_semantics<parallel>, #tpu.dimension_semantics<arbitrary>], iteration_bounds = array<i64: 2, 2>, scalar_prefetch = 0 : i64, scratch_operands = 1 : i64, tpu.core_type = #tpu.core_type<tc>, window_params = [{transform_indices = @transform_0, window_bounds = array<i64: 8, 32>}, {pipeline_mode = #tpu.pipeline_mode<synchronous>, transform_indices = @transform_1, window_bounds = array<i64: 8, 8>}, {transform_indices = @transform_2, window_bounds = array<i64: 1, 32, 96>}, {transform_indices = @transform_3, window_bounds = array<i64: 1, 1, 96>}, {transform_indices = @transform_4, window_bounds = array<i64: 1, 32, 32>}, {transform_indices = @transform_5, window_bounds = array<i64: 1, 1, 32>}, {transform_indices = @transform_6, window_bounds = array<i64: 1, 1, 32>}, {transform_indices = @transform_7, window_bounds = array<i64: 1, 1, 32>}, {transform_indices = @transform_8, window_bounds = array<i64: 1, 32, 128>}, {transform_indices = @transform_9, window_bounds = array<i64: 1, 1, 128>}, {transform_indices = @transform_10, window_bounds = array<i64: 1, 128, 32>}, {transform_indices = @transform_11, window_bounds = array<i64: 1, 1, 32>}, {transform_indices = @transform_12, window_bounds = array<i64: 1, 1, 32>}, {transform_indices = @transform_13, window_bounds = array<i64: 1, 1, 32>}, {transform_indices = @transform_14, window_bounds = array<i64: 8, 32>}]} {
    %c0_i32 = arith.constant 0 : i32
    %0 = arith.cmpi eq, %arg1, %c0_i32 : i32
    %1 = arith.extui %0 : i1 to i32
    %c0_i32_0 = arith.constant 0 : i32
    %2 = arith.cmpi ne, %1, %c0_i32_0 : i32
    scf.if %2 {
      %c0_62 = arith.constant 0 : index
      %c0_63 = arith.constant 0 : index
      %119 = vector.load %arg2[%c0_62, %c0_63] : memref<8x32xf32, #tpu.memory_space<vmem>>, vector<8x32xf32>
      %c0_64 = arith.constant 0 : index
      %c0_65 = arith.constant 0 : index
      %120 = vector.load %arg17[%c0_64, %c0_65] : memref<8x32xf32, #tpu.memory_space<vmem>>, vector<8x32xf32>
      tpu.vector_store %arg17[%c0_64, %c0_65], %119 {strides = array<i32>} : memref<8x32xf32, #tpu.memory_space<vmem>>, vector<8x32xf32>,
    } else {
    }
    %c0 = arith.constant 0 : index
    %c0_1 = arith.constant 0 : index
    %3 = vector.load %arg17[%c0, %c0_1] : memref<8x32xf32, #tpu.memory_space<vmem>>, vector<8x32xf32>
    %c0_2 = arith.constant 0 : index
    %c0_3 = arith.constant 0 : index
    %c0_4 = arith.constant 0 : index
    %4 = vector.load %arg4[%c0_2, %c0_3, %c0_4] : memref<1x32x96xf32, #tpu.memory_space<vmem>>, vector<1x32x96xf32>
    %5 = vector.shape_cast %4 : vector<1x32x96xf32> to vector<32x96xf32>
    %cst = arith.constant dense<0.000000e+00> : vector<8x96xf32>
    %6 = tpu.matmul %3, %5, %cst {dimension_numbers = #tpu.dot_dimension_numbers<[1], [0], [0], [1], [0, 0, 1, 1], [], []>, precision = #tpu.contract_precision<fp32>} : vector<8x32xf32>, vector<32x96xf32>, vector<8x96xf32> -> vector<8x96xf32>
    %c0_5 = arith.constant 0 : index
    %c0_6 = arith.constant 0 : index
    %c0_7 = arith.constant 0 : index
    %7 = vector.load %arg5[%c0_5, %c0_6, %c0_7] : memref<1x1x96xf32, #tpu.memory_space<vmem>>, vector<1x1x96xf32>
    %8 = vector.shape_cast %7 : vector<1x1x96xf32> to vector<1x96xf32>
    %9 = vector.broadcast %8 : vector<1x96xf32> to vector<8x96xf32>
    %10 = arith.addf %6, %9 : vector<8x96xf32>
    %11 = tpu.transpose %10, [1, 0] : vector<8x96xf32> -> vector<96x8xf32>
    %12 = vector.shape_cast %11 : vector<96x8xf32> to vector<12x8x8xf32>
    %13 = vector.extract_strided_slice %12 {offsets = [0, 0, 0], sizes = [4, 8, 8], strides = [1, 1, 1]} : vector<12x8x8xf32> to vector<4x8x8xf32>
    %14 = tpu.transpose %13, [0, 2, 1] : vector<4x8x8xf32> -> vector<4x8x8xf32>
    %15 = vector.extract_strided_slice %12 {offsets = [4, 0, 0], sizes = [4, 8, 8], strides = [1, 1, 1]} : vector<12x8x8xf32> to vector<4x8x8xf32>
    %16 = vector.extract_strided_slice %12 {offsets = [8, 0, 0], sizes = [4, 8, 8], strides = [1, 1, 1]} : vector<12x8x8xf32> to vector<4x8x8xf32>
    %17 = tpu.transpose %16, [0, 2, 1] : vector<4x8x8xf32> -> vector<4x8x8xf32>
    "tpu.trace_start"() <{level = 10 : i32, message = "hqd,hdk->hqk"}> : () -> ()
    %cst_8 = arith.constant dense<0.000000e+00> : vector<4x8x8xf32>
    %18 = tpu.matmul %14, %15, %cst_8 {dimension_numbers = #tpu.dot_dimension_numbers<[2], [1], [1], [2], [0, 0, 0, 1, 1, 2], [0], [0]>, precision = #tpu.contract_precision<fp32>} : vector<4x8x8xf32>, vector<4x8x8xf32>, vector<4x8x8xf32> -> vector<4x8x8xf32>
    "tpu.trace_stop"() : () -> ()
    %cst_9 = arith.constant 0.353553385 : f32
    %19 = vector.broadcast %cst_9 : f32 to vector<4x8x8xf32>
    %20 = arith.mulf %18, %19 : vector<4x8x8xf32>
    %c0_10 = arith.constant 0 : index
    %c0_11 = arith.constant 0 : index
    %21 = vector.load %arg3[%c0_10, %c0_11] : memref<8x8xf32, #tpu.memory_space<vmem>>, vector<8x8xf32>
    %22 = vector.shape_cast %21 : vector<8x8xf32> to vector<1x8x8xf32>
    %23 = vector.broadcast %22 : vector<1x8x8xf32> to vector<4x8x8xf32>
    %24 = arith.addf %20, %23 : vector<4x8x8xf32>
    %cst_12 = arith.constant dense<0xFF800000> : vector<4x8xf32>
    %25 = vector.multi_reduction <maximumf>, %24, %cst_12 [2] : vector<4x8x8xf32> to vector<4x8xf32>
    %26 = vector.shape_cast %25 : vector<4x8xf32> to vector<4x8x1xf32>
    %27 = vector.broadcast %26 : vector<4x8x1xf32> to vector<4x8x8xf32>
    %28 = arith.subf %24, %27 : vector<4x8x8xf32>
    %29 = math.exp %28 : vector<4x8x8xf32>
    %cst_13 = arith.constant dense<0.000000e+00> : vector<4x8xf32>
    %30 = vector.multi_reduction <add>, %29, %cst_13 [2] : vector<4x8x8xf32> to vector<4x8xf32>
    %31 = vector.shape_cast %30 : vector<4x8xf32> to vector<4x8x1xf32>
    %32 = vector.broadcast %31 : vector<4x8x1xf32> to vector<4x8x8xf32>
    %33 = arith.divf %29, %32 : vector<4x8x8xf32>
    "tpu.trace_start"() <{level = 10 : i32, message = "hqk,hkd->hqd"}> : () -> ()
    %cst_14 = arith.constant dense<0.000000e+00> : vector<4x8x8xf32>
    %34 = tpu.matmul %33, %17, %cst_14 {dimension_numbers = #tpu.dot_dimension_numbers<[2], [1], [1], [2], [0, 0, 0, 1, 1, 2], [0], [0]>, precision = #tpu.contract_precision<fp32>} : vector<4x8x8xf32>, vector<4x8x8xf32>, vector<4x8x8xf32> -> vector<4x8x8xf32>
    "tpu.trace_stop"() : () -> ()
    %35 = tpu.transpose %34, [0, 2, 1] : vector<4x8x8xf32> -> vector<4x8x8xf32>
    %36 = vector.shape_cast %35 : vector<4x8x8xf32> to vector<32x8xf32>
    %37 = tpu.transpose %36, [1, 0] : vector<32x8xf32> -> vector<8x32xf32>
    %c0_15 = arith.constant 0 : index
    %c0_16 = arith.constant 0 : index
    %c0_17 = arith.constant 0 : index
    %38 = vector.load %arg6[%c0_15, %c0_16, %c0_17] : memref<1x32x32xf32, #tpu.memory_space<vmem>>, vector<1x32x32xf32>
    %39 = vector.shape_cast %38 : vector<1x32x32xf32> to vector<32x32xf32>
    %cst_18 = arith.constant dense<0.000000e+00> : vector<8x32xf32>
    %40 = tpu.matmul %37, %39, %cst_18 {dimension_numbers = #tpu.dot_dimension_numbers<[1], [0], [0], [1], [0, 0, 1, 1], [], []>, precision = #tpu.contract_precision<fp32>} : vector<8x32xf32>, vector<32x32xf32>, vector<8x32xf32> -> vector<8x32xf32>
    %c0_19 = arith.constant 0 : index
    %c0_20 = arith.constant 0 : index
    %c0_21 = arith.constant 0 : index
    %41 = vector.load %arg7[%c0_19, %c0_20, %c0_21] : memref<1x1x32xf32, #tpu.memory_space<vmem>>, vector<1x1x32xf32>
    %42 = vector.shape_cast %41 : vector<1x1x32xf32> to vector<1x32xf32>
    %43 = vector.broadcast %42 : vector<1x32xf32> to vector<8x32xf32>
    %44 = arith.addf %40, %43 : vector<8x32xf32>
    %45 = arith.addf %3, %44 : vector<8x32xf32>
    %cst_22 = arith.constant dense<0.000000e+00> : vector<8xf32>
    %46 = vector.multi_reduction <add>, %45, %cst_22 [1] : vector<8x32xf32> to vector<8xf32>
    %47 = vector.shape_cast %46 : vector<8xf32> to vector<8x1xf32>
    %cst_23 = arith.constant 3.200000e+01 : f32
    %48 = vector.broadcast %cst_23 : f32 to vector<8x1xf32>
    %49 = arith.divf %47, %48 : vector<8x1xf32>
    %50 = vector.broadcast %49 : vector<8x1xf32> to vector<8x32xf32>
    %51 = arith.subf %45, %50 : vector<8x32xf32>
    %52 = arith.mulf %51, %51 : vector<8x32xf32>
    %cst_24 = arith.constant dense<0.000000e+00> : vector<8xf32>
    %53 = vector.multi_reduction <add>, %52, %cst_24 [1] : vector<8x32xf32> to vector<8xf32>
    %54 = vector.shape_cast %53 : vector<8xf32> to vector<8x1xf32>
    %cst_25 = arith.constant 3.200000e+01 : f32
    %55 = vector.broadcast %cst_25 : f32 to vector<8x1xf32>
    %56 = arith.divf %54, %55 : vector<8x1xf32>
    %57 = vector.broadcast %49 : vector<8x1xf32> to vector<8x32xf32>
    %58 = arith.subf %45, %57 : vector<8x32xf32>
    %cst_26 = arith.constant 9.99999974E-6 : f32
    %59 = vector.broadcast %cst_26 : f32 to vector<8x1xf32>
    %60 = arith.addf %56, %59 : vector<8x1xf32>
    %61 = math.rsqrt %60 : vector<8x1xf32>
    %62 = vector.broadcast %61 : vector<8x1xf32> to vector<8x32xf32>
    %63 = arith.mulf %58, %62 : vector<8x32xf32>
    %c0_27 = arith.constant 0 : index
    %c0_28 = arith.constant 0 : index
    %c0_29 = arith.constant 0 : index
    %64 = vector.load %arg8[%c0_27, %c0_28, %c0_29] : memref<1x1x32xf32, #tpu.memory_space<vmem>>, vector<1x1x32xf32>
    %65 = vector.shape_cast %64 : vector<1x1x32xf32> to vector<1x32xf32>
    %66 = vector.broadcast %65 : vector<1x32xf32> to vector<8x32xf32>
    %67 = arith.mulf %63, %66 : vector<8x32xf32>
    %c0_30 = arith.constant 0 : index
    %c0_31 = arith.constant 0 : index
    %c0_32 = arith.constant 0 : index
    %68 = vector.load %arg9[%c0_30, %c0_31, %c0_32] : memref<1x1x32xf32, #tpu.memory_space<vmem>>, vector<1x1x32xf32>
    %69 = vector.shape_cast %68 : vector<1x1x32xf32> to vector<1x32xf32>
    %70 = vector.broadcast %69 : vector<1x32xf32> to vector<8x32xf32>
    %71 = arith.addf %67, %70 : vector<8x32xf32>
    %c0_33 = arith.constant 0 : index
    %c0_34 = arith.constant 0 : index
    %c0_35 = arith.constant 0 : index
    %72 = vector.load %arg10[%c0_33, %c0_34, %c0_35] : memref<1x32x128xf32, #tpu.memory_space<vmem>>, vector<1x32x128xf32>
    %73 = vector.shape_cast %72 : vector<1x32x128xf32> to vector<32x128xf32>
    %cst_36 = arith.constant dense<0.000000e+00> : vector<8x128xf32>
    %74 = tpu.matmul %71, %73, %cst_36 {dimension_numbers = #tpu.dot_dimension_numbers<[1], [0], [0], [1], [0, 0, 1, 1], [], []>, precision = #tpu.contract_precision<fp32>} : vector<8x32xf32>, vector<32x128xf32>, vector<8x128xf32> -> vector<8x128xf32>
    %c0_37 = arith.constant 0 : index
    %c0_38 = arith.constant 0 : index
    %c0_39 = arith.constant 0 : index
    %75 = vector.load %arg11[%c0_37, %c0_38, %c0_39] : memref<1x1x128xf32, #tpu.memory_space<vmem>>, vector<1x1x128xf32>
    %76 = vector.shape_cast %75 : vector<1x1x128xf32> to vector<1x128xf32>
    %77 = vector.broadcast %76 : vector<1x128xf32> to vector<8x128xf32>
    %78 = arith.addf %74, %77 : vector<8x128xf32>
    %cst_40 = arith.constant 0.000000e+00 : f32
    %79 = vector.broadcast %cst_40 : f32 to vector<8x128xf32>
    %80 = arith.maximumf %78, %79 : vector<8x128xf32>
    %c0_41 = arith.constant 0 : index
    %c0_42 = arith.constant 0 : index
    %c0_43 = arith.constant 0 : index
    %81 = vector.load %arg12[%c0_41, %c0_42, %c0_43] : memref<1x128x32xf32, #tpu.memory_space<vmem>>, vector<1x128x32xf32>
    %82 = vector.shape_cast %81 : vector<1x128x32xf32> to vector<128x32xf32>
    %cst_44 = arith.constant dense<0.000000e+00> : vector<8x32xf32>
    %83 = tpu.matmul %80, %82, %cst_44 {dimension_numbers = #tpu.dot_dimension_numbers<[1], [0], [0], [1], [0, 0, 1, 1], [], []>, precision = #tpu.contract_precision<fp32>} : vector<8x128xf32>, vector<128x32xf32>, vector<8x32xf32> -> vector<8x32xf32>
    %c0_45 = arith.constant 0 : index
    %c0_46 = arith.constant 0 : index
    %c0_47 = arith.constant 0 : index
    %84 = vector.load %arg13[%c0_45, %c0_46, %c0_47] : memref<1x1x32xf32, #tpu.memory_space<vmem>>, vector<1x1x32xf32>
    %85 = vector.shape_cast %84 : vector<1x1x32xf32> to vector<1x32xf32>
    %86 = vector.broadcast %85 : vector<1x32xf32> to vector<8x32xf32>
    %87 = arith.addf %83, %86 : vector<8x32xf32>
    %88 = arith.addf %71, %87 : vector<8x32xf32>
    %cst_48 = arith.constant dense<0.000000e+00> : vector<8xf32>
    %89 = vector.multi_reduction <add>, %88, %cst_48 [1] : vector<8x32xf32> to vector<8xf32>
    %90 = vector.shape_cast %89 : vector<8xf32> to vector<8x1xf32>
    %cst_49 = arith.constant 3.200000e+01 : f32
    %91 = vector.broadcast %cst_49 : f32 to vector<8x1xf32>
    %92 = arith.divf %90, %91 : vector<8x1xf32>
    %93 = vector.broadcast %92 : vector<8x1xf32> to vector<8x32xf32>
    %94 = arith.subf %88, %93 : vector<8x32xf32>
    %95 = arith.mulf %94, %94 : vector<8x32xf32>
    %cst_50 = arith.constant dense<0.000000e+00> : vector<8xf32>
    %96 = vector.multi_reduction <add>, %95, %cst_50 [1] : vector<8x32xf32> to vector<8xf32>
    %97 = vector.shape_cast %96 : vector<8xf32> to vector<8x1xf32>
    %cst_51 = arith.constant 3.200000e+01 : f32
    %98 = vector.broadcast %cst_51 : f32 to vector<8x1xf32>
    %99 = arith.divf %97, %98 : vector<8x1xf32>
    %100 = vector.broadcast %92 : vector<8x1xf32> to vector<8x32xf32>
    %101 = arith.subf %88, %100 : vector<8x32xf32>
    %cst_52 = arith.constant 9.99999974E-6 : f32
    %102 = vector.broadcast %cst_52 : f32 to vector<8x1xf32>
    %103 = arith.addf %99, %102 : vector<8x1xf32>
    %104 = math.rsqrt %103 : vector<8x1xf32>
    %105 = vector.broadcast %104 : vector<8x1xf32> to vector<8x32xf32>
    %106 = arith.mulf %101, %105 : vector<8x32xf32>
    %c0_53 = arith.constant 0 : index
    %c0_54 = arith.constant 0 : index
    %c0_55 = arith.constant 0 : index
    %107 = vector.load %arg14[%c0_53, %c0_54, %c0_55] : memref<1x1x32xf32, #tpu.memory_space<vmem>>, vector<1x1x32xf32>
    %108 = vector.shape_cast %107 : vector<1x1x32xf32> to vector<1x32xf32>
    %109 = vector.broadcast %108 : vector<1x32xf32> to vector<8x32xf32>
    %110 = arith.mulf %106, %109 : vector<8x32xf32>
    %c0_56 = arith.constant 0 : index
    %c0_57 = arith.constant 0 : index
    %c0_58 = arith.constant 0 : index
    %111 = vector.load %arg15[%c0_56, %c0_57, %c0_58] : memref<1x1x32xf32, #tpu.memory_space<vmem>>, vector<1x1x32xf32>
    %112 = vector.shape_cast %111 : vector<1x1x32xf32> to vector<1x32xf32>
    %113 = vector.broadcast %112 : vector<1x32xf32> to vector<8x32xf32>
    %114 = arith.addf %110, %113 : vector<8x32xf32>
    %c0_59 = arith.constant 0 : index
    %c0_60 = arith.constant 0 : index
    %115 = vector.load %arg17[%c0_59, %c0_60] : memref<8x32xf32, #tpu.memory_space<vmem>>, vector<8x32xf32>
    tpu.vector_store %arg17[%c0_59, %c0_60], %114 {strides = array<i32>} : memref<8x32xf32, #tpu.memory_space<vmem>>, vector<8x32xf32>,
    %c1_i32 = arith.constant 1 : i32
    %116 = arith.cmpi eq, %arg1, %c1_i32 : i32
    %117 = arith.extui %116 : i1 to i32
    %c0_i32_61 = arith.constant 0 : i32
    %118 = arith.cmpi ne, %117, %c0_i32_61 : i32
    scf.if %118 {
      %c0_62 = arith.constant 0 : index
      %c0_63 = arith.constant 0 : index
      %119 = vector.load %arg16[%c0_62, %c0_63] : memref<8x32xf32, #tpu.memory_space<vmem>>, vector<8x32xf32>
      tpu.vector_store %arg16[%c0_62, %c0_63], %114 {strides = array<i32>} : memref<8x32xf32, #tpu.memory_space<vmem>>, vector<8x32xf32>,
    } else {
    }
    return
  }
  func.func @transform_0(%arg0: i32, %arg1: i32) -> (i32, i32) {
    %c0_i32 = arith.constant 0 : i32
    %c0_i32_0 = arith.constant 0 : i32
    return %arg0, %c0_i32 : i32, i32
  }
  func.func @transform_1(%arg0: i32, %arg1: i32) -> (i32, i32) {
    %c0_i32 = arith.constant 0 : i32
    %c0_i32_0 = arith.constant 0 : i32
    %c0_i32_1 = arith.constant 0 : i32
    return %c0_i32, %c0_i32_0 : i32, i32
  }
  func.func @transform_2(%arg0: i32, %arg1: i32) -> (i32, i32, i32) {
    %c0_i32 = arith.constant 0 : i32
    %c0_i32_0 = arith.constant 0 : i32
    %c0_i32_1 = arith.constant 0 : i32
    return %arg1, %c0_i32, %c0_i32_0 : i32, i32, i32
  }
  func.func @transform_3(%arg0: i32, %arg1: i32) -> (i32, i32, i32) {
    %c0_i32 = arith.constant 0 : i32
    %c0_i32_0 = arith.constant 0 : i32
    %c0_i32_1 = arith.constant 0 : i32
    return %arg1, %c0_i32, %c0_i32_0 : i32, i32, i32
  }
  func.func @transform_4(%arg0: i32, %arg1: i32) -> (i32, i32, i32) {
    %c0_i32 = arith.constant 0 : i32
    %c0_i32_0 = arith.constant 0 : i32
    %c0_i32_1 = arith.constant 0 : i32
    return %arg1, %c0_i32, %c0_i32_0 : i32, i32, i32
  }
  func.func @transform_5(%arg0: i32, %arg1: i32) -> (i32, i32, i32) {
    %c0_i32 = arith.constant 0 : i32
    %c0_i32_0 = arith.constant 0 : i32
    %c0_i32_1 = arith.constant 0 : i32
    return %arg1, %c0_i32, %c0_i32_0 : i32, i32, i32
  }
  func.func @transform_6(%arg0: i32, %arg1: i32) -> (i32, i32, i32) {
    %c0_i32 = arith.constant 0 : i32
    %c0_i32_0 = arith.constant 0 : i32
    %c0_i32_1 = arith.constant 0 : i32
    return %arg1, %c0_i32, %c0_i32_0 : i32, i32, i32
  }
  func.func @transform_7(%arg0: i32, %arg1: i32) -> (i32, i32, i32) {
    %c0_i32 = arith.constant 0 : i32
    %c0_i32_0 = arith.constant 0 : i32
    %c0_i32_1 = arith.constant 0 : i32
    return %arg1, %c0_i32, %c0_i32_0 : i32, i32, i32
  }
  func.func @transform_8(%arg0: i32, %arg1: i32) -> (i32, i32, i32) {
    %c0_i32 = arith.constant 0 : i32
    %c0_i32_0 = arith.constant 0 : i32
    %c0_i32_1 = arith.constant 0 : i32
    return %arg1, %c0_i32, %c0_i32_0 : i32, i32, i32
  }
  func.func @transform_9(%arg0: i32, %arg1: i32) -> (i32, i32, i32) {
    %c0_i32 = arith.constant 0 : i32
    %c0_i32_0 = arith.constant 0 : i32
    %c0_i32_1 = arith.constant 0 : i32
    return %arg1, %c0_i32, %c0_i32_0 : i32, i32, i32
  }
  func.func @transform_10(%arg0: i32, %arg1: i32) -> (i32, i32, i32) {
    %c0_i32 = arith.constant 0 : i32
    %c0_i32_0 = arith.constant 0 : i32
    %c0_i32_1 = arith.constant 0 : i32
    return %arg1, %c0_i32, %c0_i32_0 : i32, i32, i32
  }
  func.func @transform_11(%arg0: i32, %arg1: i32) -> (i32, i32, i32) {
    %c0_i32 = arith.constant 0 : i32
    %c0_i32_0 = arith.constant 0 : i32
    %c0_i32_1 = arith.constant 0 : i32
    return %arg1, %c0_i32, %c0_i32_0 : i32, i32, i32
  }
  func.func @transform_12(%arg0: i32, %arg1: i32) -> (i32, i32, i32) {
    %c0_i32 = arith.constant 0 : i32
    %c0_i32_0 = arith.constant 0 : i32
    %c0_i32_1 = arith.constant 0 : i32
    return %arg1, %c0_i32, %c0_i32_0 : i32, i32, i32
  }
  func.func @transform_13(%arg0: i32, %arg1: i32) -> (i32, i32, i32) {
    %c0_i32 = arith.constant 0 : i32
    %c0_i32_0 = arith.constant 0 : i32
    %c0_i32_1 = arith.constant 0 : i32
    return %arg1, %c0_i32, %c0_i32_0 : i32, i32, i32
  }
  func.func @transform_14(%arg0: i32, %arg1: i32) -> (i32, i32) {
    %c0_i32 = arith.constant 0 : i32
    %c0_i32_0 = arith.constant 0 : i32
    return %arg0, %c0_i32 : i32, i32
  }
}

</mosaic_0001>

<llo_original>
// kernel: tpu_custom_call.1
$region0: #{tpu_custom_call.1}
  #allocation0 [shape = 'u32[]', space=smem, size = 0x4, offset = 0x4, fixed_abs, tag = 'smem constant byte address 0x4 - core index']
  #allocation1 [shape = 'u32[72,128]{1,0:T(1,128)}', space=vmem, size = 0x9000, scoped, tag = 'internal scratch']
  #allocation2 [shape = 'f32[8,32]{1,0:T(8,128)}', space=vmem, size = 0x1000, scoped, tag = 'scratch operand']
  %s0 = inlined_call_operand.vmem [shape: f32[16,32], index: 0, kind: input, shape index: {}]
  %s1 = inlined_call_operand.vmem [shape: f32[8,8], index: 1, kind: input, shape index: {}]
  %s2 = inlined_call_operand.vmem [shape: f32[2,32,96], index: 2, kind: input, shape index: {}]
  %s3 = inlined_call_operand.vmem [shape: f32[2,1,96], index: 3, kind: input, shape index: {}]
  %s4 = inlined_call_operand.vmem [shape: f32[2,32,32], index: 4, kind: input, shape index: {}]
  %s5 = inlined_call_operand.vmem [shape: f32[2,1,32], index: 5, kind: input, shape index: {}]
  %s6 = inlined_call_operand.vmem [shape: f32[2,1,32], index: 6, kind: input, shape index: {}]
  %s7 = inlined_call_operand.vmem [shape: f32[2,1,32], index: 7, kind: input, shape index: {}]
  %s8 = inlined_call_operand.vmem [shape: f32[2,32,128], index: 8, kind: input, shape index: {}]
  %s9 = inlined_call_operand.vmem [shape: f32[2,1,128], index: 9, kind: input, shape index: {}]
  %s10 = inlined_call_operand.vmem [shape: f32[2,128,32], index: 10, kind: input, shape index: {}]
  %s11 = inlined_call_operand.vmem [shape: f32[2,1,32], index: 11, kind: input, shape index: {}]
  %s12 = inlined_call_operand.vmem [shape: f32[2,1,32], index: 12, kind: input, shape index: {}]
  %s13 = inlined_call_operand.vmem [shape: f32[2,1,32], index: 13, kind: input, shape index: {}]
  %s14 = inlined_call_operand.hbm [shape: f32[16,32], index: 14, kind: output, shape index: {}]
  %s15 = sld [smem:[#allocation0]]
  $region97: #{tpu_custom_call.1} parent=0
    _
  %s17 = ssub.s32 1, %s15
  %s18 = scalar_select 0, %s17, %s15
  $region1: #{tpu_custom_call.1} parent=0
    #allocation3 [shape = 'u8[8192]{0}', space=vmem, size = 0x2000, scoped, tag = 'output window, operand 0']
    #allocation4 [shape = 's32[2]{0}', space=sflag, size = 0x8, scoped, tag = 'scoped memory for tpu_custom_call.1']
    %19 = vsyncpa [#allocation4], 0
    %s20 = scalar_lea.sflag [#allocation4], 1
    %21 = vsyncpa %s20, 0
    loop: start=0, step=1, limit=6
    $region2: #{tpu_custom_call.1} parent=1 // loop_pre_header
      _
    $region3: #{tpu_custom_call.1} parent=1 // loop_header
      %s23 = sphi 0, %s27
      %p24 = scmp.ge.s32.totalorder %s23, 6
      %s30 = sphi 0, %s42
      %s31 = sphi 0, %s38
      %s32 = sphi 0, %s30
      %s33 = sphi 0, %s31
      %s34 = sphi 0, %s32
      %s35 = sphi 0, %s33
      %s45 = sphi 0, %s47
      %s48 = sphi 0, %s45
      %s49 = sphi 0, %s48
      %s65 = sphi 0, %s49
      %s69 = sphi 0, %s69
      %s71 = sphi 0, %s69
      %s72 = sphi 0, %s71
      %s86 = sphi 0, %s72
      %s92 = sphi 0, %s94
      %s95 = sphi 0, %s92
      %s96 = sphi 0, %s95
      %s112 = sphi 0, %s96
      %s118 = sphi 0, %s120
      %s121 = sphi 0, %s118
      %s122 = sphi 0, %s121
      %s138 = sphi 0, %s122
      %s144 = sphi 0, %s146
      %s147 = sphi 0, %s144
      %s148 = sphi 0, %s147
      %s164 = sphi 0, %s148
      %s170 = sphi 0, %s172
      %s173 = sphi 0, %s170
      %s174 = sphi 0, %s173
      %s190 = sphi 0, %s174
      %s196 = sphi 0, %s198
      %s199 = sphi 0, %s196
      %s200 = sphi 0, %s199
      %s216 = sphi 0, %s200
      %s222 = sphi 0, %s224
      %s225 = sphi 0, %s222
      %s226 = sphi 0, %s225
      %s242 = sphi 0, %s226
      %s248 = sphi 0, %s250
      %s251 = sphi 0, %s248
      %s252 = sphi 0, %s251
      %s268 = sphi 0, %s252
      %s274 = sphi 0, %s276
      %s277 = sphi 0, %s274
      %s278 = sphi 0, %s277
      %s294 = sphi 0, %s278
      %s300 = sphi 0, %s302
      %s303 = sphi 0, %s300
      %s304 = sphi 0, %s303
      %s320 = sphi 0, %s304
      %s326 = sphi 0, %s328
      %s329 = sphi 0, %s326
      %s330 = sphi 0, %s329
      %s346 = sphi 0, %s330
      %s352 = sphi 0, %s354
      %s355 = sphi 0, %s352
      %s356 = sphi 0, %s355
      %s372 = sphi 0, %s356
      %s378 = sphi 0, %s380
      %s381 = sphi 0, %s378
      %s382 = sphi 0, %s381
      %s398 = sphi 0, %s382
      %s404 = sphi 0, %s406
      %s407 = sphi 0, %s404
      %s408 = sphi 0, %s407
      %s424 = sphi 0, %s408
    $region4: #{tpu_custom_call.1} parent=1 // loop_header_branch
      %26 = sbr.rel (%p24) target = $region8
    $region5: #{tpu_custom_call.1} parent=1 // loop_body
      %s28 = ssub.s32 %s23, 1
      %s29 = ssub.s32 %s23, 2
      %s36 = sadd.s32 1, %s31
      %p37 = scmp.ge.s32.totalorder %s36, 2
      %s38 = scalar_select %p37, 0, %s36
      %s39 = sadd.s32 1, %s30
      %s40 = scalar_select %p37, %s39, %s30
      %p41 = scmp.ge.s32.totalorder %s40, 2
      %s42 = scalar_select %p41, 0, %s40
      %s43 = ssub.s32 %s30, %s42
      %p44 = scmp.eq.s32.totalorder %s43, 0
      %s46 = sadd.s32 %s45, 1
      %s47 = scalar_select %p44, %s45, %s46
      %p50 = pneg %p44
      %p51 = scmp.eq.s32.totalorder %s23, 3
      %p52 = por %p50, %p51
      %p53 = scmp.ne.s32.totalorder %s45, %s48
      %p54 = scmp.eq.s32.totalorder %s23, 0
      %p55 = por %p53, %p54
      %p56 = scmp.ne.s32.totalorder %s45, %s48
      %p57 = scmp.eq.s32.totalorder %s28, 3
      %p58 = por %p56, %p57
      %p59 = scmp.ne.s32.totalorder %s48, %s49
      %p60 = scmp.eq.s32.totalorder %s28, 0
      %p61 = por %p59, %p60
      %p62 = scmp.ne.s32.totalorder %s48, %s49
      %p63 = scmp.eq.s32.totalorder %s29, 3
      %p64 = por %p62, %p63
      %p66 = scmp.ne.s32.totalorder %s49, %s65
      %p67 = scmp.eq.s32.totalorder %s29, 0
      %p68 = por %p66, %p67
      %s70 = sadd.s32 %s69, 1
      %p73 = scmp.eq.s32.totalorder %s23, 3
      %p74 = scmp.ne.s32.totalorder %s69, %s71
      %p75 = scmp.eq.s32.totalorder %s23, 0
      %p76 = por %p74, %p75
      %p77 = scmp.ne.s32.totalorder %s69, %s71
      %p78 = scmp.eq.s32.totalorder %s28, 3
      %p79 = por %p77, %p78
      %p80 = scmp.ne.s32.totalorder %s71, %s72
      %p81 = scmp.eq.s32.totalorder %s28, 0
      %p82 = por %p80, %p81
      %p83 = scmp.ne.s32.totalorder %s71, %s72
      %p84 = scmp.eq.s32.totalorder %s29, 3
      %p85 = por %p83, %p84
      %p87 = scmp.ne.s32.totalorder %s72, %s86
      %p88 = scmp.eq.s32.totalorder %s29, 0
      %p89 = por %p87, %p88
      %s90 = ssub.s32 %s31, %s38
      %p91 = scmp.eq.s32.totalorder %s90, 0
      %s93 = sadd.s32 %s92, 1
      %s94 = scalar_select %p91, %s92, %s93
      %p97 = pneg %p91
      %p98 = scmp.eq.s32.totalorder %s23, 3
      %p99 = por %p97, %p98
      %p100 = scmp.ne.s32.totalorder %s92, %s95
      %p101 = scmp.eq.s32.totalorder %s23, 0
      %p102 = por %p100, %p101
      %p103 = scmp.ne.s32.totalorder %s92, %s95
      %p104 = scmp.eq.s32.totalorder %s28, 3
      %p105 = por %p103, %p104
      %p106 = scmp.ne.s32.totalorder %s95, %s96
      %p107 = scmp.eq.s32.totalorder %s28, 0
      %p108 = por %p106, %p107
      %p109 = scmp.ne.s32.totalorder %s95, %s96
      %p110 = scmp.eq.s32.totalorder %s29, 3
      %p111 = por %p109, %p110
      %p113 = scmp.ne.s32.totalorder %s96, %s112
      %p114 = scmp.eq.s32.totalorder %s29, 0
      %p115 = por %p113, %p114
      %s116 = ssub.s32 %s31, %s38
      %p117 = scmp.eq.s32.totalorder %s116, 0
      %s119 = sadd.s32 %s118, 1
      %s120 = scalar_select %p117, %s118, %s119
      %p123 = pneg %p117
      %p124 = scmp.eq.s32.totalorder %s23, 3
      %p125 = por %p123, %p124
      %p126 = scmp.ne.s32.totalorder %s118, %s121
      %p127 = scmp.eq.s32.totalorder %s23, 0
      %p128 = por %p126, %p127
      %p129 = scmp.ne.s32.totalorder %s118, %s121
      %p130 = scmp.eq.s32.totalorder %s28, 3
      %p131 = por %p129, %p130
      %p132 = scmp.ne.s32.totalorder %s121, %s122
      %p133 = scmp.eq.s32.totalorder %s28, 0
      %p134 = por %p132, %p133
      %p135 = scmp.ne.s32.totalorder %s121, %s122
      %p136 = scmp.eq.s32.totalorder %s29, 3
      %p137 = por %p135, %p136
      %p139 = scmp.ne.s32.totalorder %s122, %s138
      %p140 = scmp.eq.s32.totalorder %s29, 0
      %p141 = por %p139, %p140
      %s142 = ssub.s32 %s31, %s38
      %p143 = scmp.eq.s32.totalorder %s142, 0
      %s145 = sadd.s32 %s144, 1
      %s146 = scalar_select %p143, %s144, %s145
      %p149 = pneg %p143
      %p150 = scmp.eq.s32.totalorder %s23, 3
      %p151 = por %p149, %p150
      %p152 = scmp.ne.s32.totalorder %s144, %s147
      %p153 = scmp.eq.s32.totalorder %s23, 0
      %p154 = por %p152, %p153
      %p155 = scmp.ne.s32.totalorder %s144, %s147
      %p156 = scmp.eq.s32.totalorder %s28, 3
      %p157 = por %p155, %p156
      %p158 = scmp.ne.s32.totalorder %s147, %s148
      %p159 = scmp.eq.s32.totalorder %s28, 0
      %p160 = por %p158, %p159
      %p161 = scmp.ne.s32.totalorder %s147, %s148
      %p162 = scmp.eq.s32.totalorder %s29, 3
      %p163 = por %p161, %p162
      %p165 = scmp.ne.s32.totalorder %s148, %s164
      %p166 = scmp.eq.s32.totalorder %s29, 0
      %p167 = por %p165, %p166
      %s168 = ssub.s32 %s31, %s38
      %p169 = scmp.eq.s32.totalorder %s168, 0
      %s171 = sadd.s32 %s170, 1
      %s172 = scalar_select %p169, %s170, %s171
      %p175 = pneg %p169
      %p176 = scmp.eq.s32.totalorder %s23, 3
      %p177 = por %p175, %p176
      %p178 = scmp.ne.s32.totalorder %s170, %s173
      %p179 = scmp.eq.s32.totalorder %s23, 0
      %p180 = por %p178, %p179
      %p181 = scmp.ne.s32.totalorder %s170, %s173
      %p182 = scmp.eq.s32.totalorder %s28, 3
      %p183 = por %p181, %p182
      %p184 = scmp.ne.s32.totalorder %s173, %s174
      %p185 = scmp.eq.s32.totalorder %s28, 0
      %p186 = por %p184, %p185
      %p187 = scmp.ne.s32.totalorder %s173, %s174
      %p188 = scmp.eq.s32.totalorder %s29, 3
      %p189 = por %p187, %p188
      %p191 = scmp.ne.s32.totalorder %s174, %s190
      %p192 = scmp.eq.s32.totalorder %s29, 0
      %p193 = por %p191, %p192
      %s194 = ssub.s32 %s31, %s38
      %p195 = scmp.eq.s32.totalorder %s194, 0
      %s197 = sadd.s32 %s196, 1
      %s198 = scalar_select %p195, %s196, %s197
      %p201 = pneg %p195
      %p202 = scmp.eq.s32.totalorder %s23, 3
      %p203 = por %p201, %p202
      %p204 = scmp.ne.s32.totalorder %s196, %s199
      %p205 = scmp.eq.s32.totalorder %s23, 0
      %p206 = por %p204, %p205
      %p207 = scmp.ne.s32.totalorder %s196, %s199
      %p208 = scmp.eq.s32.totalorder %s28, 3
      %p209 = por %p207, %p208
      %p210 = scmp.ne.s32.totalorder %s199, %s200
      %p211 = scmp.eq.s32.totalorder %s28, 0
      %p212 = por %p210, %p211
      %p213 = scmp.ne.s32.totalorder %s199, %s200
      %p214 = scmp.eq.s32.totalorder %s29, 3
      %p215 = por %p213, %p214
      %p217 = scmp.ne.s32.totalorder %s200, %s216
      %p218 = scmp.eq.s32.totalorder %s29, 0
      %p219 = por %p217, %p218
      %s220 = ssub.s32 %s31, %s38
      %p221 = scmp.eq.s32.totalorder %s220, 0
      %s223 = sadd.s32 %s222, 1
      %s224 = scalar_select %p221, %s222, %s223
      %p227 = pneg %p221
      %p228 = scmp.eq.s32.totalorder %s23, 3
      %p229 = por %p227, %p228
      %p230 = scmp.ne.s32.totalorder %s222, %s225
      %p231 = scmp.eq.s32.totalorder %s23, 0
      %p232 = por %p230, %p231
      %p233 = scmp.ne.s32.totalorder %s222, %s225
      %p234 = scmp.eq.s32.totalorder %s28, 3
      %p235 = por %p233, %p234
      %p236 = scmp.ne.s32.totalorder %s225, %s226
      %p237 = scmp.eq.s32.totalorder %s28, 0
      %p238 = por %p236, %p237
      %p239 = scmp.ne.s32.totalorder %s225, %s226
      %p240 = scmp.eq.s32.totalorder %s29, 3
      %p241 = por %p239, %p240
      %p243 = scmp.ne.s32.totalorder %s226, %s242
      %p244 = scmp.eq.s32.totalorder %s29, 0
      %p245 = por %p243, %p244
      %s246 = ssub.s32 %s31, %s38
      %p247 = scmp.eq.s32.totalorder %s246, 0
      %s249 = sadd.s32 %s248, 1
      %s250 = scalar_select %p247, %s248, %s249
      %p253 = pneg %p247
      %p254 = scmp.eq.s32.totalorder %s23, 3
      %p255 = por %p253, %p254
      %p256 = scmp.ne.s32.totalorder %s248, %s251
      %p257 = scmp.eq.s32.totalorder %s23, 0
      %p258 = por %p256, %p257
      %p259 = scmp.ne.s32.totalorder %s248, %s251
      %p260 = scmp.eq.s32.totalorder %s28, 3
      %p261 = por %p259, %p260
      %p262 = scmp.ne.s32.totalorder %s251, %s252
      %p263 = scmp.eq.s32.totalorder %s28, 0
      %p264 = por %p262, %p263
      %p265 = scmp.ne.s32.totalorder %s251, %s252
      %p266 = scmp.eq.s32.totalorder %s29, 3
      %p267 = por %p265, %p266
      %p269 = scmp.ne.s32.totalorder %s252, %s268
      %p270 = scmp.eq.s32.totalorder %s29, 0
      %p271 = por %p269, %p270
      %s272 = ssub.s32 %s31, %s38
      %p273 = scmp.eq.s32.totalorder %s272, 0
      %s275 = sadd.s32 %s274, 1
      %s276 = scalar_select %p273, %s274, %s275
      %p279 = pneg %p273
      %p280 = scmp.eq.s32.totalorder %s23, 3
      %p281 = por %p279, %p280
      %p282 = scmp.ne.s32.totalorder %s274, %s277
      %p283 = scmp.eq.s32.totalorder %s23, 0
      %p284 = por %p282, %p283
      %p285 = scmp.ne.s32.totalorder %s274, %s277
      %p286 = scmp.eq.s32.totalorder %s28, 3
      %p287 = por %p285, %p286
      %p288 = scmp.ne.s32.totalorder %s277, %s278
      %p289 = scmp.eq.s32.totalorder %s28, 0
      %p290 = por %p288, %p289
      %p291 = scmp.ne.s32.totalorder %s277, %s278
      %p292 = scmp.eq.s32.totalorder %s29, 3
      %p293 = por %p291, %p292
      %p295 = scmp.ne.s32.totalorder %s278, %s294
      %p296 = scmp.eq.s32.totalorder %s29, 0
      %p297 = por %p295, %p296
      %s298 = ssub.s32 %s31, %s38
      %p299 = scmp.eq.s32.totalorder %s298, 0
      %s301 = sadd.s32 %s300, 1
      %s302 = scalar_select %p299, %s300, %s301
      %p305 = pneg %p299
      %p306 = scmp.eq.s32.totalorder %s23, 3
      %p307 = por %p305, %p306
      %p308 = scmp.ne.s32.totalorder %s300, %s303
      %p309 = scmp.eq.s32.totalorder %s23, 0
      %p310 = por %p308, %p309
      %p311 = scmp.ne.s32.totalorder %s300, %s303
      %p312 = scmp.eq.s32.totalorder %s28, 3
      %p313 = por %p311, %p312
      %p314 = scmp.ne.s32.totalorder %s303, %s304
      %p315 = scmp.eq.s32.totalorder %s28, 0
      %p316 = por %p314, %p315
      %p317 = scmp.ne.s32.totalorder %s303, %s304
      %p318 = scmp.eq.s32.totalorder %s29, 3
      %p319 = por %p317, %p318
      %p321 = scmp.ne.s32.totalorder %s304, %s320
      %p322 = scmp.eq.s32.totalorder %s29, 0
      %p323 = por %p321, %p322
      %s324 = ssub.s32 %s31, %s38
      %p325 = scmp.eq.s32.totalorder %s324, 0
      %s327 = sadd.s32 %s326, 1
      %s328 = scalar_select %p325, %s326, %s327
      %p331 = pneg %p325
      %p332 = scmp.eq.s32.totalorder %s23, 3
      %p333 = por %p331, %p332
      %p334 = scmp.ne.s32.totalorder %s326, %s329
      %p335 = scmp.eq.s32.totalorder %s23, 0
      %p336 = por %p334, %p335
      %p337 = scmp.ne.s32.totalorder %s326, %s329
      %p338 = scmp.eq.s32.totalorder %s28, 3
      %p339 = por %p337, %p338
      %p340 = scmp.ne.s32.totalorder %s329, %s330
      %p341 = scmp.eq.s32.totalorder %s28, 0
      %p342 = por %p340, %p341
      %p343 = scmp.ne.s32.totalorder %s329, %s330
      %p344 = scmp.eq.s32.totalorder %s29, 3
      %p345 = por %p343, %p344
      %p347 = scmp.ne.s32.totalorder %s330, %s346
      %p348 = scmp.eq.s32.totalorder %s29, 0
      %p349 = por %p347, %p348
      %s350 = ssub.s32 %s31, %s38
      %p351 = scmp.eq.s32.totalorder %s350, 0
      %s353 = sadd.s32 %s352, 1
      %s354 = scalar_select %p351, %s352, %s353
      %p357 = pneg %p351
      %p358 = scmp.eq.s32.totalorder %s23, 3
      %p359 = por %p357, %p358
      %p360 = scmp.ne.s32.totalorder %s352, %s355
      %p361 = scmp.eq.s32.totalorder %s23, 0
      %p362 = por %p360, %p361
      %p363 = scmp.ne.s32.totalorder %s352, %s355
      %p364 = scmp.eq.s32.totalorder %s28, 3
      %p365 = por %p363, %p364
      %p366 = scmp.ne.s32.totalorder %s355, %s356
      %p367 = scmp.eq.s32.totalorder %s28, 0
      %p368 = por %p366, %p367
      %p369 = scmp.ne.s32.totalorder %s355, %s356
      %p370 = scmp.eq.s32.totalorder %s29, 3
      %p371 = por %p369, %p370
      %p373 = scmp.ne.s32.totalorder %s356, %s372
      %p374 = scmp.eq.s32.totalorder %s29, 0
      %p375 = por %p373, %p374
      %s376 = ssub.s32 %s31, %s38
      %p377 = scmp.eq.s32.totalorder %s376, 0
      %s379 = sadd.s32 %s378, 1
      %s380 = scalar_select %p377, %s378, %s379
      %p383 = pneg %p377
      %p384 = scmp.eq.s32.totalorder %s23, 3
      %p385 = por %p383, %p384
      %p386 = scmp.ne.s32.totalorder %s378, %s381
      %p387 = scmp.eq.s32.totalorder %s23, 0
      %p388 = por %p386, %p387
      %p389 = scmp.ne.s32.totalorder %s378, %s381
      %p390 = scmp.eq.s32.totalorder %s28, 3
      %p391 = por %p389, %p390
      %p392 = scmp.ne.s32.totalorder %s381, %s382
      %p393 = scmp.eq.s32.totalorder %s28, 0
      %p394 = por %p392, %p393
      %p395 = scmp.ne.s32.totalorder %s381, %s382
      %p396 = scmp.eq.s32.totalorder %s29, 3
      %p397 = por %p395, %p396
      %p399 = scmp.ne.s32.totalorder %s382, %s398
      %p400 = scmp.eq.s32.totalorder %s29, 0
      %p401 = por %p399, %p400
      %s402 = ssub.s32 %s30, %s42
      %p403 = scmp.eq.s32.totalorder %s402, 0
      %s405 = sadd.s32 %s404, 1
      %s406 = scalar_select %p403, %s404, %s405
      %p409 = pneg %p403
      %p410 = scmp.eq.s32.totalorder %s23, 3
      %p411 = por %p409, %p410
      %p412 = scmp.ne.s32.totalorder %s404, %s407
      %p413 = scmp.eq.s32.totalorder %s23, 0
      %p414 = por %p412, %p413
      %p415 = scmp.ne.s32.totalorder %s404, %s407
      %p416 = scmp.eq.s32.totalorder %s28, 3
      %p417 = por %p415, %p416
      %p418 = scmp.ne.s32.totalorder %s407, %s408
      %p419 = scmp.eq.s32.totalorder %s28, 0
      %p420 = por %p418, %p419
      %p421 = scmp.ne.s32.totalorder %s407, %s408
      %p422 = scmp.eq.s32.totalorder %s29, 3
      %p423 = por %p421, %p422
      %p425 = scmp.ne.s32.totalorder %s408, %s424
      %p426 = scmp.eq.s32.totalorder %s29, 0
      %p427 = por %p425, %p426
      %p428 = scmp.le.s32.totalorder 1, %s23
      %p429 = scmp.lt.s32.totalorder %s23, 5
      %p430 = pnand %p428, %p429
      %p431 = pneg %p430
      // Predicated region
      $region9: #{tpu_custom_call.1} parent=5 // pred_check
        _
      $region10: #{tpu_custom_call.1} parent=5 // pred_check_branch
        %433 = sbr.rel (%p430) target = $region12
      $region11: #{tpu_custom_call.1} parent=5 // pred_region
        %s434 = ssub.s32 %s23, 1
        // Predicated region
        $region13: #{tpu_custom_call.1} parent=11 // pred_check
          %p435 = pneg %p82
        $region14: #{tpu_custom_call.1} parent=11 // pred_check_branch
          %437 = sbr.rel (%p435) target = $region16
        $region15: #{tpu_custom_call.1} parent=11 // pred_region
          _
        $region16: #{tpu_custom_call.1} parent=11 // pred_fallthru
          _
      $region12: #{tpu_custom_call.1} parent=5 // pred_fallthru
        _
      %p438 = scmp.lt.s32.totalorder %s23, 4
      // Predicated region
      $region17: #{tpu_custom_call.1} parent=5 // pred_check
        %p439 = pneg %p438
      $region18: #{tpu_custom_call.1} parent=5 // pred_check_branch
        %441 = sbr.rel (%p439) target = $region20
      $region19: #{tpu_custom_call.1} parent=5 // pred_region
        // Predicated region
        $region21: #{tpu_custom_call.1} parent=19 // pred_check
          %p442 = pneg %p55
        $region22: #{tpu_custom_call.1} parent=19 // pred_check_branch
          %444 = sbr.rel (%p442) target = $region24
        $region23: #{tpu_custom_call.1} parent=19 // pred_region
          %p445 = scmp.lt.s32.totalorder %s30, 1
          %s446 = scalar_select %p445, %s30, 1
          %s447 = smul.addr %s446, 8
          %s448 = scalar_lea.vmem %s0, %s447
        $region24: #{tpu_custom_call.1} parent=19 // pred_fallthru
          _
        // Predicated region
        $region25: #{tpu_custom_call.1} parent=19 // pred_check
          %p449 = pneg %p102
        $region26: #{tpu_custom_call.1} parent=19 // pred_check_branch
          %451 = sbr.rel (%p449) target = $region28
        $region27: #{tpu_custom_call.1} parent=19 // pred_region
          %p452 = scmp.lt.s32.totalorder %s31, 1
          %s453 = scalar_select %p452, %s31, 1
          %s454 = smul.addr %s453, 4
          %s455 = smul.addr %s454, 8
          %s456 = scalar_lea.vmem %s2, %s455
        $region28: #{tpu_custom_call.1} parent=19 // pred_fallthru
          _
        // Predicated region
        $region29: #{tpu_custom_call.1} parent=19 // pred_check
          %p457 = pneg %p128
        $region30: #{tpu_custom_call.1} parent=19 // pred_check_branch
          %459 = sbr.rel (%p457) target = $region32
        $region31: #{tpu_custom_call.1} parent=19 // pred_region
          %p460 = scmp.lt.s32.totalorder %s31, 1
          %s461 = scalar_select %p460, %s31, 1
          %s462 = scalar_lea.vmem %s3, %s461
        $region32: #{tpu_custom_call.1} parent=19 // pred_fallthru
          _
        // Predicated region
        $region33: #{tpu_custom_call.1} parent=19 // pred_check
          %p463 = pneg %p154
        $region34: #{tpu_custom_call.1} parent=19 // pred_check_branch
          %465 = sbr.rel (%p463) target = $region36
        $region35: #{tpu_custom_call.1} parent=19 // pred_region
          %p466 = scmp.lt.s32.totalorder %s31, 1
          %s467 = scalar_select %p466, %s31, 1
          %s468 = smul.addr %s467, 4
          %s469 = smul.addr %s468, 8
          %s470 = scalar_lea.vmem %s4, %s469
        $region36: #{tpu_custom_call.1} parent=19 // pred_fallthru
          _
        // Predicated region
        $region37: #{tpu_custom_call.1} parent=19 // pred_check
          %p471 = pneg %p180
        $region38: #{tpu_custom_call.1} parent=19 // pred_check_branch
          %473 = sbr.rel (%p471) target = $region40
        $region39: #{tpu_custom_call.1} parent=19 // pred_region
          %p474 = scmp.lt.s32.totalorder %s31, 1
          %s475 = scalar_select %p474, %s31, 1
          %s476 = scalar_lea.vmem %s5, %s475
        $region40: #{tpu_custom_call.1} parent=19 // pred_fallthru
          _
        // Predicated region
        $region41: #{tpu_custom_call.1} parent=19 // pred_check
          %p477 = pneg %p206
        $region42: #{tpu_custom_call.1} parent=19 // pred_check_branch
          %479 = sbr.rel (%p477) target = $region44
        $region43: #{tpu_custom_call.1} parent=19 // pred_region
          %p480 = scmp.lt.s32.totalorder %s31, 1
          %s481 = scalar_select %p480, %s31, 1
          %s482 = scalar_lea.vmem %s6, %s481
        $region44: #{tpu_custom_call.1} parent=19 // pred_fallthru
          _
        // Predicated region
        $region45: #{tpu_custom_call.1} parent=19 // pred_check
          %p483 = pneg %p232
        $region46: #{tpu_custom_call.1} parent=19 // pred_check_branch
          %485 = sbr.rel (%p483) target = $region48
        $region47: #{tpu_custom_call.1} parent=19 // pred_region
          %p486 = scmp.lt.s32.totalorder %s31, 1
          %s487 = scalar_select %p486, %s31, 1
          %s488 = scalar_lea.vmem %s7, %s487
        $region48: #{tpu_custom_call.1} parent=19 // pred_fallthru
          _
        // Predicated region
        $region49: #{tpu_custom_call.1} parent=19 // pred_check
          %p489 = pneg %p258
        $region50: #{tpu_custom_call.1} parent=19 // pred_check_branch
          %491 = sbr.rel (%p489) target = $region52
        $region51: #{tpu_custom_call.1} parent=19 // pred_region
          %p492 = scmp.lt.s32.totalorder %s31, 1
          %s493 = scalar_select %p492, %s31, 1
          %s494 = smul.addr %s493, 4
          %s495 = smul.addr %s494, 8
          %s496 = scalar_lea.vmem %s8, %s495
        $region52: #{tpu_custom_call.1} parent=19 // pred_fallthru
          _
        // Predicated region
        $region53: #{tpu_custom_call.1} parent=19 // pred_check
          %p497 = pneg %p284
        $region54: #{tpu_custom_call.1} parent=19 // pred_check_branch
          %499 = sbr.rel (%p497) target = $region56
        $region55: #{tpu_custom_call.1} parent=19 // pred_region
          %p500 = scmp.lt.s32.totalorder %s31, 1
          %s501 = scalar_select %p500, %s31, 1
          %s502 = scalar_lea.vmem %s9, %s501
        $region56: #{tpu_custom_call.1} parent=19 // pred_fallthru
          _
        // Predicated region
        $region57: #{tpu_custom_call.1} parent=19 // pred_check
          %p503 = pneg %p310
        $region58: #{tpu_custom_call.1} parent=19 // pred_check_branch
          %505 = sbr.rel (%p503) target = $region60
        $region59: #{tpu_custom_call.1} parent=19 // pred_region
          %p506 = scmp.lt.s32.totalorder %s31, 1
          %s507 = scalar_select %p506, %s31, 1
          %s508 = smul.addr %s507, 16
          %s509 = smul.addr %s508, 8
          %s510 = scalar_lea.vmem %s10, %s509
        $region60: #{tpu_custom_call.1} parent=19 // pred_fallthru
          _
        // Predicated region
        $region61: #{tpu_custom_call.1} parent=19 // pred_check
          %p511 = pneg %p336
        $region62: #{tpu_custom_call.1} parent=19 // pred_check_branch
          %513 = sbr.rel (%p511) target = $region64
        $region63: #{tpu_custom_call.1} parent=19 // pred_region
          %p514 = scmp.lt.s32.totalorder %s31, 1
          %s515 = scalar_select %p514, %s31, 1
          %s516 = scalar_lea.vmem %s11, %s515
        $region64: #{tpu_custom_call.1} parent=19 // pred_fallthru
          _
        // Predicated region
        $region65: #{tpu_custom_call.1} parent=19 // pred_check
          %p517 = pneg %p362
        $region66: #{tpu_custom_call.1} parent=19 // pred_check_branch
          %519 = sbr.rel (%p517) target = $region68
        $region67: #{tpu_custom_call.1} parent=19 // pred_region
          %p520 = scmp.lt.s32.totalorder %s31, 1
          %s521 = scalar_select %p520, %s31, 1
          %s522 = scalar_lea.vmem %s12, %s521
        $region68: #{tpu_custom_call.1} parent=19 // pred_fallthru
          _
        // Predicated region
        $region69: #{tpu_custom_call.1} parent=19 // pred_check
          %p523 = pneg %p388
        $region70: #{tpu_custom_call.1} parent=19 // pred_check_branch
          %525 = sbr.rel (%p523) target = $region72
        $region71: #{tpu_custom_call.1} parent=19 // pred_region
          %p526 = scmp.lt.s32.totalorder %s31, 1
          %s527 = scalar_select %p526, %s31, 1
          %s528 = scalar_lea.vmem %s13, %s527
        $region72: #{tpu_custom_call.1} parent=19 // pred_fallthru
          _
      $region20: #{tpu_custom_call.1} parent=5 // pred_fallthru
        _
      %p529 = scmp.le.s32.totalorder 1, %s23
      %p530 = scmp.lt.s32.totalorder %s23, 5
      %p531 = pnand %p529, %p530
      %p532 = pneg %p531
      // Predicated region
      $region73: #{tpu_custom_call.1} parent=5 // pred_check
        _
      $region74: #{tpu_custom_call.1} parent=5 // pred_check_branch
        %534 = sbr.rel (%p531) target = $region76
      $region75: #{tpu_custom_call.1} parent=5 // pred_region
        %s535 = ssub.s32 %s23, 1
        %p536 = scmp.lt.s32.totalorder %s32, 1
        %s537 = scalar_select %p536, %s32, 1
        %s538 = smul.addr %s537, 8
        %s539 = scalar_lea.vmem %s0, %s538
        %p540 = pneg %p61
        %p541 = pneg %p58
        %p542 = pneg %p82
        %p543 = pneg %p79
        %p544 = scmp.lt.s32.totalorder %s33, 1
        %s545 = scalar_select %p544, %s33, 1
        %s546 = smul.addr %s545, 4
        %s547 = smul.addr %s546, 8
        %s548 = scalar_lea.vmem %s2, %s547
        %p549 = pneg %p108
        %p550 = pneg %p105
        %p551 = scmp.lt.s32.totalorder %s33, 1
        %s552 = scalar_select %p551, %s33, 1
        %s553 = scalar_lea.vmem %s3, %s552
        %p554 = pneg %p134
        %p555 = pneg %p131
        %p556 = scmp.lt.s32.totalorder %s33, 1
        %s557 = scalar_select %p556, %s33, 1
        %s558 = smul.addr %s557, 4
        %s559 = smul.addr %s558, 8
        %s560 = scalar_lea.vmem %s4, %s559
        %p561 = pneg %p160
        %p562 = pneg %p157
        %p563 = scmp.lt.s32.totalorder %s33, 1
        %s564 = scalar_select %p563, %s33, 1
        %s565 = scalar_lea.vmem %s5, %s564
        %p566 = pneg %p186
        %p567 = pneg %p183
        %p568 = scmp.lt.s32.totalorder %s33, 1
        %s569 = scalar_select %p568, %s33, 1
        %s570 = scalar_lea.vmem %s6, %s569
        %p571 = pneg %p212
        %p572 = pneg %p209
        %p573 = scmp.lt.s32.totalorder %s33, 1
        %s574 = scalar_select %p573, %s33, 1
        %s575 = scalar_lea.vmem %s7, %s574
        %p576 = pneg %p238
        %p577 = pneg %p235
        %p578 = scmp.lt.s32.totalorder %s33, 1
        %s579 = scalar_select %p578, %s33, 1
        %s580 = smul.addr %s579, 4
        %s581 = smul.addr %s580, 8
        %s582 = scalar_lea.vmem %s8, %s581
        %p583 = pneg %p264
        %p584 = pneg %p261
        %p585 = scmp.lt.s32.totalorder %s33, 1
        %s586 = scalar_select %p585, %s33, 1
        %s587 = scalar_lea.vmem %s9, %s586
        %p588 = pneg %p290
        %p589 = pneg %p287
        %p590 = scmp.lt.s32.totalorder %s33, 1
        %s591 = scalar_select %p590, %s33, 1
        %s592 = smul.addr %s591, 16
        %s593 = smul.addr %s592, 8
        %s594 = scalar_lea.vmem %s10, %s593
        %p595 = pneg %p316
        %p596 = pneg %p313
        %p597 = scmp.lt.s32.totalorder %s33, 1
        %s598 = scalar_select %p597, %s33, 1
        %s599 = scalar_lea.vmem %s11, %s598
        %p600 = pneg %p342
        %p601 = pneg %p339
        %p602 = scmp.lt.s32.totalorder %s33, 1
        %s603 = scalar_select %p602, %s33, 1
        %s604 = scalar_lea.vmem %s12, %s603
        %p605 = pneg %p368
        %p606 = pneg %p365
        %p607 = scmp.lt.s32.totalorder %s33, 1
        %s608 = scalar_select %p607, %s33, 1
        %s609 = scalar_lea.vmem %s13, %s608
        %p610 = pneg %p394
        %p611 = pneg %p391
        %p612 = pneg %p420
        %p613 = pneg %p417
        %s614 = sand.u32 %s407, 1
        %s615 = scalar_lea.sflag [#allocation4], %s614
        %s616 = sand.u32 %s407, 1
        %s617 = smul.addr %s616, 8
        %s618 = scalar_lea.vmem [#allocation3], %s617
        %p619 = scmp.lt.s32.totalorder %s32, 1
        %s620 = scalar_select %p619, %s32, 1
        %s621 = smul.addr %s620, 8
        %s622 = scalar_lea.vmem %s0, %s621
        %p623 = scmp.lt.s32.totalorder %s33, 1
        %s624 = scalar_select %p623, %s33, 1
        %s625 = smul.addr %s624, 4
        %s626 = smul.addr %s625, 8
        %s627 = scalar_lea.vmem %s2, %s626
        %p628 = scmp.lt.s32.totalorder %s33, 1
        %s629 = scalar_select %p628, %s33, 1
        %s630 = scalar_lea.vmem %s3, %s629
        %p631 = scmp.lt.s32.totalorder %s33, 1
        %s632 = scalar_select %p631, %s33, 1
        %s633 = smul.addr %s632, 4
        %s634 = smul.addr %s633, 8
        %s635 = scalar_lea.vmem %s4, %s634
        %p636 = scmp.lt.s32.totalorder %s33, 1
        %s637 = scalar_select %p636, %s33, 1
        %s638 = scalar_lea.vmem %s5, %s637
        %p639 = scmp.lt.s32.totalorder %s33, 1
        %s640 = scalar_select %p639, %s33, 1
        %s641 = scalar_lea.vmem %s6, %s640
        %p642 = scmp.lt.s32.totalorder %s33, 1
        %s643 = scalar_select %p642, %s33, 1
        %s644 = scalar_lea.vmem %s7, %s643
        %p645 = scmp.lt.s32.totalorder %s33, 1
        %s646 = scalar_select %p645, %s33, 1
        %s647 = smul.addr %s646, 4
        %s648 = smul.addr %s647, 8
        %s649 = scalar_lea.vmem %s8, %s648
        %p650 = scmp.lt.s32.totalorder %s33, 1
        %s651 = scalar_select %p650, %s33, 1
        %s652 = scalar_lea.vmem %s9, %s651
        %p653 = scmp.lt.s32.totalorder %s33, 1
        %s654 = scalar_select %p653, %s33, 1
        %s655 = smul.addr %s654, 16
        %s656 = smul.addr %s655, 8
        %s657 = scalar_lea.vmem %s10, %s656
        %p658 = scmp.lt.s32.totalorder %s33, 1
        %s659 = scalar_select %p658, %s33, 1
        %s660 = scalar_lea.vmem %s11, %s659
        %p661 = scmp.lt.s32.totalorder %s33, 1
        %s662 = scalar_select %p661, %s33, 1
        %s663 = scalar_lea.vmem %s12, %s662
        %p664 = scmp.lt.s32.totalorder %s33, 1
        %s665 = scalar_select %p664, %s33, 1
        %s666 = scalar_lea.vmem %s13, %s665
        %p667 = scmp.eq.s32.totalorder %s33, 0
        // Predicated region
        $region77: #{tpu_custom_call.1} parent=75 // pred_check
          %p668 = pneg %p667
        $region78: #{tpu_custom_call.1} parent=75 // pred_check_branch
          %670 = sbr.rel (%p668) target = $region80
        $region79: #{tpu_custom_call.1} parent=75 // pred_region
          %v671 = vld [vmem:[%s622] sm:$0xff]
          %vm672 = vcmask 261120
          %673 = vst.msk [vmem:[#allocation2] sm:$0xff] %vm672, %v671
        $region80: #{tpu_custom_call.1} parent=75 // pred_fallthru
          _
        %v674 = vld [vmem:[#allocation2] sm:$0xff]
        %v675 = vld [vmem:[%s627] sm:$0xff]
        %v676 = vld [vmem:[%s627 + $0x8] sm:$0xff]
        %v677 = vld [vmem:[%s627 + $0x10] sm:$0xff]
        %v678 = vld [vmem:[%s627 + $0x18] sm:$0xff]
        %v679 = vld [vmem:[%s630] sm:$0x1]
        %v681 = vperm.slane %v679, 0
        %vm683 = vcmask 261120
        %v685 = vsel %vm683, %v674, 0
        %687 = vmatpush.msra.mxu0 0.0
        %688 = vmatpush.msra.mxu0 0.0
        %689 = vmatpush.msra.mxu0 0.0
        %690 = vmatpush.msra.mxu0 0.0
        %691 = vmatpush.msra.mxu0 0.0
        %692 = vmatpush.msra.mxu0 0.0
        %693 = vmatpush.msra.mxu0 0.0
        %694 = vmatpush.msra.mxu0 0.0
        %695 = vmatpush.msra.mxu0 0.0
        %696 = vmatpush.msra.mxu0 0.0
        %697 = vmatpush.msra.mxu0 0.0
        %698 = vmatpush.msra.mxu0 0.0
        %v699 = vand.u32 %v678, 4294901760
        %700 = vmatpush.msra.mxu0 %v699
        %v701 = vand.u32 %v677, 4294901760
        %702 = vmatpush.msra.mxu0 %v701
        %v703 = vand.u32 %v676, 4294901760
        %704 = vmatpush.msra.mxu0 %v703
        %v705 = vand.u32 %v675, 4294901760
        %706 = vmatpush.msra.mxu0 %v705
        %v707 = vand.u32 %v685, 4294901760
        %v708 = vsub.f32 %v685, %v707
        %v709 = vand.u32 %v708, 4294901760
        %v710 = vsub.f32 %v708, %v709
        %v711 = vand.u32 %v710, 4294901760
        %712 = vmatmul.f32.gmra.mxu0 %v711
        %v713 = vpop.f32.mrf.mxu0
        %v714 = vadd.f32 %v681, %v713
        %715 = vdwg.mxu0
        %716 = vmatpush.msra.mxu0 0.0
        %717 = vmatpush.msra.mxu0 0.0
        %718 = vmatpush.msra.mxu0 0.0
        %719 = vmatpush.msra.mxu0 0.0
        %720 = vmatpush.msra.mxu0 0.0
        %721 = vmatpush.msra.mxu0 0.0
        %722 = vmatpush.msra.mxu0 0.0
        %723 = vmatpush.msra.mxu0 0.0
        %724 = vmatpush.msra.mxu0 0.0
        %725 = vmatpush.msra.mxu0 0.0
        %726 = vmatpush.msra.mxu0 0.0
        %727 = vmatpush.msra.mxu0 0.0
        %v728 = vand.u32 %v678, 4294901760
        %v729 = vsub.f32 %v678, %v728
        %v730 = vand.u32 %v729, 4294901760
        %v731 = vsub.f32 %v729, %v730
        %v732 = vand.u32 %v731, 4294901760
        %733 = vmatpush.msra.mxu0 %v732
        %v734 = vand.u32 %v677, 4294901760
        %v735 = vsub.f32 %v677, %v734
        %v736 = vand.u32 %v735, 4294901760
        %v737 = vsub.f32 %v735, %v736
        %v738 = vand.u32 %v737, 4294901760
        %739 = vmatpush.msra.mxu0 %v738
        %v740 = vand.u32 %v676, 4294901760
        %v741 = vsub.f32 %v676, %v740
        %v742 = vand.u32 %v741, 4294901760
        %v743 = vsub.f32 %v741, %v742
        %v744 = vand.u32 %v743, 4294901760
        %745 = vmatpush.msra.mxu0 %v744
        %v746 = vand.u32 %v675, 4294901760
        %v747 = vsub.f32 %v675, %v746
        %v748 = vand.u32 %v747, 4294901760
        %v749 = vsub.f32 %v747, %v748
        %v750 = vand.u32 %v749, 4294901760
        %751 = vmatpush.msra.mxu0 %v750
        %v752 = vand.u32 %v685, 4294901760
        %753 = vmatmul.f32.gmra.mxu0 %v752
        %v754 = vpop.f32.mrf.mxu0
        %v755 = vadd.f32 %v714, %v754
        %756 = vdwg.mxu0
        %757 = vmatpush.msra.mxu0 0.0
        %758 = vmatpush.msra.mxu0 0.0
        %759 = vmatpush.msra.mxu0 0.0
        %760 = vmatpush.msra.mxu0 0.0
        %761 = vmatpush.msra.mxu0 0.0
        %762 = vmatpush.msra.mxu0 0.0
        %763 = vmatpush.msra.mxu0 0.0
        %764 = vmatpush.msra.mxu0 0.0
        %765 = vmatpush.msra.mxu0 0.0
        %766 = vmatpush.msra.mxu0 0.0
        %767 = vmatpush.msra.mxu0 0.0
        %768 = vmatpush.msra.mxu0 0.0
        %v769 = vand.u32 %v678, 4294901760
        %v770 = vsub.f32 %v678, %v769
        %771 = vmatpush.msra.mxu0 %v770
        %v772 = vand.u32 %v677, 4294901760
        %v773 = vsub.f32 %v677, %v772
        %774 = vmatpush.msra.mxu0 %v773
        %v775 = vand.u32 %v676, 4294901760
        %v776 = vsub.f32 %v676, %v775
        %777 = vmatpush.msra.mxu0 %v776
        %v778 = vand.u32 %v675, 4294901760
        %v779 = vsub.f32 %v675, %v778
        %780 = vmatpush.msra.mxu0 %v779
        %v781 = vand.u32 %v685, 4294901760
        %v782 = vsub.f32 %v685, %v781
        %783 = vmatmul.f32.gmra.mxu0 %v782
        %v784 = vpop.f32.mrf.mxu0
        %v785 = vadd.f32 %v755, %v784
        %786 = vdwg.mxu0
        %787 = vmatpush.msra.mxu0 0.0
        %788 = vmatpush.msra.mxu0 0.0
        %789 = vmatpush.msra.mxu0 0.0
        %790 = vmatpush.msra.mxu0 0.0
        %791 = vmatpush.msra.mxu0 0.0
        %792 = vmatpush.msra.mxu0 0.0
        %793 = vmatpush.msra.mxu0 0.0
        %794 = vmatpush.msra.mxu0 0.0
        %795 = vmatpush.msra.mxu0 0.0
        %796 = vmatpush.msra.mxu0 0.0
        %797 = vmatpush.msra.mxu0 0.0
        %798 = vmatpush.msra.mxu0 0.0
        %v799 = vand.u32 %v678, 4294901760
        %800 = vmatpush.msra.mxu0 %v799
        %v801 = vand.u32 %v677, 4294901760
        %802 = vmatpush.msra.mxu0 %v801
        %v803 = vand.u32 %v676, 4294901760
        %804 = vmatpush.msra.mxu0 %v803
        %v805 = vand.u32 %v675, 4294901760
        %806 = vmatpush.msra.mxu0 %v805
        %v807 = vand.u32 %v685, 4294901760
        %v808 = vsub.f32 %v685, %v807
        %v809 = vand.u32 %v808, 4294901760
        %810 = vmatmul.f32.gmra.mxu0 %v809
        %v811 = vpop.f32.mrf.mxu0
        %v812 = vadd.f32 %v785, %v811
        %813 = vdwg.mxu0
        %814 = vmatpush.msra.mxu0 0.0
        %815 = vmatpush.msra.mxu0 0.0
        %816 = vmatpush.msra.mxu0 0.0
        %817 = vmatpush.msra.mxu0 0.0
        %818 = vmatpush.msra.mxu0 0.0
        %819 = vmatpush.msra.mxu0 0.0
        %820 = vmatpush.msra.mxu0 0.0
        %821 = vmatpush.msra.mxu0 0.0
        %822 = vmatpush.msra.mxu0 0.0
        %823 = vmatpush.msra.mxu0 0.0
        %824 = vmatpush.msra.mxu0 0.0
        %825 = vmatpush.msra.mxu0 0.0
        %v826 = vand.u32 %v678, 4294901760
        %v827 = vsub.f32 %v678, %v826
        %v828 = vand.u32 %v827, 4294901760
        %829 = vmatpush.msra.mxu0 %v828
        %v830 = vand.u32 %v677, 4294901760
        %v831 = vsub.f32 %v677, %v830
        %v832 = vand.u32 %v831, 4294901760
        %833 = vmatpush.msra.mxu0 %v832
        %v834 = vand.u32 %v676, 4294901760
        %v835 = vsub.f32 %v676, %v834
        %v836 = vand.u32 %v835, 4294901760
        %837 = vmatpush.msra.mxu0 %v836
        %v838 = vand.u32 %v675, 4294901760
        %v839 = vsub.f32 %v675, %v838
        %v840 = vand.u32 %v839, 4294901760
        %841 = vmatpush.msra.mxu0 %v840
        %v842 = vand.u32 %v685, 4294901760
        %843 = vmatmul.f32.gmra.mxu0 %v842
        %v844 = vpop.f32.mrf.mxu0
        %v845 = vadd.f32 %v812, %v844
        %846 = vdwg.mxu0
        %847 = vmatpush.msra.mxu0 0.0
        %848 = vmatpush.msra.mxu0 0.0
        %849 = vmatpush.msra.mxu0 0.0
        %850 = vmatpush.msra.mxu0 0.0
        %851 = vmatpush.msra.mxu0 0.0
        %852 = vmatpush.msra.mxu0 0.0
        %853 = vmatpush.msra.mxu0 0.0
        %854 = vmatpush.msra.mxu0 0.0
        %855 = vmatpush.msra.mxu0 0.0
        %856 = vmatpush.msra.mxu0 0.0
        %857 = vmatpush.msra.mxu0 0.0
        %858 = vmatpush.msra.mxu0 0.0
        %v859 = vand.u32 %v678, 4294901760
        %860 = vmatpush.msra.mxu0 %v859
        %v861 = vand.u32 %v677, 4294901760
        %862 = vmatpush.msra.mxu0 %v861
        %v863 = vand.u32 %v676, 4294901760
        %864 = vmatpush.msra.mxu0 %v863
        %v865 = vand.u32 %v675, 4294901760
        %866 = vmatpush.msra.mxu0 %v865
        %v867 = vand.u32 %v685, 4294901760
        %868 = vmatmul.f32.gmra.mxu0 %v867
        %v869 = vpop.f32.mrf.mxu0
        %v870 = vadd.f32 %v845, %v869
        %871 = vdwg.mxu0
        %872 = vxpose.xlu0.b32.start [1/16] %v870, 128
        %873 = vxpose.xlu0.b32.cont [2/16] 0.0, 128
        %874 = vxpose.xlu0.b32.cont [3/16] 0.0, 128
        %875 = vxpose.xlu0.b32.cont [4/16] 0.0, 128
        %876 = vxpose.xlu0.b32.cont [5/16] 0.0, 128
        %877 = vxpose.xlu0.b32.cont [6/16] 0.0, 128
        %878 = vxpose.xlu0.b32.cont [7/16] 0.0, 128
        %879 = vxpose.xlu0.b32.cont [8/16] 0.0, 128
        %880 = vxpose.xlu0.b32.cont [9/16] 0.0, 128
        %881 = vxpose.xlu0.b32.cont [10/16] 0.0, 128
        %882 = vxpose.xlu0.b32.cont [11/16] 0.0, 128
        %883 = vxpose.xlu0.b32.cont [12/16] 0.0, 128
        %884 = vxpose.xlu0.b32.cont [13/16] 0.0, 128
        %885 = vxpose.xlu0.b32.cont [14/16] 0.0, 128
        %886 = vxpose.xlu0.b32.cont [15/16] 0.0, 128
        %887 = vxpose.xlu0.b32.end [16/16] 0.0, 128
        %v888 = vpop.trf.xlu0
        %v889 = vpop.trf.xlu0
        %v890 = vpop.trf.xlu0
        %v891 = vpop.trf.xlu0
        %v892 = vpop.trf.xlu0
        %v893 = vpop.trf.xlu0
        %v894 = vpop.trf.xlu0
        %v895 = vpop.trf.xlu0
        %v896 = vpop.trf.xlu0
        %v897 = vpop.trf.xlu0
        %v898 = vpop.trf.xlu0
        %v899 = vpop.trf.xlu0
        %v900 = vpop.trf.xlu0
        %v901 = vpop.trf.xlu0
        %v902 = vpop.trf.xlu0
        %v903 = vpop.trf.xlu0
        %904 = vxpose.xlu0.b32.start [1/16] %v888, 128
        %905 = vxpose.xlu0.b32.cont [2/16] 0.0, 128
        %906 = vxpose.xlu0.b32.cont [3/16] 0.0, 128
        %907 = vxpose.xlu0.b32.cont [4/16] 0.0, 128
        %908 = vxpose.xlu0.b32.cont [5/16] 0.0, 128
        %909 = vxpose.xlu0.b32.cont [6/16] 0.0, 128
        %910 = vxpose.xlu0.b32.cont [7/16] 0.0, 128
        %911 = vxpose.xlu0.b32.cont [8/16] 0.0, 128
        %912 = vxpose.xlu0.b32.cont [9/16] 0.0, 128
        %913 = vxpose.xlu0.b32.cont [10/16] 0.0, 128
        %914 = vxpose.xlu0.b32.cont [11/16] 0.0, 128
        %915 = vxpose.xlu0.b32.cont [12/16] 0.0, 128
        %916 = vxpose.xlu0.b32.cont [13/16] 0.0, 128
        %917 = vxpose.xlu0.b32.cont [14/16] 0.0, 128
        %918 = vxpose.xlu0.b32.cont [15/16] 0.0, 128
        %919 = vxpose.xlu0.b32.end [16/16] 0.0, 128
        %v920 = vpop.trf.xlu0
        %v921 = vpop.trf.xlu0
        %v922 = vpop.trf.xlu0
        %v923 = vpop.trf.xlu0
        %v924 = vpop.trf.xlu0
        %v925 = vpop.trf.xlu0
        %v926 = vpop.trf.xlu0
        %v927 = vpop.trf.xlu0
        %v928 = vpop.trf.xlu0
        %v929 = vpop.trf.xlu0
        %v930 = vpop.trf.xlu0
        %v931 = vpop.trf.xlu0
        %v932 = vpop.trf.xlu0
        %v933 = vpop.trf.xlu0
        %v934 = vpop.trf.xlu0
        %v935 = vpop.trf.xlu0
        %936 = vxpose.xlu0.b32.start [1/16] %v889, 128
        %937 = vxpose.xlu0.b32.cont [2/16] 0.0, 128
        %938 = vxpose.xlu0.b32.cont [3/16] 0.0, 128
        %939 = vxpose.xlu0.b32.cont [4/16] 0.0, 128
        %940 = vxpose.xlu0.b32.cont [5/16] 0.0, 128
        %941 = vxpose.xlu0.b32.cont [6/16] 0.0, 128
        %942 = vxpose.xlu0.b32.cont [7/16] 0.0, 128
        %943 = vxpose.xlu0.b32.cont [8/16] 0.0, 128
        %944 = vxpose.xlu0.b32.cont [9/16] 0.0, 128
        %945 = vxpose.xlu0.b32.cont [10/16] 0.0, 128
        %946 = vxpose.xlu0.b32.cont [11/16] 0.0, 128
        %947 = vxpose.xlu0.b32.cont [12/16] 0.0, 128
        %948 = vxpose.xlu0.b32.cont [13/16] 0.0, 128
        %949 = vxpose.xlu0.b32.cont [14/16] 0.0, 128
        %950 = vxpose.xlu0.b32.cont [15/16] 0.0, 128
        %951 = vxpose.xlu0.b32.end [16/16] 0.0, 128
        %v952 = vpop.trf.xlu0
        %v953 = vpop.trf.xlu0
        %v954 = vpop.trf.xlu0
        %v955 = vpop.trf.xlu0
        %v956 = vpop.trf.xlu0
        %v957 = vpop.trf.xlu0
        %v958 = vpop.trf.xlu0
        %v959 = vpop.trf.xlu0
        %v960 = vpop.trf.xlu0
        %v961 = vpop.trf.xlu0
        %v962 = vpop.trf.xlu0
        %v963 = vpop.trf.xlu0
        %v964 = vpop.trf.xlu0
        %v965 = vpop.trf.xlu0
        %v966 = vpop.trf.xlu0
        %v967 = vpop.trf.xlu0
        %968 = vxpose.xlu0.b32.start [1/16] %v890, 128
        %969 = vxpose.xlu0.b32.cont [2/16] 0.0, 128
        %970 = vxpose.xlu0.b32.cont [3/16] 0.0, 128
        %971 = vxpose.xlu0.b32.cont [4/16] 0.0, 128
        %972 = vxpose.xlu0.b32.cont [5/16] 0.0, 128
        %973 = vxpose.xlu0.b32.cont [6/16] 0.0, 128
        %974 = vxpose.xlu0.b32.cont [7/16] 0.0, 128
        %975 = vxpose.xlu0.b32.cont [8/16] 0.0, 128
        %976 = vxpose.xlu0.b32.cont [9/16] 0.0, 128
        %977 = vxpose.xlu0.b32.cont [10/16] 0.0, 128
        %978 = vxpose.xlu0.b32.cont [11/16] 0.0, 128
        %979 = vxpose.xlu0.b32.cont [12/16] 0.0, 128
        %980 = vxpose.xlu0.b32.cont [13/16] 0.0, 128
        %981 = vxpose.xlu0.b32.cont [14/16] 0.0, 128
        %982 = vxpose.xlu0.b32.cont [15/16] 0.0, 128
        %983 = vxpose.xlu0.b32.end [16/16] 0.0, 128
        %v984 = vpop.trf.xlu0
        %v985 = vpop.trf.xlu0
        %v986 = vpop.trf.xlu0
        %v987 = vpop.trf.xlu0
        %v988 = vpop.trf.xlu0
        %v989 = vpop.trf.xlu0
        %v990 = vpop.trf.xlu0
        %v991 = vpop.trf.xlu0
        %v992 = vpop.trf.xlu0
        %v993 = vpop.trf.xlu0
        %v994 = vpop.trf.xlu0
        %v995 = vpop.trf.xlu0
        %v996 = vpop.trf.xlu0
        %v997 = vpop.trf.xlu0
        %v998 = vpop.trf.xlu0
        %v999 = vpop.trf.xlu0
        %1000 = vxpose.xlu0.b32.start [1/16] %v891, 128
        %1001 = vxpose.xlu0.b32.cont [2/16] 0.0, 128
        %1002 = vxpose.xlu0.b32.cont [3/16] 0.0, 128
        %1003 = vxpose.xlu0.b32.cont [4/16] 0.0, 128
        %1004 = vxpose.xlu0.b32.cont [5/16] 0.0, 128
        %1005 = vxpose.xlu0.b32.cont [6/16] 0.0, 128
        %1006 = vxpose.xlu0.b32.cont [7/16] 0.0, 128
        %1007 = vxpose.xlu0.b32.cont [8/16] 0.0, 128
        %1008 = vxpose.xlu0.b32.cont [9/16] 0.0, 128
        %1009 = vxpose.xlu0.b32.cont [10/16] 0.0, 128
        %1010 = vxpose.xlu0.b32.cont [11/16] 0.0, 128
        %1011 = vxpose.xlu0.b32.cont [12/16] 0.0, 128
        %1012 = vxpose.xlu0.b32.cont [13/16] 0.0, 128
        %1013 = vxpose.xlu0.b32.cont [14/16] 0.0, 128
        %1014 = vxpose.xlu0.b32.cont [15/16] 0.0, 128
        %1015 = vxpose.xlu0.b32.end [16/16] 0.0, 128
        %v1016 = vpop.trf.xlu0
        %v1017 = vpop.trf.xlu0
        %v1018 = vpop.trf.xlu0
        %v1019 = vpop.trf.xlu0
        %v1020 = vpop.trf.xlu0
        %v1021 = vpop.trf.xlu0
        %v1022 = vpop.trf.xlu0
        %v1023 = vpop.trf.xlu0
        %v1024 = vpop.trf.xlu0
        %v1025 = vpop.trf.xlu0
        %v1026 = vpop.trf.xlu0
        %v1027 = vpop.trf.xlu0
        %v1028 = vpop.trf.xlu0
        %v1029 = vpop.trf.xlu0
        %v1030 = vpop.trf.xlu0
        %v1031 = vpop.trf.xlu0
        %vm1032 = vcmask 64512
        %v1034 = vsel %vm1032, %v920, 0
        %1036 = vmatpush.msra.mxu0 0.0
        %1037 = vmatpush.msra.mxu0 0.0
        %1038 = vmatpush.msra.mxu0 0.0
        %1039 = vmatpush.msra.mxu0 0.0
        %1040 = vmatpush.msra.mxu0 0.0
        %1041 = vmatpush.msra.mxu0 0.0
        %1042 = vmatpush.msra.mxu0 0.0
        %1043 = vmatpush.msra.mxu0 0.0
        %1044 = vmatpush.msra.mxu0 0.0
        %1045 = vmatpush.msra.mxu0 0.0
        %1046 = vmatpush.msra.mxu0 0.0
        %1047 = vmatpush.msra.mxu0 0.0
        %1048 = vmatpush.msra.mxu0 0.0
        %1049 = vmatpush.msra.mxu0 0.0
        %1050 = vmatpush.msra.mxu0 0.0
        %v1051 = vand.u32 %v892, 4294901760
        %1052 = vmatpush.msra.mxu0 %v1051
        %v1053 = vand.u32 %v1034, 4294901760
        %v1054 = vsub.f32 %v1034, %v1053
        %v1055 = vand.u32 %v1054, 4294901760
        %v1056 = vsub.f32 %v1054, %v1055
        %v1057 = vand.u32 %v1056, 4294901760
        %1058 = vmatmul.f32.gmra.mxu0 %v1057
        %v1059 = vpop.f32.mrf.mxu0
        %v1060 = vadd.f32 0.0, %v1059
        %1061 = vdwg.mxu0
        %1062 = vmatpush.msra.mxu0 0.0
        %1063 = vmatpush.msra.mxu0 0.0
        %1064 = vmatpush.msra.mxu0 0.0
        %1065 = vmatpush.msra.mxu0 0.0
        %1066 = vmatpush.msra.mxu0 0.0
        %1067 = vmatpush.msra.mxu0 0.0
        %1068 = vmatpush.msra.mxu0 0.0
        %1069 = vmatpush.msra.mxu0 0.0
        %1070 = vmatpush.msra.mxu0 0.0
        %1071 = vmatpush.msra.mxu0 0.0
        %1072 = vmatpush.msra.mxu0 0.0
        %1073 = vmatpush.msra.mxu0 0.0
        %1074 = vmatpush.msra.mxu0 0.0
        %1075 = vmatpush.msra.mxu0 0.0
        %1076 = vmatpush.msra.mxu0 0.0
        %v1077 = vand.u32 %v892, 4294901760
        %v1078 = vsub.f32 %v892, %v1077
        %v1079 = vand.u32 %v1078, 4294901760
        %v1080 = vsub.f32 %v1078, %v1079
        %v1081 = vand.u32 %v1080, 4294901760
        %1082 = vmatpush.msra.mxu0 %v1081
        %v1083 = vand.u32 %v1034, 4294901760
        %1084 = vmatmul.f32.gmra.mxu0 %v1083
        %v1085 = vpop.f32.mrf.mxu0
        %v1086 = vadd.f32 %v1060, %v1085
        %1087 = vdwg.mxu0
        %1088 = vmatpush.msra.mxu0 0.0
        %1089 = vmatpush.msra.mxu0 0.0
        %1090 = vmatpush.msra.mxu0 0.0
        %1091 = vmatpush.msra.mxu0 0.0
        %1092 = vmatpush.msra.mxu0 0.0
        %1093 = vmatpush.msra.mxu0 0.0
        %1094 = vmatpush.msra.mxu0 0.0
        %1095 = vmatpush.msra.mxu0 0.0
        %1096 = vmatpush.msra.mxu0 0.0
        %1097 = vmatpush.msra.mxu0 0.0
        %1098 = vmatpush.msra.mxu0 0.0
        %1099 = vmatpush.msra.mxu0 0.0
        %1100 = vmatpush.msra.mxu0 0.0
        %1101 = vmatpush.msra.mxu0 0.0
        %1102 = vmatpush.msra.mxu0 0.0
        %v1103 = vand.u32 %v892, 4294901760
        %v1104 = vsub.f32 %v892, %v1103
        %1105 = vmatpush.msra.mxu0 %v1104
        %v1106 = vand.u32 %v1034, 4294901760
        %v1107 = vsub.f32 %v1034, %v1106
        %1108 = vmatmul.f32.gmra.mxu0 %v1107
        %v1109 = vpop.f32.mrf.mxu0
        %v1110 = vadd.f32 %v1086, %v1109
        %1111 = vdwg.mxu0
        %1112 = vmatpush.msra.mxu0 0.0
        %1113 = vmatpush.msra.mxu0 0.0
        %1114 = vmatpush.msra.mxu0 0.0
        %1115 = vmatpush.msra.mxu0 0.0
        %1116 = vmatpush.msra.mxu0 0.0
        %1117 = vmatpush.msra.mxu0 0.0
        %1118 = vmatpush.msra.mxu0 0.0
        %1119 = vmatpush.msra.mxu0 0.0
        %1120 = vmatpush.msra.mxu0 0.0
        %1121 = vmatpush.msra.mxu0 0.0
        %1122 = vmatpush.msra.mxu0 0.0
        %1123 = vmatpush.msra.mxu0 0.0
        %1124 = vmatpush.msra.mxu0 0.0
        %1125 = vmatpush.msra.mxu0 0.0
        %1126 = vmatpush.msra.mxu0 0.0
        %v1127 = vand.u32 %v892, 4294901760
        %1128 = vmatpush.msra.mxu0 %v1127
        %v1129 = vand.u32 %v1034, 4294901760
        %v1130 = vsub.f32 %v1034, %v1129
        %v1131 = vand.u32 %v1130, 4294901760
        %1132 = vmatmul.f32.gmra.mxu0 %v1131
        %v1133 = vpop.f32.mrf.mxu0
        %v1134 = vadd.f32 %v1110, %v1133
        %1135 = vdwg.mxu0
        %1136 = vmatpush.msra.mxu0 0.0
        %1137 = vmatpush.msra.mxu0 0.0
        %1138 = vmatpush.msra.mxu0 0.0
        %1139 = vmatpush.msra.mxu0 0.0
        %1140 = vmatpush.msra.mxu0 0.0
        %1141 = vmatpush.msra.mxu0 0.0
        %1142 = vmatpush.msra.mxu0 0.0
        %1143 = vmatpush.msra.mxu0 0.0
        %1144 = vmatpush.msra.mxu0 0.0
        %1145 = vmatpush.msra.mxu0 0.0
        %1146 = vmatpush.msra.mxu0 0.0
        %1147 = vmatpush.msra.mxu0 0.0
        %1148 = vmatpush.msra.mxu0 0.0
        %1149 = vmatpush.msra.mxu0 0.0
        %1150 = vmatpush.msra.mxu0 0.0
        %v1151 = vand.u32 %v892, 4294901760
        %v1152 = vsub.f32 %v892, %v1151
        %v1153 = vand.u32 %v1152, 4294901760
        %1154 = vmatpush.msra.mxu0 %v1153
        %v1155 = vand.u32 %v1034, 4294901760
        %1156 = vmatmul.f32.gmra.mxu0 %v1155
        %v1157 = vpop.f32.mrf.mxu0
        %v1158 = vadd.f32 %v1134, %v1157
        %1159 = vdwg.mxu0
        %1160 = vmatpush.msra.mxu0 0.0
        %1161 = vmatpush.msra.mxu0 0.0
        %1162 = vmatpush.msra.mxu0 0.0
        %1163 = vmatpush.msra.mxu0 0.0
        %1164 = vmatpush.msra.mxu0 0.0
        %1165 = vmatpush.msra.mxu0 0.0
        %1166 = vmatpush.msra.mxu0 0.0
        %1167 = vmatpush.msra.mxu0 0.0
        %1168 = vmatpush.msra.mxu0 0.0
        %1169 = vmatpush.msra.mxu0 0.0
        %1170 = vmatpush.msra.mxu0 0.0
        %1171 = vmatpush.msra.mxu0 0.0
        %1172 = vmatpush.msra.mxu0 0.0
        %1173 = vmatpush.msra.mxu0 0.0
        %1174 = vmatpush.msra.mxu0 0.0
        %v1175 = vand.u32 %v892, 4294901760
        %1176 = vmatpush.msra.mxu0 %v1175
        %v1177 = vand.u32 %v1034, 4294901760
        %1178 = vmatmul.f32.gmra.mxu0 %v1177
        %v1179 = vpop.f32.mrf.mxu0
        %v1180 = vadd.f32 %v1158, %v1179
        %1181 = vdwg.mxu0
        %v1183 = vsel %vm1032, %v952, 0
        %1185 = vmatpush.msra.mxu0 0.0
        %1186 = vmatpush.msra.mxu0 0.0
        %1187 = vmatpush.msra.mxu0 0.0
        %1188 = vmatpush.msra.mxu0 0.0
        %1189 = vmatpush.msra.mxu0 0.0
        %1190 = vmatpush.msra.mxu0 0.0
        %1191 = vmatpush.msra.mxu0 0.0
        %1192 = vmatpush.msra.mxu0 0.0
        %1193 = vmatpush.msra.mxu0 0.0
        %1194 = vmatpush.msra.mxu0 0.0
        %1195 = vmatpush.msra.mxu0 0.0
        %1196 = vmatpush.msra.mxu0 0.0
        %1197 = vmatpush.msra.mxu0 0.0
        %1198 = vmatpush.msra.mxu0 0.0
        %1199 = vmatpush.msra.mxu0 0.0
        %v1200 = vand.u32 %v893, 4294901760
        %1201 = vmatpush.msra.mxu0 %v1200
        %v1202 = vand.u32 %v1183, 4294901760
        %v1203 = vsub.f32 %v1183, %v1202
        %v1204 = vand.u32 %v1203, 4294901760
        %v1205 = vsub.f32 %v1203, %v1204
        %v1206 = vand.u32 %v1205, 4294901760
        %1207 = vmatmul.f32.gmra.mxu0 %v1206
        %v1208 = vpop.f32.mrf.mxu0
        %v1209 = vadd.f32 0.0, %v1208
        %1210 = vdwg.mxu0
        %1211 = vmatpush.msra.mxu0 0.0
        %1212 = vmatpush.msra.mxu0 0.0
        %1213 = vmatpush.msra.mxu0 0.0
        %1214 = vmatpush.msra.mxu0 0.0
        %1215 = vmatpush.msra.mxu0 0.0
        %1216 = vmatpush.msra.mxu0 0.0
        %1217 = vmatpush.msra.mxu0 0.0
        %1218 = vmatpush.msra.mxu0 0.0
        %1219 = vmatpush.msra.mxu0 0.0
        %1220 = vmatpush.msra.mxu0 0.0
        %1221 = vmatpush.msra.mxu0 0.0
        %1222 = vmatpush.msra.mxu0 0.0
        %1223 = vmatpush.msra.mxu0 0.0
        %1224 = vmatpush.msra.mxu0 0.0
        %1225 = vmatpush.msra.mxu0 0.0
        %v1226 = vand.u32 %v893, 4294901760
        %v1227 = vsub.f32 %v893, %v1226
        %v1228 = vand.u32 %v1227, 4294901760
        %v1229 = vsub.f32 %v1227, %v1228
        %v1230 = vand.u32 %v1229, 4294901760
        %1231 = vmatpush.msra.mxu0 %v1230
        %v1232 = vand.u32 %v1183, 4294901760
        %1233 = vmatmul.f32.gmra.mxu0 %v1232
        %v1234 = vpop.f32.mrf.mxu0
        %v1235 = vadd.f32 %v1209, %v1234
        %1236 = vdwg.mxu0
        %1237 = vmatpush.msra.mxu0 0.0
        %1238 = vmatpush.msra.mxu0 0.0
        %1239 = vmatpush.msra.mxu0 0.0
        %1240 = vmatpush.msra.mxu0 0.0
        %1241 = vmatpush.msra.mxu0 0.0
        %1242 = vmatpush.msra.mxu0 0.0
        %1243 = vmatpush.msra.mxu0 0.0
        %1244 = vmatpush.msra.mxu0 0.0
        %1245 = vmatpush.msra.mxu0 0.0
        %1246 = vmatpush.msra.mxu0 0.0
        %1247 = vmatpush.msra.mxu0 0.0
        %1248 = vmatpush.msra.mxu0 0.0
        %1249 = vmatpush.msra.mxu0 0.0
        %1250 = vmatpush.msra.mxu0 0.0
        %1251 = vmatpush.msra.mxu0 0.0
        %v1252 = vand.u32 %v893, 4294901760
        %v1253 = vsub.f32 %v893, %v1252
        %1254 = vmatpush.msra.mxu0 %v1253
        %v1255 = vand.u32 %v1183, 4294901760
        %v1256 = vsub.f32 %v1183, %v1255
        %1257 = vmatmul.f32.gmra.mxu0 %v1256
        %v1258 = vpop.f32.mrf.mxu0
        %v1259 = vadd.f32 %v1235, %v1258
        %1260 = vdwg.mxu0
        %1261 = vmatpush.msra.mxu0 0.0
        %1262 = vmatpush.msra.mxu0 0.0
        %1263 = vmatpush.msra.mxu0 0.0
        %1264 = vmatpush.msra.mxu0 0.0
        %1265 = vmatpush.msra.mxu0 0.0
        %1266 = vmatpush.msra.mxu0 0.0
        %1267 = vmatpush.msra.mxu0 0.0
        %1268 = vmatpush.msra.mxu0 0.0
        %1269 = vmatpush.msra.mxu0 0.0
        %1270 = vmatpush.msra.mxu0 0.0
        %1271 = vmatpush.msra.mxu0 0.0
        %1272 = vmatpush.msra.mxu0 0.0
        %1273 = vmatpush.msra.mxu0 0.0
        %1274 = vmatpush.msra.mxu0 0.0
        %1275 = vmatpush.msra.mxu0 0.0
        %v1276 = vand.u32 %v893, 4294901760
        %1277 = vmatpush.msra.mxu0 %v1276
        %v1278 = vand.u32 %v1183, 4294901760
        %v1279 = vsub.f32 %v1183, %v1278
        %v1280 = vand.u32 %v1279, 4294901760
        %1281 = vmatmul.f32.gmra.mxu0 %v1280
        %v1282 = vpop.f32.mrf.mxu0
        %v1283 = vadd.f32 %v1259, %v1282
        %1284 = vdwg.mxu0
        %1285 = vmatpush.msra.mxu0 0.0
        %1286 = vmatpush.msra.mxu0 0.0
        %1287 = vmatpush.msra.mxu0 0.0
        %1288 = vmatpush.msra.mxu0 0.0
        %1289 = vmatpush.msra.mxu0 0.0
        %1290 = vmatpush.msra.mxu0 0.0
        %1291 = vmatpush.msra.mxu0 0.0
        %1292 = vmatpush.msra.mxu0 0.0
        %1293 = vmatpush.msra.mxu0 0.0
        %1294 = vmatpush.msra.mxu0 0.0
        %1295 = vmatpush.msra.mxu0 0.0
        %1296 = vmatpush.msra.mxu0 0.0
        %1297 = vmatpush.msra.mxu0 0.0
        %1298 = vmatpush.msra.mxu0 0.0
        %1299 = vmatpush.msra.mxu0 0.0
        %v1300 = vand.u32 %v893, 4294901760
        %v1301 = vsub.f32 %v893, %v1300
        %v1302 = vand.u32 %v1301, 4294901760
        %1303 = vmatpush.msra.mxu0 %v1302
        %v1304 = vand.u32 %v1183, 4294901760
        %1305 = vmatmul.f32.gmra.mxu0 %v1304
        %v1306 = vpop.f32.mrf.mxu0
        %v1307 = vadd.f32 %v1283, %v1306
        %1308 = vdwg.mxu0
        %1309 = vmatpush.msra.mxu0 0.0
        %1310 = vmatpush.msra.mxu0 0.0
        %1311 = vmatpush.msra.mxu0 0.0
        %1312 = vmatpush.msra.mxu0 0.0
        %1313 = vmatpush.msra.mxu0 0.0
        %1314 = vmatpush.msra.mxu0 0.0
        %1315 = vmatpush.msra.mxu0 0.0
        %1316 = vmatpush.msra.mxu0 0.0
        %1317 = vmatpush.msra.mxu0 0.0
        %1318 = vmatpush.msra.mxu0 0.0
        %1319 = vmatpush.msra.mxu0 0.0
        %1320 = vmatpush.msra.mxu0 0.0
        %1321 = vmatpush.msra.mxu0 0.0
        %1322 = vmatpush.msra.mxu0 0.0
        %1323 = vmatpush.msra.mxu0 0.0
        %v1324 = vand.u32 %v893, 4294901760
        %1325 = vmatpush.msra.mxu0 %v1324
        %v1326 = vand.u32 %v1183, 4294901760
        %1327 = vmatmul.f32.gmra.mxu0 %v1326
        %v1328 = vpop.f32.mrf.mxu0
        %v1329 = vadd.f32 %v1307, %v1328
        %1330 = vdwg.mxu0
        %v1332 = vsel %vm1032, %v984, 0
        %1334 = vmatpush.msra.mxu0 0.0
        %1335 = vmatpush.msra.mxu0 0.0
        %1336 = vmatpush.msra.mxu0 0.0
        %1337 = vmatpush.msra.mxu0 0.0
        %1338 = vmatpush.msra.mxu0 0.0
        %1339 = vmatpush.msra.mxu0 0.0
        %1340 = vmatpush.msra.mxu0 0.0
        %1341 = vmatpush.msra.mxu0 0.0
        %1342 = vmatpush.msra.mxu0 0.0
        %1343 = vmatpush.msra.mxu0 0.0
        %1344 = vmatpush.msra.mxu0 0.0
        %1345 = vmatpush.msra.mxu0 0.0
        %1346 = vmatpush.msra.mxu0 0.0
        %1347 = vmatpush.msra.mxu0 0.0
        %1348 = vmatpush.msra.mxu0 0.0
        %v1349 = vand.u32 %v894, 4294901760
        %1350 = vmatpush.msra.mxu0 %v1349
        %v1351 = vand.u32 %v1332, 4294901760
        %v1352 = vsub.f32 %v1332, %v1351
        %v1353 = vand.u32 %v1352, 4294901760
        %v1354 = vsub.f32 %v1352, %v1353
        %v1355 = vand.u32 %v1354, 4294901760
        %1356 = vmatmul.f32.gmra.mxu0 %v1355
        %v1357 = vpop.f32.mrf.mxu0
        %v1358 = vadd.f32 0.0, %v1357
        %1359 = vdwg.mxu0
        %1360 = vmatpush.msra.mxu0 0.0
        %1361 = vmatpush.msra.mxu0 0.0
        %1362 = vmatpush.msra.mxu0 0.0
        %1363 = vmatpush.msra.mxu0 0.0
        %1364 = vmatpush.msra.mxu0 0.0
        %1365 = vmatpush.msra.mxu0 0.0
        %1366 = vmatpush.msra.mxu0 0.0
        %1367 = vmatpush.msra.mxu0 0.0
        %1368 = vmatpush.msra.mxu0 0.0
        %1369 = vmatpush.msra.mxu0 0.0
        %1370 = vmatpush.msra.mxu0 0.0
        %1371 = vmatpush.msra.mxu0 0.0
        %1372 = vmatpush.msra.mxu0 0.0
        %1373 = vmatpush.msra.mxu0 0.0
        %1374 = vmatpush.msra.mxu0 0.0
        %v1375 = vand.u32 %v894, 4294901760
        %v1376 = vsub.f32 %v894, %v1375
        %v1377 = vand.u32 %v1376, 4294901760
        %v1378 = vsub.f32 %v1376, %v1377
        %v1379 = vand.u32 %v1378, 4294901760
        %1380 = vmatpush.msra.mxu0 %v1379
        %v1381 = vand.u32 %v1332, 4294901760
        %1382 = vmatmul.f32.gmra.mxu0 %v1381
        %v1383 = vpop.f32.mrf.mxu0
        %v1384 = vadd.f32 %v1358, %v1383
        %1385 = vdwg.mxu0
        %1386 = vmatpush.msra.mxu0 0.0
        %1387 = vmatpush.msra.mxu0 0.0
        %1388 = vmatpush.msra.mxu0 0.0
        %1389 = vmatpush.msra.mxu0 0.0
        %1390 = vmatpush.msra.mxu0 0.0
        %1391 = vmatpush.msra.mxu0 0.0
        %1392 = vmatpush.msra.mxu0 0.0
        %1393 = vmatpush.msra.mxu0 0.0
        %1394 = vmatpush.msra.mxu0 0.0
        %1395 = vmatpush.msra.mxu0 0.0
        %1396 = vmatpush.msra.mxu0 0.0
        %1397 = vmatpush.msra.mxu0 0.0
        %1398 = vmatpush.msra.mxu0 0.0
        %1399 = vmatpush.msra.mxu0 0.0
        %1400 = vmatpush.msra.mxu0 0.0
        %v1401 = vand.u32 %v894, 4294901760
        %v1402 = vsub.f32 %v894, %v1401
        %1403 = vmatpush.msra.mxu0 %v1402
        %v1404 = vand.u32 %v1332, 4294901760
        %v1405 = vsub.f32 %v1332, %v1404
        %1406 = vmatmul.f32.gmra.mxu0 %v1405
        %v1407 = vpop.f32.mrf.mxu0
        %v1408 = vadd.f32 %v1384, %v1407
        %1409 = vdwg.mxu0
        %1410 = vmatpush.msra.mxu0 0.0
        %1411 = vmatpush.msra.mxu0 0.0
        %1412 = vmatpush.msra.mxu0 0.0
        %1413 = vmatpush.msra.mxu0 0.0
        %1414 = vmatpush.msra.mxu0 0.0
        %1415 = vmatpush.msra.mxu0 0.0
        %1416 = vmatpush.msra.mxu0 0.0
        %1417 = vmatpush.msra.mxu0 0.0
        %1418 = vmatpush.msra.mxu0 0.0
        %1419 = vmatpush.msra.mxu0 0.0
        %1420 = vmatpush.msra.mxu0 0.0
        %1421 = vmatpush.msra.mxu0 0.0
        %1422 = vmatpush.msra.mxu0 0.0
        %1423 = vmatpush.msra.mxu0 0.0
        %1424 = vmatpush.msra.mxu0 0.0
        %v1425 = vand.u32 %v894, 4294901760
        %1426 = vmatpush.msra.mxu0 %v1425
        %v1427 = vand.u32 %v1332, 4294901760
        %v1428 = vsub.f32 %v1332, %v1427
        %v1429 = vand.u32 %v1428, 4294901760
        %1430 = vmatmul.f32.gmra.mxu0 %v1429
        %v1431 = vpop.f32.mrf.mxu0
        %v1432 = vadd.f32 %v1408, %v1431
        %1433 = vdwg.mxu0
        %1434 = vmatpush.msra.mxu0 0.0
        %1435 = vmatpush.msra.mxu0 0.0
        %1436 = vmatpush.msra.mxu0 0.0
        %1437 = vmatpush.msra.mxu0 0.0
        %1438 = vmatpush.msra.mxu0 0.0
        %1439 = vmatpush.msra.mxu0 0.0
        %1440 = vmatpush.msra.mxu0 0.0
        %1441 = vmatpush.msra.mxu0 0.0
        %1442 = vmatpush.msra.mxu0 0.0
        %1443 = vmatpush.msra.mxu0 0.0
        %1444 = vmatpush.msra.mxu0 0.0
        %1445 = vmatpush.msra.mxu0 0.0
        %1446 = vmatpush.msra.mxu0 0.0
        %1447 = vmatpush.msra.mxu0 0.0
        %1448 = vmatpush.msra.mxu0 0.0
        %v1449 = vand.u32 %v894, 4294901760
        %v1450 = vsub.f32 %v894, %v1449
        %v1451 = vand.u32 %v1450, 4294901760
        %1452 = vmatpush.msra.mxu0 %v1451
        %v1453 = vand.u32 %v1332, 4294901760
        %1454 = vmatmul.f32.gmra.mxu0 %v1453
        %v1455 = vpop.f32.mrf.mxu0
        %v1456 = vadd.f32 %v1432, %v1455
        %1457 = vdwg.mxu0
        %1458 = vmatpush.msra.mxu0 0.0
        %1459 = vmatpush.msra.mxu0 0.0
        %1460 = vmatpush.msra.mxu0 0.0
        %1461 = vmatpush.msra.mxu0 0.0
        %1462 = vmatpush.msra.mxu0 0.0
        %1463 = vmatpush.msra.mxu0 0.0
        %1464 = vmatpush.msra.mxu0 0.0
        %1465 = vmatpush.msra.mxu0 0.0
        %1466 = vmatpush.msra.mxu0 0.0
        %1467 = vmatpush.msra.mxu0 0.0
        %1468 = vmatpush.msra.mxu0 0.0
        %1469 = vmatpush.msra.mxu0 0.0
        %1470 = vmatpush.msra.mxu0 0.0
        %1471 = vmatpush.msra.mxu0 0.0
        %1472 = vmatpush.msra.mxu0 0.0
        %v1473 = vand.u32 %v894, 4294901760
        %1474 = vmatpush.msra.mxu0 %v1473
        %v1475 = vand.u32 %v1332, 4294901760
        %1476 = vmatmul.f32.gmra.mxu0 %v1475
        %v1477 = vpop.f32.mrf.mxu0
        %v1478 = vadd.f32 %v1456, %v1477
        %1479 = vdwg.mxu0
        %v1481 = vsel %vm1032, %v1016, 0
        %1483 = vmatpush.msra.mxu0 0.0
        %1484 = vmatpush.msra.mxu0 0.0
        %1485 = vmatpush.msra.mxu0 0.0
        %1486 = vmatpush.msra.mxu0 0.0
        %1487 = vmatpush.msra.mxu0 0.0
        %1488 = vmatpush.msra.mxu0 0.0
        %1489 = vmatpush.msra.mxu0 0.0
        %1490 = vmatpush.msra.mxu0 0.0
        %1491 = vmatpush.msra.mxu0 0.0
        %1492 = vmatpush.msra.mxu0 0.0
        %1493 = vmatpush.msra.mxu0 0.0
        %1494 = vmatpush.msra.mxu0 0.0
        %1495 = vmatpush.msra.mxu0 0.0
        %1496 = vmatpush.msra.mxu0 0.0
        %1497 = vmatpush.msra.mxu0 0.0
        %v1498 = vand.u32 %v895, 4294901760
        %1499 = vmatpush.msra.mxu0 %v1498
        %v1500 = vand.u32 %v1481, 4294901760
        %v1501 = vsub.f32 %v1481, %v1500
        %v1502 = vand.u32 %v1501, 4294901760
        %v1503 = vsub.f32 %v1501, %v1502
        %v1504 = vand.u32 %v1503, 4294901760
        %1505 = vmatmul.f32.gmra.mxu0 %v1504
        %v1506 = vpop.f32.mrf.mxu0
        %v1507 = vadd.f32 0.0, %v1506
        %1508 = vdwg.mxu0
        %1509 = vmatpush.msra.mxu0 0.0
        %1510 = vmatpush.msra.mxu0 0.0
        %1511 = vmatpush.msra.mxu0 0.0
        %1512 = vmatpush.msra.mxu0 0.0
        %1513 = vmatpush.msra.mxu0 0.0
        %1514 = vmatpush.msra.mxu0 0.0
        %1515 = vmatpush.msra.mxu0 0.0
        %1516 = vmatpush.msra.mxu0 0.0
        %1517 = vmatpush.msra.mxu0 0.0
        %1518 = vmatpush.msra.mxu0 0.0
        %1519 = vmatpush.msra.mxu0 0.0
        %1520 = vmatpush.msra.mxu0 0.0
        %1521 = vmatpush.msra.mxu0 0.0
        %1522 = vmatpush.msra.mxu0 0.0
        %1523 = vmatpush.msra.mxu0 0.0
        %v1524 = vand.u32 %v895, 4294901760
        %v1525 = vsub.f32 %v895, %v1524
        %v1526 = vand.u32 %v1525, 4294901760
        %v1527 = vsub.f32 %v1525, %v1526
        %v1528 = vand.u32 %v1527, 4294901760
        %1529 = vmatpush.msra.mxu0 %v1528
        %v1530 = vand.u32 %v1481, 4294901760
        %1531 = vmatmul.f32.gmra.mxu0 %v1530
        %v1532 = vpop.f32.mrf.mxu0
        %v1533 = vadd.f32 %v1507, %v1532
        %1534 = vdwg.mxu0
        %1535 = vmatpush.msra.mxu0 0.0
        %1536 = vmatpush.msra.mxu0 0.0
        %1537 = vmatpush.msra.mxu0 0.0
        %1538 = vmatpush.msra.mxu0 0.0
        %1539 = vmatpush.msra.mxu0 0.0
        %1540 = vmatpush.msra.mxu0 0.0
        %1541 = vmatpush.msra.mxu0 0.0
        %1542 = vmatpush.msra.mxu0 0.0
        %1543 = vmatpush.msra.mxu0 0.0
        %1544 = vmatpush.msra.mxu0 0.0
        %1545 = vmatpush.msra.mxu0 0.0
        %1546 = vmatpush.msra.mxu0 0.0
        %1547 = vmatpush.msra.mxu0 0.0
        %1548 = vmatpush.msra.mxu0 0.0
        %1549 = vmatpush.msra.mxu0 0.0
        %v1550 = vand.u32 %v895, 4294901760
        %v1551 = vsub.f32 %v895, %v1550
        %1552 = vmatpush.msra.mxu0 %v1551
        %v1553 = vand.u32 %v1481, 4294901760
        %v1554 = vsub.f32 %v1481, %v1553
        %1555 = vmatmul.f32.gmra.mxu0 %v1554
        %v1556 = vpop.f32.mrf.mxu0
        %v1557 = vadd.f32 %v1533, %v1556
        %1558 = vdwg.mxu0
        %1559 = vmatpush.msra.mxu0 0.0
        %1560 = vmatpush.msra.mxu0 0.0
        %1561 = vmatpush.msra.mxu0 0.0
        %1562 = vmatpush.msra.mxu0 0.0
        %1563 = vmatpush.msra.mxu0 0.0
        %1564 = vmatpush.msra.mxu0 0.0
        %1565 = vmatpush.msra.mxu0 0.0
        %1566 = vmatpush.msra.mxu0 0.0
        %1567 = vmatpush.msra.mxu0 0.0
        %1568 = vmatpush.msra.mxu0 0.0
        %1569 = vmatpush.msra.mxu0 0.0
        %1570 = vmatpush.msra.mxu0 0.0
        %1571 = vmatpush.msra.mxu0 0.0
        %1572 = vmatpush.msra.mxu0 0.0
        %1573 = vmatpush.msra.mxu0 0.0
        %v1574 = vand.u32 %v895, 4294901760
        %1575 = vmatpush.msra.mxu0 %v1574
        %v1576 = vand.u32 %v1481, 4294901760
        %v1577 = vsub.f32 %v1481, %v1576
        %v1578 = vand.u32 %v1577, 4294901760
        %1579 = vmatmul.f32.gmra.mxu0 %v1578
        %v1580 = vpop.f32.mrf.mxu0
        %v1581 = vadd.f32 %v1557, %v1580
        %1582 = vdwg.mxu0
        %1583 = vmatpush.msra.mxu0 0.0
        %1584 = vmatpush.msra.mxu0 0.0
        %1585 = vmatpush.msra.mxu0 0.0
        %1586 = vmatpush.msra.mxu0 0.0
        %1587 = vmatpush.msra.mxu0 0.0
        %1588 = vmatpush.msra.mxu0 0.0
        %1589 = vmatpush.msra.mxu0 0.0
        %1590 = vmatpush.msra.mxu0 0.0
        %1591 = vmatpush.msra.mxu0 0.0
        %1592 = vmatpush.msra.mxu0 0.0
        %1593 = vmatpush.msra.mxu0 0.0
        %1594 = vmatpush.msra.mxu0 0.0
        %1595 = vmatpush.msra.mxu0 0.0
        %1596 = vmatpush.msra.mxu0 0.0
        %1597 = vmatpush.msra.mxu0 0.0
        %v1598 = vand.u32 %v895, 4294901760
        %v1599 = vsub.f32 %v895, %v1598
        %v1600 = vand.u32 %v1599, 4294901760
        %1601 = vmatpush.msra.mxu0 %v1600
        %v1602 = vand.u32 %v1481, 4294901760
        %1603 = vmatmul.f32.gmra.mxu0 %v1602
        %v1604 = vpop.f32.mrf.mxu0
        %v1605 = vadd.f32 %v1581, %v1604
        %1606 = vdwg.mxu0
        %1607 = vmatpush.msra.mxu0 0.0
        %1608 = vmatpush.msra.mxu0 0.0
        %1609 = vmatpush.msra.mxu0 0.0
        %1610 = vmatpush.msra.mxu0 0.0
        %1611 = vmatpush.msra.mxu0 0.0
        %1612 = vmatpush.msra.mxu0 0.0
        %1613 = vmatpush.msra.mxu0 0.0
        %1614 = vmatpush.msra.mxu0 0.0
        %1615 = vmatpush.msra.mxu0 0.0
        %1616 = vmatpush.msra.mxu0 0.0
        %1617 = vmatpush.msra.mxu0 0.0
        %1618 = vmatpush.msra.mxu0 0.0
        %1619 = vmatpush.msra.mxu0 0.0
        %1620 = vmatpush.msra.mxu0 0.0
        %1621 = vmatpush.msra.mxu0 0.0
        %v1622 = vand.u32 %v895, 4294901760
        %1623 = vmatpush.msra.mxu0 %v1622
        %v1624 = vand.u32 %v1481, 4294901760
        %1625 = vmatmul.f32.gmra.mxu0 %v1624
        %v1626 = vpop.f32.mrf.mxu0
        %v1627 = vadd.f32 %v1605, %v1626
        %1628 = vdwg.mxu0
        %v1629 = vmul.f32 %v1180, 0.35355338
        %v1630 = vmul.f32 %v1329, 0.35355338
        %v1631 = vmul.f32 %v1478, 0.35355338
        %v1632 = vmul.f32 %v1627, 0.35355338
        %v1633 = vld [vmem:[%s1] sm:$0xff]
        %v1634 = vadd.f32 %v1629, %v1633
        %v1635 = vadd.f32 %v1630, %v1633
        %v1636 = vadd.f32 %v1631, %v1633
        %v1637 = vadd.f32 %v1632, %v1633
        %v1638 = vsel %vm1032, %v1634, -inf
        %1639 = vmax.xlane.f32.xlu0 %v1638
        %v1640 = vpop.xlane.xlu0 %1639
        %v1641 = vsel %vm1032, %v1635, -inf
        %1642 = vmax.xlane.f32.xlu0 %v1641
        %v1643 = vpop.xlane.xlu0 %1642
        %v1644 = vsel %vm1032, %v1636, -inf
        %1645 = vmax.xlane.f32.xlu0 %v1644
        %v1646 = vpop.xlane.xlu0 %1645
        %v1647 = vsel %vm1032, %v1637, -inf
        %1648 = vmax.xlane.f32.xlu0 %v1647
        %v1649 = vpop.xlane.xlu0 %1648
        %v1650 = vsub.f32 %v1634, %v1640
        %v1651 = vsub.f32 %v1635, %v1643
        %v1652 = vsub.f32 %v1636, %v1646
        %v1653 = vsub.f32 %v1637, %v1649
        %v1654 = vmul.f32 %v1650, 1.442695
        %v1655 = vpow.pop %v1654
        %v1656 = vmul.f32 %v1651, 1.442695
        %v1657 = vpow.pop %v1656
        %v1658 = vmul.f32 %v1652, 1.442695
        %v1659 = vpow.pop %v1658
        %v1660 = vmul.f32 %v1653, 1.442695
        %v1661 = vpow.pop %v1660
        %v1662 = vsel %vm1032, %v1655, 0.0
        %1663 = vadd.xlane.f32.xlu0 %v1662
        %v1664 = vpop.xlane.xlu0 %1663
        %v1665 = vsel %vm1032, %v1657, 0.0
        %1666 = vadd.xlane.f32.xlu0 %v1665
        %v1667 = vpop.xlane.xlu0 %1666
        %v1668 = vsel %vm1032, %v1659, 0.0
        %1669 = vadd.xlane.f32.xlu0 %v1668
        %v1670 = vpop.xlane.xlu0 %1669
        %v1671 = vsel %vm1032, %v1661, 0.0
        %1672 = vadd.xlane.f32.xlu0 %v1671
        %v1673 = vpop.xlane.xlu0 %1672
        %v1674 = vrcp.pop %v1664
        %v1675 = vmul.f32 %v1664, %v1674
        %v1676 = vsub.f32 1.0, %v1675
        %v1677 = vmul.f32 %v1674, %v1676
        %v1678 = vadd.f32 %v1674, %v1677
        %vm1679 = vweird.f32 %v1664
        %vm1680 = vweird.f32 %v1674
        %vm1681 = vmor %vm1679, %vm1680
        %v1682 = vsel %vm1681, %v1674, %v1678
        %v1683 = vand.u32 2147483647, %v1664
        %vm1684 = vcmp.eq.f32.partialorder %v1683, 8.507059e+37
        %v1685 = vand.u32 %v1664, 2147483648
        %v1686 = vor.u32 1.1754944e-38, %v1685
        %v1687 = vsel %vm1684, %v1686, %v1682
        %v1688 = vmul.f32 %v1655, %v1687
        %v1689 = vrcp.pop %v1667
        %v1690 = vmul.f32 %v1667, %v1689
        %v1691 = vsub.f32 1.0, %v1690
        %v1692 = vmul.f32 %v1689, %v1691
        %v1693 = vadd.f32 %v1689, %v1692
        %vm1694 = vweird.f32 %v1667
        %vm1695 = vweird.f32 %v1689
        %vm1696 = vmor %vm1694, %vm1695
        %v1697 = vsel %vm1696, %v1689, %v1693
        %v1698 = vand.u32 2147483647, %v1667
        %vm1699 = vcmp.eq.f32.partialorder %v1698, 8.507059e+37
        %v1700 = vand.u32 %v1667, 2147483648
        %v1701 = vor.u32 1.1754944e-38, %v1700
        %v1702 = vsel %vm1699, %v1701, %v1697
        %v1703 = vmul.f32 %v1657, %v1702
        %v1704 = vrcp.pop %v1670
        %v1705 = vmul.f32 %v1670, %v1704
        %v1706 = vsub.f32 1.0, %v1705
        %v1707 = vmul.f32 %v1704, %v1706
        %v1708 = vadd.f32 %v1704, %v1707
        %vm1709 = vweird.f32 %v1670
        %vm1710 = vweird.f32 %v1704
        %vm1711 = vmor %vm1709, %vm1710
        %v1712 = vsel %vm1711, %v1704, %v1708
        %v1713 = vand.u32 2147483647, %v1670
        %vm1714 = vcmp.eq.f32.partialorder %v1713, 8.507059e+37
        %v1715 = vand.u32 %v1670, 2147483648
        %v1716 = vor.u32 1.1754944e-38, %v1715
        %v1717 = vsel %vm1714, %v1716, %v1712
        %v1718 = vmul.f32 %v1659, %v1717
        %v1719 = vrcp.pop %v1673
        %v1720 = vmul.f32 %v1673, %v1719
        %v1721 = vsub.f32 1.0, %v1720
        %v1722 = vmul.f32 %v1719, %v1721
        %v1723 = vadd.f32 %v1719, %v1722
        %vm1724 = vweird.f32 %v1673
        %vm1725 = vweird.f32 %v1719
        %vm1726 = vmor %vm1724, %vm1725
        %v1727 = vsel %vm1726, %v1719, %v1723
        %v1728 = vand.u32 2147483647, %v1673
        %vm1729 = vcmp.eq.f32.partialorder %v1728, 8.507059e+37
        %v1730 = vand.u32 %v1673, 2147483648
        %v1731 = vor.u32 1.1754944e-38, %v1730
        %v1732 = vsel %vm1729, %v1731, %v1727
        %v1733 = vmul.f32 %v1661, %v1732
        %v1735 = vsel %vm1032, %v1688, 0
        %v1738 = vsel %vm1032, %v896, 0
        %1740 = vmatpush.xpose.msra.mxu0 0.0
        %1741 = vmatpush.xpose.msra.mxu0 0.0
        %1742 = vmatpush.xpose.msra.mxu0 0.0
        %1743 = vmatpush.xpose.msra.mxu0 0.0
        %1744 = vmatpush.xpose.msra.mxu0 0.0
        %1745 = vmatpush.xpose.msra.mxu0 0.0
        %1746 = vmatpush.xpose.msra.mxu0 0.0
        %1747 = vmatpush.xpose.msra.mxu0 0.0
        %1748 = vmatpush.xpose.msra.mxu0 0.0
        %1749 = vmatpush.xpose.msra.mxu0 0.0
        %1750 = vmatpush.xpose.msra.mxu0 0.0
        %1751 = vmatpush.xpose.msra.mxu0 0.0
        %1752 = vmatpush.xpose.msra.mxu0 0.0
        %1753 = vmatpush.xpose.msra.mxu0 0.0
        %1754 = vmatpush.xpose.msra.mxu0 0.0
        %v1755 = vand.u32 %v1738, 4294901760
        %1756 = vmatpush.xpose.msra.mxu0 %v1755
        %v1757 = vand.u32 %v1735, 4294901760
        %v1758 = vsub.f32 %v1735, %v1757
        %v1759 = vand.u32 %v1758, 4294901760
        %v1760 = vsub.f32 %v1758, %v1759
        %v1761 = vand.u32 %v1760, 4294901760
        %1762 = vmatmul.f32.gmra.mxu0 %v1761
        %v1763 = vpop.f32.mrf.mxu0
        %v1764 = vadd.f32 0.0, %v1763
        %1765 = vdwg.mxu0
        %1766 = vmatpush.xpose.msra.mxu0 0.0
        %1767 = vmatpush.xpose.msra.mxu0 0.0
        %1768 = vmatpush.xpose.msra.mxu0 0.0
        %1769 = vmatpush.xpose.msra.mxu0 0.0
        %1770 = vmatpush.xpose.msra.mxu0 0.0
        %1771 = vmatpush.xpose.msra.mxu0 0.0
        %1772 = vmatpush.xpose.msra.mxu0 0.0
        %1773 = vmatpush.xpose.msra.mxu0 0.0
        %1774 = vmatpush.xpose.msra.mxu0 0.0
        %1775 = vmatpush.xpose.msra.mxu0 0.0
        %1776 = vmatpush.xpose.msra.mxu0 0.0
        %1777 = vmatpush.xpose.msra.mxu0 0.0
        %1778 = vmatpush.xpose.msra.mxu0 0.0
        %1779 = vmatpush.xpose.msra.mxu0 0.0
        %1780 = vmatpush.xpose.msra.mxu0 0.0
        %v1781 = vand.u32 %v1738, 4294901760
        %v1782 = vsub.f32 %v1738, %v1781
        %v1783 = vand.u32 %v1782, 4294901760
        %v1784 = vsub.f32 %v1782, %v1783
        %v1785 = vand.u32 %v1784, 4294901760
        %1786 = vmatpush.xpose.msra.mxu0 %v1785
        %v1787 = vand.u32 %v1735, 4294901760
        %1788 = vmatmul.f32.gmra.mxu0 %v1787
        %v1789 = vpop.f32.mrf.mxu0
        %v1790 = vadd.f32 %v1764, %v1789
        %1791 = vdwg.mxu0
        %1792 = vmatpush.xpose.msra.mxu0 0.0
        %1793 = vmatpush.xpose.msra.mxu0 0.0
        %1794 = vmatpush.xpose.msra.mxu0 0.0
        %1795 = vmatpush.xpose.msra.mxu0 0.0
        %1796 = vmatpush.xpose.msra.mxu0 0.0
        %1797 = vmatpush.xpose.msra.mxu0 0.0
        %1798 = vmatpush.xpose.msra.mxu0 0.0
        %1799 = vmatpush.xpose.msra.mxu0 0.0
        %1800 = vmatpush.xpose.msra.mxu0 0.0
        %1801 = vmatpush.xpose.msra.mxu0 0.0
        %1802 = vmatpush.xpose.msra.mxu0 0.0
        %1803 = vmatpush.xpose.msra.mxu0 0.0
        %1804 = vmatpush.xpose.msra.mxu0 0.0
        %1805 = vmatpush.xpose.msra.mxu0 0.0
        %1806 = vmatpush.xpose.msra.mxu0 0.0
        %v1807 = vand.u32 %v1738, 4294901760
        %v1808 = vsub.f32 %v1738, %v1807
        %1809 = vmatpush.xpose.msra.mxu0 %v1808
        %v1810 = vand.u32 %v1735, 4294901760
        %v1811 = vsub.f32 %v1735, %v1810
        %1812 = vmatmul.f32.gmra.mxu0 %v1811
        %v1813 = vpop.f32.mrf.mxu0
        %v1814 = vadd.f32 %v1790, %v1813
        %1815 = vdwg.mxu0
        %1816 = vmatpush.xpose.msra.mxu0 0.0
        %1817 = vmatpush.xpose.msra.mxu0 0.0
        %1818 = vmatpush.xpose.msra.mxu0 0.0
        %1819 = vmatpush.xpose.msra.mxu0 0.0
        %1820 = vmatpush.xpose.msra.mxu0 0.0
        %1821 = vmatpush.xpose.msra.mxu0 0.0
        %1822 = vmatpush.xpose.msra.mxu0 0.0
        %1823 = vmatpush.xpose.msra.mxu0 0.0
        %1824 = vmatpush.xpose.msra.mxu0 0.0
        %1825 = vmatpush.xpose.msra.mxu0 0.0
        %1826 = vmatpush.xpose.msra.mxu0 0.0
        %1827 = vmatpush.xpose.msra.mxu0 0.0
        %1828 = vmatpush.xpose.msra.mxu0 0.0
        %1829 = vmatpush.xpose.msra.mxu0 0.0
        %1830 = vmatpush.xpose.msra.mxu0 0.0
        %v1831 = vand.u32 %v1738, 4294901760
        %1832 = vmatpush.xpose.msra.mxu0 %v1831
        %v1833 = vand.u32 %v1735, 4294901760
        %v1834 = vsub.f32 %v1735, %v1833
        %v1835 = vand.u32 %v1834, 4294901760
        %1836 = vmatmul.f32.gmra.mxu0 %v1835
        %v1837 = vpop.f32.mrf.mxu0
        %v1838 = vadd.f32 %v1814, %v1837
        %1839 = vdwg.mxu0
        %1840 = vmatpush.xpose.msra.mxu0 0.0
        %1841 = vmatpush.xpose.msra.mxu0 0.0
        %1842 = vmatpush.xpose.msra.mxu0 0.0
        %1843 = vmatpush.xpose.msra.mxu0 0.0
        %1844 = vmatpush.xpose.msra.mxu0 0.0
        %1845 = vmatpush.xpose.msra.mxu0 0.0
        %1846 = vmatpush.xpose.msra.mxu0 0.0
        %1847 = vmatpush.xpose.msra.mxu0 0.0
        %1848 = vmatpush.xpose.msra.mxu0 0.0
        %1849 = vmatpush.xpose.msra.mxu0 0.0
        %1850 = vmatpush.xpose.msra.mxu0 0.0
        %1851 = vmatpush.xpose.msra.mxu0 0.0
        %1852 = vmatpush.xpose.msra.mxu0 0.0
        %1853 = vmatpush.xpose.msra.mxu0 0.0
        %1854 = vmatpush.xpose.msra.mxu0 0.0
        %v1855 = vand.u32 %v1738, 4294901760
        %v1856 = vsub.f32 %v1738, %v1855
        %v1857 = vand.u32 %v1856, 4294901760
        %1858 = vmatpush.xpose.msra.mxu0 %v1857
        %v1859 = vand.u32 %v1735, 4294901760
        %1860 = vmatmul.f32.gmra.mxu0 %v1859
        %v1861 = vpop.f32.mrf.mxu0
        %v1862 = vadd.f32 %v1838, %v1861
        %1863 = vdwg.mxu0
        %1864 = vmatpush.xpose.msra.mxu0 0.0
        %1865 = vmatpush.xpose.msra.mxu0 0.0
        %1866 = vmatpush.xpose.msra.mxu0 0.0
        %1867 = vmatpush.xpose.msra.mxu0 0.0
        %1868 = vmatpush.xpose.msra.mxu0 0.0
        %1869 = vmatpush.xpose.msra.mxu0 0.0
        %1870 = vmatpush.xpose.msra.mxu0 0.0
        %1871 = vmatpush.xpose.msra.mxu0 0.0
        %1872 = vmatpush.xpose.msra.mxu0 0.0
        %1873 = vmatpush.xpose.msra.mxu0 0.0
        %1874 = vmatpush.xpose.msra.mxu0 0.0
        %1875 = vmatpush.xpose.msra.mxu0 0.0
        %1876 = vmatpush.xpose.msra.mxu0 0.0
        %1877 = vmatpush.xpose.msra.mxu0 0.0
        %1878 = vmatpush.xpose.msra.mxu0 0.0
        %v1879 = vand.u32 %v1738, 4294901760
        %1880 = vmatpush.xpose.msra.mxu0 %v1879
        %v1881 = vand.u32 %v1735, 4294901760
        %1882 = vmatmul.f32.gmra.mxu0 %v1881
        %v1883 = vpop.f32.mrf.mxu0
        %v1884 = vadd.f32 %v1862, %v1883
        %1885 = vdwg.mxu0
        %v1887 = vsel %vm1032, %v1703, 0
        %v1890 = vsel %vm1032, %v897, 0
        %1892 = vmatpush.xpose.msra.mxu0 0.0
        %1893 = vmatpush.xpose.msra.mxu0 0.0
        %1894 = vmatpush.xpose.msra.mxu0 0.0
        %1895 = vmatpush.xpose.msra.mxu0 0.0
        %1896 = vmatpush.xpose.msra.mxu0 0.0
        %1897 = vmatpush.xpose.msra.mxu0 0.0
        %1898 = vmatpush.xpose.msra.mxu0 0.0
        %1899 = vmatpush.xpose.msra.mxu0 0.0
        %1900 = vmatpush.xpose.msra.mxu0 0.0
        %1901 = vmatpush.xpose.msra.mxu0 0.0
        %1902 = vmatpush.xpose.msra.mxu0 0.0
        %1903 = vmatpush.xpose.msra.mxu0 0.0
        %1904 = vmatpush.xpose.msra.mxu0 0.0
        %1905 = vmatpush.xpose.msra.mxu0 0.0
        %1906 = vmatpush.xpose.msra.mxu0 0.0
        %v1907 = vand.u32 %v1890, 4294901760
        %1908 = vmatpush.xpose.msra.mxu0 %v1907
        %v1909 = vand.u32 %v1887, 4294901760
        %v1910 = vsub.f32 %v1887, %v1909
        %v1911 = vand.u32 %v1910, 4294901760
        %v1912 = vsub.f32 %v1910, %v1911
        %v1913 = vand.u32 %v1912, 4294901760
        %1914 = vmatmul.f32.gmra.mxu0 %v1913
        %v1915 = vpop.f32.mrf.mxu0
        %v1916 = vadd.f32 0.0, %v1915
        %1917 = vdwg.mxu0
        %1918 = vmatpush.xpose.msra.mxu0 0.0
        %1919 = vmatpush.xpose.msra.mxu0 0.0
        %1920 = vmatpush.xpose.msra.mxu0 0.0
        %1921 = vmatpush.xpose.msra.mxu0 0.0
        %1922 = vmatpush.xpose.msra.mxu0 0.0
        %1923 = vmatpush.xpose.msra.mxu0 0.0
        %1924 = vmatpush.xpose.msra.mxu0 0.0
        %1925 = vmatpush.xpose.msra.mxu0 0.0
        %1926 = vmatpush.xpose.msra.mxu0 0.0
        %1927 = vmatpush.xpose.msra.mxu0 0.0
        %1928 = vmatpush.xpose.msra.mxu0 0.0
        %1929 = vmatpush.xpose.msra.mxu0 0.0
        %1930 = vmatpush.xpose.msra.mxu0 0.0
        %1931 = vmatpush.xpose.msra.mxu0 0.0
        %1932 = vmatpush.xpose.msra.mxu0 0.0
        %v1933 = vand.u32 %v1890, 4294901760
        %v1934 = vsub.f32 %v1890, %v1933
        %v1935 = vand.u32 %v1934, 4294901760
        %v1936 = vsub.f32 %v1934, %v1935
        %v1937 = vand.u32 %v1936, 4294901760
        %1938 = vmatpush.xpose.msra.mxu0 %v1937
        %v1939 = vand.u32 %v1887, 4294901760
        %1940 = vmatmul.f32.gmra.mxu0 %v1939
        %v1941 = vpop.f32.mrf.mxu0
        %v1942 = vadd.f32 %v1916, %v1941
        %1943 = vdwg.mxu0
        %1944 = vmatpush.xpose.msra.mxu0 0.0
        %1945 = vmatpush.xpose.msra.mxu0 0.0
        %1946 = vmatpush.xpose.msra.mxu0 0.0
        %1947 = vmatpush.xpose.msra.mxu0 0.0
        %1948 = vmatpush.xpose.msra.mxu0 0.0
        %1949 = vmatpush.xpose.msra.mxu0 0.0
        %1950 = vmatpush.xpose.msra.mxu0 0.0
        %1951 = vmatpush.xpose.msra.mxu0 0.0
        %1952 = vmatpush.xpose.msra.mxu0 0.0
        %1953 = vmatpush.xpose.msra.mxu0 0.0
        %1954 = vmatpush.xpose.msra.mxu0 0.0
        %1955 = vmatpush.xpose.msra.mxu0 0.0
        %1956 = vmatpush.xpose.msra.mxu0 0.0
        %1957 = vmatpush.xpose.msra.mxu0 0.0
        %1958 = vmatpush.xpose.msra.mxu0 0.0
        %v1959 = vand.u32 %v1890, 4294901760
        %v1960 = vsub.f32 %v1890, %v1959
        %1961 = vmatpush.xpose.msra.mxu0 %v1960
        %v1962 = vand.u32 %v1887, 4294901760
        %v1963 = vsub.f32 %v1887, %v1962
        %1964 = vmatmul.f32.gmra.mxu0 %v1963
        %v1965 = vpop.f32.mrf.mxu0
        %v1966 = vadd.f32 %v1942, %v1965
        %1967 = vdwg.mxu0
        %1968 = vmatpush.xpose.msra.mxu0 0.0
        %1969 = vmatpush.xpose.msra.mxu0 0.0
        %1970 = vmatpush.xpose.msra.mxu0 0.0
        %1971 = vmatpush.xpose.msra.mxu0 0.0
        %1972 = vmatpush.xpose.msra.mxu0 0.0
        %1973 = vmatpush.xpose.msra.mxu0 0.0
        %1974 = vmatpush.xpose.msra.mxu0 0.0
        %1975 = vmatpush.xpose.msra.mxu0 0.0
        %1976 = vmatpush.xpose.msra.mxu0 0.0
        %1977 = vmatpush.xpose.msra.mxu0 0.0
        %1978 = vmatpush.xpose.msra.mxu0 0.0
        %1979 = vmatpush.xpose.msra.mxu0 0.0
        %1980 = vmatpush.xpose.msra.mxu0 0.0
        %1981 = vmatpush.xpose.msra.mxu0 0.0
        %1982 = vmatpush.xpose.msra.mxu0 0.0
        %v1983 = vand.u32 %v1890, 4294901760
        %1984 = vmatpush.xpose.msra.mxu0 %v1983
        %v1985 = vand.u32 %v1887, 4294901760
        %v1986 = vsub.f32 %v1887, %v1985
        %v1987 = vand.u32 %v1986, 4294901760
        %1988 = vmatmul.f32.gmra.mxu0 %v1987
        %v1989 = vpop.f32.mrf.mxu0
        %v1990 = vadd.f32 %v1966, %v1989
        %1991 = vdwg.mxu0
        %1992 = vmatpush.xpose.msra.mxu0 0.0
        %1993 = vmatpush.xpose.msra.mxu0 0.0
        %1994 = vmatpush.xpose.msra.mxu0 0.0
        %1995 = vmatpush.xpose.msra.mxu0 0.0
        %1996 = vmatpush.xpose.msra.mxu0 0.0
        %1997 = vmatpush.xpose.msra.mxu0 0.0
        %1998 = vmatpush.xpose.msra.mxu0 0.0
        %1999 = vmatpush.xpose.msra.mxu0 0.0
        %2000 = vmatpush.xpose.msra.mxu0 0.0
        %2001 = vmatpush.xpose.msra.mxu0 0.0
        %2002 = vmatpush.xpose.msra.mxu0 0.0
        %2003 = vmatpush.xpose.msra.mxu0 0.0
        %2004 = vmatpush.xpose.msra.mxu0 0.0
        %2005 = vmatpush.xpose.msra.mxu0 0.0
        %2006 = vmatpush.xpose.msra.mxu0 0.0
        %v2007 = vand.u32 %v1890, 4294901760
        %v2008 = vsub.f32 %v1890, %v2007
        %v2009 = vand.u32 %v2008, 4294901760
        %2010 = vmatpush.xpose.msra.mxu0 %v2009
        %v2011 = vand.u32 %v1887, 4294901760
        %2012 = vmatmul.f32.gmra.mxu0 %v2011
        %v2013 = vpop.f32.mrf.mxu0
        %v2014 = vadd.f32 %v1990, %v2013
        %2015 = vdwg.mxu0
        %2016 = vmatpush.xpose.msra.mxu0 0.0
        %2017 = vmatpush.xpose.msra.mxu0 0.0
        %2018 = vmatpush.xpose.msra.mxu0 0.0
        %2019 = vmatpush.xpose.msra.mxu0 0.0
        %2020 = vmatpush.xpose.msra.mxu0 0.0
        %2021 = vmatpush.xpose.msra.mxu0 0.0
        %2022 = vmatpush.xpose.msra.mxu0 0.0
        %2023 = vmatpush.xpose.msra.mxu0 0.0
        %2024 = vmatpush.xpose.msra.mxu0 0.0
        %2025 = vmatpush.xpose.msra.mxu0 0.0
        %2026 = vmatpush.xpose.msra.mxu0 0.0
        %2027 = vmatpush.xpose.msra.mxu0 0.0
        %2028 = vmatpush.xpose.msra.mxu0 0.0
        %2029 = vmatpush.xpose.msra.mxu0 0.0
        %2030 = vmatpush.xpose.msra.mxu0 0.0
        %v2031 = vand.u32 %v1890, 4294901760
        %2032 = vmatpush.xpose.msra.mxu0 %v2031
        %v2033 = vand.u32 %v1887, 4294901760
        %2034 = vmatmul.f32.gmra.mxu0 %v2033
        %v2035 = vpop.f32.mrf.mxu0
        %v2036 = vadd.f32 %v2014, %v2035
        %2037 = vdwg.mxu0
        %v2039 = vsel %vm1032, %v1718, 0
        %v2042 = vsel %vm1032, %v898, 0
        %2044 = vmatpush.xpose.msra.mxu0 0.0
        %2045 = vmatpush.xpose.msra.mxu0 0.0
        %2046 = vmatpush.xpose.msra.mxu0 0.0
        %2047 = vmatpush.xpose.msra.mxu0 0.0
        %2048 = vmatpush.xpose.msra.mxu0 0.0
        %2049 = vmatpush.xpose.msra.mxu0 0.0
        %2050 = vmatpush.xpose.msra.mxu0 0.0
        %2051 = vmatpush.xpose.msra.mxu0 0.0
        %2052 = vmatpush.xpose.msra.mxu0 0.0
        %2053 = vmatpush.xpose.msra.mxu0 0.0
        %2054 = vmatpush.xpose.msra.mxu0 0.0
        %2055 = vmatpush.xpose.msra.mxu0 0.0
        %2056 = vmatpush.xpose.msra.mxu0 0.0
        %2057 = vmatpush.xpose.msra.mxu0 0.0
        %2058 = vmatpush.xpose.msra.mxu0 0.0
        %v2059 = vand.u32 %v2042, 4294901760
        %2060 = vmatpush.xpose.msra.mxu0 %v2059
        %v2061 = vand.u32 %v2039, 4294901760
        %v2062 = vsub.f32 %v2039, %v2061
        %v2063 = vand.u32 %v2062, 4294901760
        %v2064 = vsub.f32 %v2062, %v2063
        %v2065 = vand.u32 %v2064, 4294901760
        %2066 = vmatmul.f32.gmra.mxu0 %v2065
        %v2067 = vpop.f32.mrf.mxu0
        %v2068 = vadd.f32 0.0, %v2067
        %2069 = vdwg.mxu0
        %2070 = vmatpush.xpose.msra.mxu0 0.0
        %2071 = vmatpush.xpose.msra.mxu0 0.0
        %2072 = vmatpush.xpose.msra.mxu0 0.0
        %2073 = vmatpush.xpose.msra.mxu0 0.0
        %2074 = vmatpush.xpose.msra.mxu0 0.0
        %2075 = vmatpush.xpose.msra.mxu0 0.0
        %2076 = vmatpush.xpose.msra.mxu0 0.0
        %2077 = vmatpush.xpose.msra.mxu0 0.0
        %2078 = vmatpush.xpose.msra.mxu0 0.0
        %2079 = vmatpush.xpose.msra.mxu0 0.0
        %2080 = vmatpush.xpose.msra.mxu0 0.0
        %2081 = vmatpush.xpose.msra.mxu0 0.0
        %2082 = vmatpush.xpose.msra.mxu0 0.0
        %2083 = vmatpush.xpose.msra.mxu0 0.0
        %2084 = vmatpush.xpose.msra.mxu0 0.0
        %v2085 = vand.u32 %v2042, 4294901760
        %v2086 = vsub.f32 %v2042, %v2085
        %v2087 = vand.u32 %v2086, 4294901760
        %v2088 = vsub.f32 %v2086, %v2087
        %v2089 = vand.u32 %v2088, 4294901760
        %2090 = vmatpush.xpose.msra.mxu0 %v2089
        %v2091 = vand.u32 %v2039, 4294901760
        %2092 = vmatmul.f32.gmra.mxu0 %v2091
        %v2093 = vpop.f32.mrf.mxu0
        %v2094 = vadd.f32 %v2068, %v2093
        %2095 = vdwg.mxu0
        %2096 = vmatpush.xpose.msra.mxu0 0.0
        %2097 = vmatpush.xpose.msra.mxu0 0.0
        %2098 = vmatpush.xpose.msra.mxu0 0.0
        %2099 = vmatpush.xpose.msra.mxu0 0.0
        %2100 = vmatpush.xpose.msra.mxu0 0.0
        %2101 = vmatpush.xpose.msra.mxu0 0.0
        %2102 = vmatpush.xpose.msra.mxu0 0.0
        %2103 = vmatpush.xpose.msra.mxu0 0.0
        %2104 = vmatpush.xpose.msra.mxu0 0.0
        %2105 = vmatpush.xpose.msra.mxu0 0.0
        %2106 = vmatpush.xpose.msra.mxu0 0.0
        %2107 = vmatpush.xpose.msra.mxu0 0.0
        %2108 = vmatpush.xpose.msra.mxu0 0.0
        %2109 = vmatpush.xpose.msra.mxu0 0.0
        %2110 = vmatpush.xpose.msra.mxu0 0.0
        %v2111 = vand.u32 %v2042, 4294901760
        %v2112 = vsub.f32 %v2042, %v2111
        %2113 = vmatpush.xpose.msra.mxu0 %v2112
        %v2114 = vand.u32 %v2039, 4294901760
        %v2115 = vsub.f32 %v2039, %v2114
        %2116 = vmatmul.f32.gmra.mxu0 %v2115
        %v2117 = vpop.f32.mrf.mxu0
        %v2118 = vadd.f32 %v2094, %v2117
        %2119 = vdwg.mxu0
        %2120 = vmatpush.xpose.msra.mxu0 0.0
        %2121 = vmatpush.xpose.msra.mxu0 0.0
        %2122 = vmatpush.xpose.msra.mxu0 0.0
        %2123 = vmatpush.xpose.msra.mxu0 0.0
        %2124 = vmatpush.xpose.msra.mxu0 0.0
        %2125 = vmatpush.xpose.msra.mxu0 0.0
        %2126 = vmatpush.xpose.msra.mxu0 0.0
        %2127 = vmatpush.xpose.msra.mxu0 0.0
        %2128 = vmatpush.xpose.msra.mxu0 0.0
        %2129 = vmatpush.xpose.msra.mxu0 0.0
        %2130 = vmatpush.xpose.msra.mxu0 0.0
        %2131 = vmatpush.xpose.msra.mxu0 0.0
        %2132 = vmatpush.xpose.msra.mxu0 0.0
        %2133 = vmatpush.xpose.msra.mxu0 0.0
        %2134 = vmatpush.xpose.msra.mxu0 0.0
        %v2135 = vand.u32 %v2042, 4294901760
        %2136 = vmatpush.xpose.msra.mxu0 %v2135
        %v2137 = vand.u32 %v2039, 4294901760
        %v2138 = vsub.f32 %v2039, %v2137
        %v2139 = vand.u32 %v2138, 4294901760
        %2140 = vmatmul.f32.gmra.mxu0 %v2139
        %v2141 = vpop.f32.mrf.mxu0
        %v2142 = vadd.f32 %v2118, %v2141
        %2143 = vdwg.mxu0
        %2144 = vmatpush.xpose.msra.mxu0 0.0
        %2145 = vmatpush.xpose.msra.mxu0 0.0
        %2146 = vmatpush.xpose.msra.mxu0 0.0
        %2147 = vmatpush.xpose.msra.mxu0 0.0
        %2148 = vmatpush.xpose.msra.mxu0 0.0
        %2149 = vmatpush.xpose.msra.mxu0 0.0
        %2150 = vmatpush.xpose.msra.mxu0 0.0
        %2151 = vmatpush.xpose.msra.mxu0 0.0
        %2152 = vmatpush.xpose.msra.mxu0 0.0
        %2153 = vmatpush.xpose.msra.mxu0 0.0
        %2154 = vmatpush.xpose.msra.mxu0 0.0
        %2155 = vmatpush.xpose.msra.mxu0 0.0
        %2156 = vmatpush.xpose.msra.mxu0 0.0
        %2157 = vmatpush.xpose.msra.mxu0 0.0
        %2158 = vmatpush.xpose.msra.mxu0 0.0
        %v2159 = vand.u32 %v2042, 4294901760
        %v2160 = vsub.f32 %v2042, %v2159
        %v2161 = vand.u32 %v2160, 4294901760
        %2162 = vmatpush.xpose.msra.mxu0 %v2161
        %v2163 = vand.u32 %v2039, 4294901760
        %2164 = vmatmul.f32.gmra.mxu0 %v2163
        %v2165 = vpop.f32.mrf.mxu0
        %v2166 = vadd.f32 %v2142, %v2165
        %2167 = vdwg.mxu0
        %2168 = vmatpush.xpose.msra.mxu0 0.0
        %2169 = vmatpush.xpose.msra.mxu0 0.0
        %2170 = vmatpush.xpose.msra.mxu0 0.0
        %2171 = vmatpush.xpose.msra.mxu0 0.0
        %2172 = vmatpush.xpose.msra.mxu0 0.0
        %2173 = vmatpush.xpose.msra.mxu0 0.0
        %2174 = vmatpush.xpose.msra.mxu0 0.0
        %2175 = vmatpush.xpose.msra.mxu0 0.0
        %2176 = vmatpush.xpose.msra.mxu0 0.0
        %2177 = vmatpush.xpose.msra.mxu0 0.0
        %2178 = vmatpush.xpose.msra.mxu0 0.0
        %2179 = vmatpush.xpose.msra.mxu0 0.0
        %2180 = vmatpush.xpose.msra.mxu0 0.0
        %2181 = vmatpush.xpose.msra.mxu0 0.0
        %2182 = vmatpush.xpose.msra.mxu0 0.0
        %v2183 = vand.u32 %v2042, 4294901760
        %2184 = vmatpush.xpose.msra.mxu0 %v2183
        %v2185 = vand.u32 %v2039, 4294901760
        %2186 = vmatmul.f32.gmra.mxu0 %v2185
        %v2187 = vpop.f32.mrf.mxu0
        %v2188 = vadd.f32 %v2166, %v2187
        %2189 = vdwg.mxu0
        %v2191 = vsel %vm1032, %v1733, 0
        %v2194 = vsel %vm1032, %v899, 0
        %2196 = vmatpush.xpose.msra.mxu0 0.0
        %2197 = vmatpush.xpose.msra.mxu0 0.0
        %2198 = vmatpush.xpose.msra.mxu0 0.0
        %2199 = vmatpush.xpose.msra.mxu0 0.0
        %2200 = vmatpush.xpose.msra.mxu0 0.0
        %2201 = vmatpush.xpose.msra.mxu0 0.0
        %2202 = vmatpush.xpose.msra.mxu0 0.0
        %2203 = vmatpush.xpose.msra.mxu0 0.0
        %2204 = vmatpush.xpose.msra.mxu0 0.0
        %2205 = vmatpush.xpose.msra.mxu0 0.0
        %2206 = vmatpush.xpose.msra.mxu0 0.0
        %2207 = vmatpush.xpose.msra.mxu0 0.0
        %2208 = vmatpush.xpose.msra.mxu0 0.0
        %2209 = vmatpush.xpose.msra.mxu0 0.0
        %2210 = vmatpush.xpose.msra.mxu0 0.0
        %v2211 = vand.u32 %v2194, 4294901760
        %2212 = vmatpush.xpose.msra.mxu0 %v2211
        %v2213 = vand.u32 %v2191, 4294901760
        %v2214 = vsub.f32 %v2191, %v2213
        %v2215 = vand.u32 %v2214, 4294901760
        %v2216 = vsub.f32 %v2214, %v2215
        %v2217 = vand.u32 %v2216, 4294901760
        %2218 = vmatmul.f32.gmra.mxu0 %v2217
        %v2219 = vpop.f32.mrf.mxu0
        %v2220 = vadd.f32 0.0, %v2219
        %2221 = vdwg.mxu0
        %2222 = vmatpush.xpose.msra.mxu0 0.0
        %2223 = vmatpush.xpose.msra.mxu0 0.0
        %2224 = vmatpush.xpose.msra.mxu0 0.0
        %2225 = vmatpush.xpose.msra.mxu0 0.0
        %2226 = vmatpush.xpose.msra.mxu0 0.0
        %2227 = vmatpush.xpose.msra.mxu0 0.0
        %2228 = vmatpush.xpose.msra.mxu0 0.0
        %2229 = vmatpush.xpose.msra.mxu0 0.0
        %2230 = vmatpush.xpose.msra.mxu0 0.0
        %2231 = vmatpush.xpose.msra.mxu0 0.0
        %2232 = vmatpush.xpose.msra.mxu0 0.0
        %2233 = vmatpush.xpose.msra.mxu0 0.0
        %2234 = vmatpush.xpose.msra.mxu0 0.0
        %2235 = vmatpush.xpose.msra.mxu0 0.0
        %2236 = vmatpush.xpose.msra.mxu0 0.0
        %v2237 = vand.u32 %v2194, 4294901760
        %v2238 = vsub.f32 %v2194, %v2237
        %v2239 = vand.u32 %v2238, 4294901760
        %v2240 = vsub.f32 %v2238, %v2239
        %v2241 = vand.u32 %v2240, 4294901760
        %2242 = vmatpush.xpose.msra.mxu0 %v2241
        %v2243 = vand.u32 %v2191, 4294901760
        %2244 = vmatmul.f32.gmra.mxu0 %v2243
        %v2245 = vpop.f32.mrf.mxu0
        %v2246 = vadd.f32 %v2220, %v2245
        %2247 = vdwg.mxu0
        %2248 = vmatpush.xpose.msra.mxu0 0.0
        %2249 = vmatpush.xpose.msra.mxu0 0.0
        %2250 = vmatpush.xpose.msra.mxu0 0.0
        %2251 = vmatpush.xpose.msra.mxu0 0.0
        %2252 = vmatpush.xpose.msra.mxu0 0.0
        %2253 = vmatpush.xpose.msra.mxu0 0.0
        %2254 = vmatpush.xpose.msra.mxu0 0.0
        %2255 = vmatpush.xpose.msra.mxu0 0.0
        %2256 = vmatpush.xpose.msra.mxu0 0.0
        %2257 = vmatpush.xpose.msra.mxu0 0.0
        %2258 = vmatpush.xpose.msra.mxu0 0.0
        %2259 = vmatpush.xpose.msra.mxu0 0.0
        %2260 = vmatpush.xpose.msra.mxu0 0.0
        %2261 = vmatpush.xpose.msra.mxu0 0.0
        %2262 = vmatpush.xpose.msra.mxu0 0.0
        %v2263 = vand.u32 %v2194, 4294901760
        %v2264 = vsub.f32 %v2194, %v2263
        %2265 = vmatpush.xpose.msra.mxu0 %v2264
        %v2266 = vand.u32 %v2191, 4294901760
        %v2267 = vsub.f32 %v2191, %v2266
        %2268 = vmatmul.f32.gmra.mxu0 %v2267
        %v2269 = vpop.f32.mrf.mxu0
        %v2270 = vadd.f32 %v2246, %v2269
        %2271 = vdwg.mxu0
        %2272 = vmatpush.xpose.msra.mxu0 0.0
        %2273 = vmatpush.xpose.msra.mxu0 0.0
        %2274 = vmatpush.xpose.msra.mxu0 0.0
        %2275 = vmatpush.xpose.msra.mxu0 0.0
        %2276 = vmatpush.xpose.msra.mxu0 0.0
        %2277 = vmatpush.xpose.msra.mxu0 0.0
        %2278 = vmatpush.xpose.msra.mxu0 0.0
        %2279 = vmatpush.xpose.msra.mxu0 0.0
        %2280 = vmatpush.xpose.msra.mxu0 0.0
        %2281 = vmatpush.xpose.msra.mxu0 0.0
        %2282 = vmatpush.xpose.msra.mxu0 0.0
        %2283 = vmatpush.xpose.msra.mxu0 0.0
        %2284 = vmatpush.xpose.msra.mxu0 0.0
        %2285 = vmatpush.xpose.msra.mxu0 0.0
        %2286 = vmatpush.xpose.msra.mxu0 0.0
        %v2287 = vand.u32 %v2194, 4294901760
        %2288 = vmatpush.xpose.msra.mxu0 %v2287
        %v2289 = vand.u32 %v2191, 4294901760
        %v2290 = vsub.f32 %v2191, %v2289
        %v2291 = vand.u32 %v2290, 4294901760
        %2292 = vmatmul.f32.gmra.mxu0 %v2291
        %v2293 = vpop.f32.mrf.mxu0
        %v2294 = vadd.f32 %v2270, %v2293
        %2295 = vdwg.mxu0
        %2296 = vmatpush.xpose.msra.mxu0 0.0
        %2297 = vmatpush.xpose.msra.mxu0 0.0
        %2298 = vmatpush.xpose.msra.mxu0 0.0
        %2299 = vmatpush.xpose.msra.mxu0 0.0
        %2300 = vmatpush.xpose.msra.mxu0 0.0
        %2301 = vmatpush.xpose.msra.mxu0 0.0
        %2302 = vmatpush.xpose.msra.mxu0 0.0
        %2303 = vmatpush.xpose.msra.mxu0 0.0
        %2304 = vmatpush.xpose.msra.mxu0 0.0
        %2305 = vmatpush.xpose.msra.mxu0 0.0
        %2306 = vmatpush.xpose.msra.mxu0 0.0
        %2307 = vmatpush.xpose.msra.mxu0 0.0
        %2308 = vmatpush.xpose.msra.mxu0 0.0
        %2309 = vmatpush.xpose.msra.mxu0 0.0
        %2310 = vmatpush.xpose.msra.mxu0 0.0
        %v2311 = vand.u32 %v2194, 4294901760
        %v2312 = vsub.f32 %v2194, %v2311
        %v2313 = vand.u32 %v2312, 4294901760
        %2314 = vmatpush.xpose.msra.mxu0 %v2313
        %v2315 = vand.u32 %v2191, 4294901760
        %2316 = vmatmul.f32.gmra.mxu0 %v2315
        %v2317 = vpop.f32.mrf.mxu0
        %v2318 = vadd.f32 %v2294, %v2317
        %2319 = vdwg.mxu0
        %2320 = vmatpush.xpose.msra.mxu0 0.0
        %2321 = vmatpush.xpose.msra.mxu0 0.0
        %2322 = vmatpush.xpose.msra.mxu0 0.0
        %2323 = vmatpush.xpose.msra.mxu0 0.0
        %2324 = vmatpush.xpose.msra.mxu0 0.0
        %2325 = vmatpush.xpose.msra.mxu0 0.0
        %2326 = vmatpush.xpose.msra.mxu0 0.0
        %2327 = vmatpush.xpose.msra.mxu0 0.0
        %2328 = vmatpush.xpose.msra.mxu0 0.0
        %2329 = vmatpush.xpose.msra.mxu0 0.0
        %2330 = vmatpush.xpose.msra.mxu0 0.0
        %2331 = vmatpush.xpose.msra.mxu0 0.0
        %2332 = vmatpush.xpose.msra.mxu0 0.0
        %2333 = vmatpush.xpose.msra.mxu0 0.0
        %2334 = vmatpush.xpose.msra.mxu0 0.0
        %v2335 = vand.u32 %v2194, 4294901760
        %2336 = vmatpush.xpose.msra.mxu0 %v2335
        %v2337 = vand.u32 %v2191, 4294901760
        %2338 = vmatmul.f32.gmra.mxu0 %v2337
        %v2339 = vpop.f32.mrf.mxu0
        %v2340 = vadd.f32 %v2318, %v2339
        %2341 = vdwg.mxu0
        %2342 = vxpose.xlu0.b32.start [1/16] %v1884, 128
        %2343 = vxpose.xlu0.b32.cont [2/16] 0.0, 128
        %2344 = vxpose.xlu0.b32.cont [3/16] 0.0, 128
        %2345 = vxpose.xlu0.b32.cont [4/16] 0.0, 128
        %2346 = vxpose.xlu0.b32.cont [5/16] 0.0, 128
        %2347 = vxpose.xlu0.b32.cont [6/16] 0.0, 128
        %2348 = vxpose.xlu0.b32.cont [7/16] 0.0, 128
        %2349 = vxpose.xlu0.b32.cont [8/16] 0.0, 128
        %2350 = vxpose.xlu0.b32.cont [9/16] 0.0, 128
        %2351 = vxpose.xlu0.b32.cont [10/16] 0.0, 128
        %2352 = vxpose.xlu0.b32.cont [11/16] 0.0, 128
        %2353 = vxpose.xlu0.b32.cont [12/16] 0.0, 128
        %2354 = vxpose.xlu0.b32.cont [13/16] 0.0, 128
        %2355 = vxpose.xlu0.b32.cont [14/16] 0.0, 128
        %2356 = vxpose.xlu0.b32.cont [15/16] 0.0, 128
        %2357 = vxpose.xlu0.b32.end [16/16] 0.0, 128
        %v2358 = vpop.trf.xlu0
        %v2359 = vpop.trf.xlu0
        %v2360 = vpop.trf.xlu0
        %v2361 = vpop.trf.xlu0
        %v2362 = vpop.trf.xlu0
        %v2363 = vpop.trf.xlu0
        %v2364 = vpop.trf.xlu0
        %v2365 = vpop.trf.xlu0
        %v2366 = vpop.trf.xlu0
        %v2367 = vpop.trf.xlu0
        %v2368 = vpop.trf.xlu0
        %v2369 = vpop.trf.xlu0
        %v2370 = vpop.trf.xlu0
        %v2371 = vpop.trf.xlu0
        %v2372 = vpop.trf.xlu0
        %v2373 = vpop.trf.xlu0
        %2374 = vxpose.xlu0.b32.start [1/16] %v2036, 128
        %2375 = vxpose.xlu0.b32.cont [2/16] 0.0, 128
        %2376 = vxpose.xlu0.b32.cont [3/16] 0.0, 128
        %2377 = vxpose.xlu0.b32.cont [4/16] 0.0, 128
        %2378 = vxpose.xlu0.b32.cont [5/16] 0.0, 128
        %2379 = vxpose.xlu0.b32.cont [6/16] 0.0, 128
        %2380 = vxpose.xlu0.b32.cont [7/16] 0.0, 128
        %2381 = vxpose.xlu0.b32.cont [8/16] 0.0, 128
        %2382 = vxpose.xlu0.b32.cont [9/16] 0.0, 128
        %2383 = vxpose.xlu0.b32.cont [10/16] 0.0, 128
        %2384 = vxpose.xlu0.b32.cont [11/16] 0.0, 128
        %2385 = vxpose.xlu0.b32.cont [12/16] 0.0, 128
        %2386 = vxpose.xlu0.b32.cont [13/16] 0.0, 128
        %2387 = vxpose.xlu0.b32.cont [14/16] 0.0, 128
        %2388 = vxpose.xlu0.b32.cont [15/16] 0.0, 128
        %2389 = vxpose.xlu0.b32.end [16/16] 0.0, 128
        %v2390 = vpop.trf.xlu0
        %v2391 = vpop.trf.xlu0
        %v2392 = vpop.trf.xlu0
        %v2393 = vpop.trf.xlu0
        %v2394 = vpop.trf.xlu0
        %v2395 = vpop.trf.xlu0
        %v2396 = vpop.trf.xlu0
        %v2397 = vpop.trf.xlu0
        %v2398 = vpop.trf.xlu0
        %v2399 = vpop.trf.xlu0
        %v2400 = vpop.trf.xlu0
        %v2401 = vpop.trf.xlu0
        %v2402 = vpop.trf.xlu0
        %v2403 = vpop.trf.xlu0
        %v2404 = vpop.trf.xlu0
        %v2405 = vpop.trf.xlu0
        %2406 = vxpose.xlu0.b32.start [1/16] %v2188, 128
        %2407 = vxpose.xlu0.b32.cont [2/16] 0.0, 128
        %2408 = vxpose.xlu0.b32.cont [3/16] 0.0, 128
        %2409 = vxpose.xlu0.b32.cont [4/16] 0.0, 128
        %2410 = vxpose.xlu0.b32.cont [5/16] 0.0, 128
        %2411 = vxpose.xlu0.b32.cont [6/16] 0.0, 128
        %2412 = vxpose.xlu0.b32.cont [7/16] 0.0, 128
        %2413 = vxpose.xlu0.b32.cont [8/16] 0.0, 128
        %2414 = vxpose.xlu0.b32.cont [9/16] 0.0, 128
        %2415 = vxpose.xlu0.b32.cont [10/16] 0.0, 128
        %2416 = vxpose.xlu0.b32.cont [11/16] 0.0, 128
        %2417 = vxpose.xlu0.b32.cont [12/16] 0.0, 128
        %2418 = vxpose.xlu0.b32.cont [13/16] 0.0, 128
        %2419 = vxpose.xlu0.b32.cont [14/16] 0.0, 128
        %2420 = vxpose.xlu0.b32.cont [15/16] 0.0, 128
        %2421 = vxpose.xlu0.b32.end [16/16] 0.0, 128
        %v2422 = vpop.trf.xlu0
        %v2423 = vpop.trf.xlu0
        %v2424 = vpop.trf.xlu0
        %v2425 = vpop.trf.xlu0
        %v2426 = vpop.trf.xlu0
        %v2427 = vpop.trf.xlu0
        %v2428 = vpop.trf.xlu0
        %v2429 = vpop.trf.xlu0
        %v2430 = vpop.trf.xlu0
        %v2431 = vpop.trf.xlu0
        %v2432 = vpop.trf.xlu0
        %v2433 = vpop.trf.xlu0
        %v2434 = vpop.trf.xlu0
        %v2435 = vpop.trf.xlu0
        %v2436 = vpop.trf.xlu0
        %v2437 = vpop.trf.xlu0
        %2438 = vxpose.xlu0.b32.start [1/16] %v2340, 128
        %2439 = vxpose.xlu0.b32.cont [2/16] 0.0, 128
        %2440 = vxpose.xlu0.b32.cont [3/16] 0.0, 128
        %2441 = vxpose.xlu0.b32.cont [4/16] 0.0, 128
        %2442 = vxpose.xlu0.b32.cont [5/16] 0.0, 128
        %2443 = vxpose.xlu0.b32.cont [6/16] 0.0, 128
        %2444 = vxpose.xlu0.b32.cont [7/16] 0.0, 128
        %2445 = vxpose.xlu0.b32.cont [8/16] 0.0, 128
        %2446 = vxpose.xlu0.b32.cont [9/16] 0.0, 128
        %2447 = vxpose.xlu0.b32.cont [10/16] 0.0, 128
        %2448 = vxpose.xlu0.b32.cont [11/16] 0.0, 128
        %2449 = vxpose.xlu0.b32.cont [12/16] 0.0, 128
        %2450 = vxpose.xlu0.b32.cont [13/16] 0.0, 128
        %2451 = vxpose.xlu0.b32.cont [14/16] 0.0, 128
        %2452 = vxpose.xlu0.b32.cont [15/16] 0.0, 128
        %2453 = vxpose.xlu0.b32.end [16/16] 0.0, 128
        %v2454 = vpop.trf.xlu0
        %v2455 = vpop.trf.xlu0
        %v2456 = vpop.trf.xlu0
        %v2457 = vpop.trf.xlu0
        %v2458 = vpop.trf.xlu0
        %v2459 = vpop.trf.xlu0
        %v2460 = vpop.trf.xlu0
        %v2461 = vpop.trf.xlu0
        %v2462 = vpop.trf.xlu0
        %v2463 = vpop.trf.xlu0
        %v2464 = vpop.trf.xlu0
        %v2465 = vpop.trf.xlu0
        %v2466 = vpop.trf.xlu0
        %v2467 = vpop.trf.xlu0
        %v2468 = vpop.trf.xlu0
        %v2469 = vpop.trf.xlu0
        %2470 = vxpose.xlu0.b32.start [1/16] %v2358, 128
        %2471 = vxpose.xlu0.b32.cont [2/16] %v2390, 128
        %2472 = vxpose.xlu0.b32.cont [3/16] %v2422, 128
        %2473 = vxpose.xlu0.b32.cont [4/16] %v2454, 128
        %2474 = vxpose.xlu0.b32.cont [5/16] 0.0, 128
        %2475 = vxpose.xlu0.b32.cont [6/16] 0.0, 128
        %2476 = vxpose.xlu0.b32.cont [7/16] 0.0, 128
        %2477 = vxpose.xlu0.b32.cont [8/16] 0.0, 128
        %2478 = vxpose.xlu0.b32.cont [9/16] 0.0, 128
        %2479 = vxpose.xlu0.b32.cont [10/16] 0.0, 128
        %2480 = vxpose.xlu0.b32.cont [11/16] 0.0, 128
        %2481 = vxpose.xlu0.b32.cont [12/16] 0.0, 128
        %2482 = vxpose.xlu0.b32.cont [13/16] 0.0, 128
        %2483 = vxpose.xlu0.b32.cont [14/16] 0.0, 128
        %2484 = vxpose.xlu0.b32.cont [15/16] 0.0, 128
        %2485 = vxpose.xlu0.b32.end [16/16] 0.0, 128
        %v2486 = vpop.trf.xlu0
        %v2487 = vpop.trf.xlu0
        %v2488 = vpop.trf.xlu0
        %v2489 = vpop.trf.xlu0
        %v2490 = vpop.trf.xlu0
        %v2491 = vpop.trf.xlu0
        %v2492 = vpop.trf.xlu0
        %v2493 = vpop.trf.xlu0
        %v2494 = vpop.trf.xlu0
        %v2495 = vpop.trf.xlu0
        %v2496 = vpop.trf.xlu0
        %v2497 = vpop.trf.xlu0
        %v2498 = vpop.trf.xlu0
        %v2499 = vpop.trf.xlu0
        %v2500 = vpop.trf.xlu0
        %v2501 = vpop.trf.xlu0
        %v2502 = vld [vmem:[%s635] sm:$0xff]
        %v2503 = vld [vmem:[%s635 + $0x8] sm:$0xff]
        %v2504 = vld [vmem:[%s635 + $0x10] sm:$0xff]
        %v2505 = vld [vmem:[%s635 + $0x18] sm:$0xff]
        %v2506 = vld [vmem:[%s638] sm:$0x1]
        %v2508 = vperm.slane %v2506, 0
        %v2511 = vsel %vm683, %v2486, 0
        %2513 = vmatpush.msra.mxu0 0.0
        %2514 = vmatpush.msra.mxu0 0.0
        %2515 = vmatpush.msra.mxu0 0.0
        %2516 = vmatpush.msra.mxu0 0.0
        %2517 = vmatpush.msra.mxu0 0.0
        %2518 = vmatpush.msra.mxu0 0.0
        %2519 = vmatpush.msra.mxu0 0.0
        %2520 = vmatpush.msra.mxu0 0.0
        %2521 = vmatpush.msra.mxu0 0.0
        %2522 = vmatpush.msra.mxu0 0.0
        %2523 = vmatpush.msra.mxu0 0.0
        %2524 = vmatpush.msra.mxu0 0.0
        %v2525 = vand.u32 %v2505, 4294901760
        %2526 = vmatpush.msra.mxu0 %v2525
        %v2527 = vand.u32 %v2504, 4294901760
        %2528 = vmatpush.msra.mxu0 %v2527
        %v2529 = vand.u32 %v2503, 4294901760
        %2530 = vmatpush.msra.mxu0 %v2529
        %v2531 = vand.u32 %v2502, 4294901760
        %2532 = vmatpush.msra.mxu0 %v2531
        %v2533 = vand.u32 %v2511, 4294901760
        %v2534 = vsub.f32 %v2511, %v2533
        %v2535 = vand.u32 %v2534, 4294901760
        %v2536 = vsub.f32 %v2534, %v2535
        %v2537 = vand.u32 %v2536, 4294901760
        %2538 = vmatmul.f32.gmra.mxu0 %v2537
        %v2539 = vpop.f32.mrf.mxu0
        %v2540 = vadd.f32 %v2508, %v2539
        %2541 = vdwg.mxu0
        %2542 = vmatpush.msra.mxu0 0.0
        %2543 = vmatpush.msra.mxu0 0.0
        %2544 = vmatpush.msra.mxu0 0.0
        %2545 = vmatpush.msra.mxu0 0.0
        %2546 = vmatpush.msra.mxu0 0.0
        %2547 = vmatpush.msra.mxu0 0.0
        %2548 = vmatpush.msra.mxu0 0.0
        %2549 = vmatpush.msra.mxu0 0.0
        %2550 = vmatpush.msra.mxu0 0.0
        %2551 = vmatpush.msra.mxu0 0.0
        %2552 = vmatpush.msra.mxu0 0.0
        %2553 = vmatpush.msra.mxu0 0.0
        %v2554 = vand.u32 %v2505, 4294901760
        %v2555 = vsub.f32 %v2505, %v2554
        %v2556 = vand.u32 %v2555, 4294901760
        %v2557 = vsub.f32 %v2555, %v2556
        %v2558 = vand.u32 %v2557, 4294901760
        %2559 = vmatpush.msra.mxu0 %v2558
        %v2560 = vand.u32 %v2504, 4294901760
        %v2561 = vsub.f32 %v2504, %v2560
        %v2562 = vand.u32 %v2561, 4294901760
        %v2563 = vsub.f32 %v2561, %v2562
        %v2564 = vand.u32 %v2563, 4294901760
        %2565 = vmatpush.msra.mxu0 %v2564
        %v2566 = vand.u32 %v2503, 4294901760
        %v2567 = vsub.f32 %v2503, %v2566
        %v2568 = vand.u32 %v2567, 4294901760
        %v2569 = vsub.f32 %v2567, %v2568
        %v2570 = vand.u32 %v2569, 4294901760
        %2571 = vmatpush.msra.mxu0 %v2570
        %v2572 = vand.u32 %v2502, 4294901760
        %v2573 = vsub.f32 %v2502, %v2572
        %v2574 = vand.u32 %v2573, 4294901760
        %v2575 = vsub.f32 %v2573, %v2574
        %v2576 = vand.u32 %v2575, 4294901760
        %2577 = vmatpush.msra.mxu0 %v2576
        %v2578 = vand.u32 %v2511, 4294901760
        %2579 = vmatmul.f32.gmra.mxu0 %v2578
        %v2580 = vpop.f32.mrf.mxu0
        %v2581 = vadd.f32 %v2540, %v2580
        %2582 = vdwg.mxu0
        %2583 = vmatpush.msra.mxu0 0.0
        %2584 = vmatpush.msra.mxu0 0.0
        %2585 = vmatpush.msra.mxu0 0.0
        %2586 = vmatpush.msra.mxu0 0.0
        %2587 = vmatpush.msra.mxu0 0.0
        %2588 = vmatpush.msra.mxu0 0.0
        %2589 = vmatpush.msra.mxu0 0.0
        %2590 = vmatpush.msra.mxu0 0.0
        %2591 = vmatpush.msra.mxu0 0.0
        %2592 = vmatpush.msra.mxu0 0.0
        %2593 = vmatpush.msra.mxu0 0.0
        %2594 = vmatpush.msra.mxu0 0.0
        %v2595 = vand.u32 %v2505, 4294901760
        %v2596 = vsub.f32 %v2505, %v2595
        %2597 = vmatpush.msra.mxu0 %v2596
        %v2598 = vand.u32 %v2504, 4294901760
        %v2599 = vsub.f32 %v2504, %v2598
        %2600 = vmatpush.msra.mxu0 %v2599
        %v2601 = vand.u32 %v2503, 4294901760
        %v2602 = vsub.f32 %v2503, %v2601
        %2603 = vmatpush.msra.mxu0 %v2602
        %v2604 = vand.u32 %v2502, 4294901760
        %v2605 = vsub.f32 %v2502, %v2604
        %2606 = vmatpush.msra.mxu0 %v2605
        %v2607 = vand.u32 %v2511, 4294901760
        %v2608 = vsub.f32 %v2511, %v2607
        %2609 = vmatmul.f32.gmra.mxu0 %v2608
        %v2610 = vpop.f32.mrf.mxu0
        %v2611 = vadd.f32 %v2581, %v2610
        %2612 = vdwg.mxu0
        %2613 = vmatpush.msra.mxu0 0.0
        %2614 = vmatpush.msra.mxu0 0.0
        %2615 = vmatpush.msra.mxu0 0.0
        %2616 = vmatpush.msra.mxu0 0.0
        %2617 = vmatpush.msra.mxu0 0.0
        %2618 = vmatpush.msra.mxu0 0.0
        %2619 = vmatpush.msra.mxu0 0.0
        %2620 = vmatpush.msra.mxu0 0.0
        %2621 = vmatpush.msra.mxu0 0.0
        %2622 = vmatpush.msra.mxu0 0.0
        %2623 = vmatpush.msra.mxu0 0.0
        %2624 = vmatpush.msra.mxu0 0.0
        %v2625 = vand.u32 %v2505, 4294901760
        %2626 = vmatpush.msra.mxu0 %v2625
        %v2627 = vand.u32 %v2504, 4294901760
        %2628 = vmatpush.msra.mxu0 %v2627
        %v2629 = vand.u32 %v2503, 4294901760
        %2630 = vmatpush.msra.mxu0 %v2629
        %v2631 = vand.u32 %v2502, 4294901760
        %2632 = vmatpush.msra.mxu0 %v2631
        %v2633 = vand.u32 %v2511, 4294901760
        %v2634 = vsub.f32 %v2511, %v2633
        %v2635 = vand.u32 %v2634, 4294901760
        %2636 = vmatmul.f32.gmra.mxu0 %v2635
        %v2637 = vpop.f32.mrf.mxu0
        %v2638 = vadd.f32 %v2611, %v2637
        %2639 = vdwg.mxu0
        %2640 = vmatpush.msra.mxu0 0.0
        %2641 = vmatpush.msra.mxu0 0.0
        %2642 = vmatpush.msra.mxu0 0.0
        %2643 = vmatpush.msra.mxu0 0.0
        %2644 = vmatpush.msra.mxu0 0.0
        %2645 = vmatpush.msra.mxu0 0.0
        %2646 = vmatpush.msra.mxu0 0.0
        %2647 = vmatpush.msra.mxu0 0.0
        %2648 = vmatpush.msra.mxu0 0.0
        %2649 = vmatpush.msra.mxu0 0.0
        %2650 = vmatpush.msra.mxu0 0.0
        %2651 = vmatpush.msra.mxu0 0.0
        %v2652 = vand.u32 %v2505, 4294901760
        %v2653 = vsub.f32 %v2505, %v2652
        %v2654 = vand.u32 %v2653, 4294901760
        %2655 = vmatpush.msra.mxu0 %v2654
        %v2656 = vand.u32 %v2504, 4294901760
        %v2657 = vsub.f32 %v2504, %v2656
        %v2658 = vand.u32 %v2657, 4294901760
        %2659 = vmatpush.msra.mxu0 %v2658
        %v2660 = vand.u32 %v2503, 4294901760
        %v2661 = vsub.f32 %v2503, %v2660
        %v2662 = vand.u32 %v2661, 4294901760
        %2663 = vmatpush.msra.mxu0 %v2662
        %v2664 = vand.u32 %v2502, 4294901760
        %v2665 = vsub.f32 %v2502, %v2664
        %v2666 = vand.u32 %v2665, 4294901760
        %2667 = vmatpush.msra.mxu0 %v2666
        %v2668 = vand.u32 %v2511, 4294901760
        %2669 = vmatmul.f32.gmra.mxu0 %v2668
        %v2670 = vpop.f32.mrf.mxu0
        %v2671 = vadd.f32 %v2638, %v2670
        %2672 = vdwg.mxu0
        %2673 = vmatpush.msra.mxu0 0.0
        %2674 = vmatpush.msra.mxu0 0.0
        %2675 = vmatpush.msra.mxu0 0.0
        %2676 = vmatpush.msra.mxu0 0.0
        %2677 = vmatpush.msra.mxu0 0.0
        %2678 = vmatpush.msra.mxu0 0.0
        %2679 = vmatpush.msra.mxu0 0.0
        %2680 = vmatpush.msra.mxu0 0.0
        %2681 = vmatpush.msra.mxu0 0.0
        %2682 = vmatpush.msra.mxu0 0.0
        %2683 = vmatpush.msra.mxu0 0.0
        %2684 = vmatpush.msra.mxu0 0.0
        %v2685 = vand.u32 %v2505, 4294901760
        %2686 = vmatpush.msra.mxu0 %v2685
        %v2687 = vand.u32 %v2504, 4294901760
        %2688 = vmatpush.msra.mxu0 %v2687
        %v2689 = vand.u32 %v2503, 4294901760
        %2690 = vmatpush.msra.mxu0 %v2689
        %v2691 = vand.u32 %v2502, 4294901760
        %2692 = vmatpush.msra.mxu0 %v2691
        %v2693 = vand.u32 %v2511, 4294901760
        %2694 = vmatmul.f32.gmra.mxu0 %v2693
        %v2695 = vpop.f32.mrf.mxu0
        %v2696 = vadd.f32 %v2671, %v2695
        %2697 = vdwg.mxu0
        %v2698 = vadd.f32 %v674, %v2696
        %v2699 = vsel %vm683, %v2698, 0.0
        %2700 = vadd.xlane.f32.xlu0 %v2699
        %v2701 = vpop.xlane.xlu0 %2700
        %v2702 = vrcp.pop 32.0
        %v2703 = vmul.f32 32.0, %v2702
        %v2704 = vsub.f32 1.0, %v2703
        %v2705 = vmul.f32 %v2702, %v2704
        %v2706 = vadd.f32 %v2702, %v2705
        %vm2707 = vweird.f32 %v2702
        %v2708 = vsel %vm2707, %v2702, %v2706
        %v2709 = vmul.f32 %v2701, %v2708
        %v2710 = vsub.f32 %v2698, %v2709
        %v2711 = vmul.f32 %v2710, %v2710
        %v2712 = vsel %vm683, %v2711, 0.0
        %2713 = vadd.xlane.f32.xlu0 %v2712
        %v2714 = vpop.xlane.xlu0 %2713
        %v2715 = vmul.f32 %v2714, %v2708
        %v2716 = vadd.f32 %v2715, 1e-05
        %v2717 = vrsqrt.pop %v2716
        %v2718 = vmul.f32 %v2717, %v2716
        %v2719 = vmul.f32 %v2718, %v2717
        %v2720 = vmul.f32 0.5, %v2719
        %v2721 = vsub.f32 1.5, %v2720
        %v2722 = vmul.f32 %v2717, %v2721
        %vm2723 = vweird.f32 %v2716
        %vm2724 = vweird.f32 %v2717
        %vm2725 = vmor %vm2723, %vm2724
        %v2726 = vsel %vm2725, %v2717, %v2722
        %v2727 = vmul.f32 %v2710, %v2726
        %v2728 = vld [vmem:[%s641] sm:$0x1]
        %v2730 = vperm.slane %v2728, 0
        %v2732 = vmul.f32 %v2727, %v2730
        %v2733 = vld [vmem:[%s644] sm:$0x1]
        %v2735 = vperm.slane %v2733, 0
        %v2737 = vadd.f32 %v2732, %v2735
        %v2738 = vld [vmem:[%s649] sm:$0xff]
        %v2739 = vld [vmem:[%s649 + $0x8] sm:$0xff]
        %v2740 = vld [vmem:[%s649 + $0x10] sm:$0xff]
        %v2741 = vld [vmem:[%s649 + $0x18] sm:$0xff]
        %v2742 = vld [vmem:[%s652] sm:$0x1]
        %v2744 = vperm.slane %v2742, 0
        %v2747 = vsel %vm683, %v2737, 0
        %2749 = vmatpush.msra.mxu0 0.0
        %2750 = vmatpush.msra.mxu0 0.0
        %2751 = vmatpush.msra.mxu0 0.0
        %2752 = vmatpush.msra.mxu0 0.0
        %2753 = vmatpush.msra.mxu0 0.0
        %2754 = vmatpush.msra.mxu0 0.0
        %2755 = vmatpush.msra.mxu0 0.0
        %2756 = vmatpush.msra.mxu0 0.0
        %2757 = vmatpush.msra.mxu0 0.0
        %2758 = vmatpush.msra.mxu0 0.0
        %2759 = vmatpush.msra.mxu0 0.0
        %2760 = vmatpush.msra.mxu0 0.0
        %v2761 = vand.u32 %v2741, 4294901760
        %2762 = vmatpush.msra.mxu0 %v2761
        %v2763 = vand.u32 %v2740, 4294901760
        %2764 = vmatpush.msra.mxu0 %v2763
        %v2765 = vand.u32 %v2739, 4294901760
        %2766 = vmatpush.msra.mxu0 %v2765
        %v2767 = vand.u32 %v2738, 4294901760
        %2768 = vmatpush.msra.mxu0 %v2767
        %v2769 = vand.u32 %v2747, 4294901760
        %v2770 = vsub.f32 %v2747, %v2769
        %v2771 = vand.u32 %v2770, 4294901760
        %v2772 = vsub.f32 %v2770, %v2771
        %v2773 = vand.u32 %v2772, 4294901760
        %2774 = vmatmul.f32.gmra.mxu0 %v2773
        %v2775 = vpop.f32.mrf.mxu0
        %v2776 = vadd.f32 %v2744, %v2775
        %2777 = vdwg.mxu0
        %2778 = vmatpush.msra.mxu0 0.0
        %2779 = vmatpush.msra.mxu0 0.0
        %2780 = vmatpush.msra.mxu0 0.0
        %2781 = vmatpush.msra.mxu0 0.0
        %2782 = vmatpush.msra.mxu0 0.0
        %2783 = vmatpush.msra.mxu0 0.0
        %2784 = vmatpush.msra.mxu0 0.0
        %2785 = vmatpush.msra.mxu0 0.0
        %2786 = vmatpush.msra.mxu0 0.0
        %2787 = vmatpush.msra.mxu0 0.0
        %2788 = vmatpush.msra.mxu0 0.0
        %2789 = vmatpush.msra.mxu0 0.0
        %v2790 = vand.u32 %v2741, 4294901760
        %v2791 = vsub.f32 %v2741, %v2790
        %v2792 = vand.u32 %v2791, 4294901760
        %v2793 = vsub.f32 %v2791, %v2792
        %v2794 = vand.u32 %v2793, 4294901760
        %2795 = vmatpush.msra.mxu0 %v2794
        %v2796 = vand.u32 %v2740, 4294901760
        %v2797 = vsub.f32 %v2740, %v2796
        %v2798 = vand.u32 %v2797, 4294901760
        %v2799 = vsub.f32 %v2797, %v2798
        %v2800 = vand.u32 %v2799, 4294901760
        %2801 = vmatpush.msra.mxu0 %v2800
        %v2802 = vand.u32 %v2739, 4294901760
        %v2803 = vsub.f32 %v2739, %v2802
        %v2804 = vand.u32 %v2803, 4294901760
        %v2805 = vsub.f32 %v2803, %v2804
        %v2806 = vand.u32 %v2805, 4294901760
        %2807 = vmatpush.msra.mxu0 %v2806
        %v2808 = vand.u32 %v2738, 4294901760
        %v2809 = vsub.f32 %v2738, %v2808
        %v2810 = vand.u32 %v2809, 4294901760
        %v2811 = vsub.f32 %v2809, %v2810
        %v2812 = vand.u32 %v2811, 4294901760
        %2813 = vmatpush.msra.mxu0 %v2812
        %v2814 = vand.u32 %v2747, 4294901760
        %2815 = vmatmul.f32.gmra.mxu0 %v2814
        %v2816 = vpop.f32.mrf.mxu0
        %v2817 = vadd.f32 %v2776, %v2816
        %2818 = vdwg.mxu0
        %2819 = vmatpush.msra.mxu0 0.0
        %2820 = vmatpush.msra.mxu0 0.0
        %2821 = vmatpush.msra.mxu0 0.0
        %2822 = vmatpush.msra.mxu0 0.0
        %2823 = vmatpush.msra.mxu0 0.0
        %2824 = vmatpush.msra.mxu0 0.0
        %2825 = vmatpush.msra.mxu0 0.0
        %2826 = vmatpush.msra.mxu0 0.0
        %2827 = vmatpush.msra.mxu0 0.0
        %2828 = vmatpush.msra.mxu0 0.0
        %2829 = vmatpush.msra.mxu0 0.0
        %2830 = vmatpush.msra.mxu0 0.0
        %v2831 = vand.u32 %v2741, 4294901760
        %v2832 = vsub.f32 %v2741, %v2831
        %2833 = vmatpush.msra.mxu0 %v2832
        %v2834 = vand.u32 %v2740, 4294901760
        %v2835 = vsub.f32 %v2740, %v2834
        %2836 = vmatpush.msra.mxu0 %v2835
        %v2837 = vand.u32 %v2739, 4294901760
        %v2838 = vsub.f32 %v2739, %v2837
        %2839 = vmatpush.msra.mxu0 %v2838
        %v2840 = vand.u32 %v2738, 4294901760
        %v2841 = vsub.f32 %v2738, %v2840
        %2842 = vmatpush.msra.mxu0 %v2841
        %v2843 = vand.u32 %v2747, 4294901760
        %v2844 = vsub.f32 %v2747, %v2843
        %2845 = vmatmul.f32.gmra.mxu0 %v2844
        %v2846 = vpop.f32.mrf.mxu0
        %v2847 = vadd.f32 %v2817, %v2846
        %2848 = vdwg.mxu0
        %2849 = vmatpush.msra.mxu0 0.0
        %2850 = vmatpush.msra.mxu0 0.0
        %2851 = vmatpush.msra.mxu0 0.0
        %2852 = vmatpush.msra.mxu0 0.0
        %2853 = vmatpush.msra.mxu0 0.0
        %2854 = vmatpush.msra.mxu0 0.0
        %2855 = vmatpush.msra.mxu0 0.0
        %2856 = vmatpush.msra.mxu0 0.0
        %2857 = vmatpush.msra.mxu0 0.0
        %2858 = vmatpush.msra.mxu0 0.0
        %2859 = vmatpush.msra.mxu0 0.0
        %2860 = vmatpush.msra.mxu0 0.0
        %v2861 = vand.u32 %v2741, 4294901760
        %2862 = vmatpush.msra.mxu0 %v2861
        %v2863 = vand.u32 %v2740, 4294901760
        %2864 = vmatpush.msra.mxu0 %v2863
        %v2865 = vand.u32 %v2739, 4294901760
        %2866 = vmatpush.msra.mxu0 %v2865
        %v2867 = vand.u32 %v2738, 4294901760
        %2868 = vmatpush.msra.mxu0 %v2867
        %v2869 = vand.u32 %v2747, 4294901760
        %v2870 = vsub.f32 %v2747, %v2869
        %v2871 = vand.u32 %v2870, 4294901760
        %2872 = vmatmul.f32.gmra.mxu0 %v2871
        %v2873 = vpop.f32.mrf.mxu0
        %v2874 = vadd.f32 %v2847, %v2873
        %2875 = vdwg.mxu0
        %2876 = vmatpush.msra.mxu0 0.0
        %2877 = vmatpush.msra.mxu0 0.0
        %2878 = vmatpush.msra.mxu0 0.0
        %2879 = vmatpush.msra.mxu0 0.0
        %2880 = vmatpush.msra.mxu0 0.0
        %2881 = vmatpush.msra.mxu0 0.0
        %2882 = vmatpush.msra.mxu0 0.0
        %2883 = vmatpush.msra.mxu0 0.0
        %2884 = vmatpush.msra.mxu0 0.0
        %2885 = vmatpush.msra.mxu0 0.0
        %2886 = vmatpush.msra.mxu0 0.0
        %2887 = vmatpush.msra.mxu0 0.0
        %v2888 = vand.u32 %v2741, 4294901760
        %v2889 = vsub.f32 %v2741, %v2888
        %v2890 = vand.u32 %v2889, 4294901760
        %2891 = vmatpush.msra.mxu0 %v2890
        %v2892 = vand.u32 %v2740, 4294901760
        %v2893 = vsub.f32 %v2740, %v2892
        %v2894 = vand.u32 %v2893, 4294901760
        %2895 = vmatpush.msra.mxu0 %v2894
        %v2896 = vand.u32 %v2739, 4294901760
        %v2897 = vsub.f32 %v2739, %v2896
        %v2898 = vand.u32 %v2897, 4294901760
        %2899 = vmatpush.msra.mxu0 %v2898
        %v2900 = vand.u32 %v2738, 4294901760
        %v2901 = vsub.f32 %v2738, %v2900
        %v2902 = vand.u32 %v2901, 4294901760
        %2903 = vmatpush.msra.mxu0 %v2902
        %v2904 = vand.u32 %v2747, 4294901760
        %2905 = vmatmul.f32.gmra.mxu0 %v2904
        %v2906 = vpop.f32.mrf.mxu0
        %v2907 = vadd.f32 %v2874, %v2906
        %2908 = vdwg.mxu0
        %2909 = vmatpush.msra.mxu0 0.0
        %2910 = vmatpush.msra.mxu0 0.0
        %2911 = vmatpush.msra.mxu0 0.0
        %2912 = vmatpush.msra.mxu0 0.0
        %2913 = vmatpush.msra.mxu0 0.0
        %2914 = vmatpush.msra.mxu0 0.0
        %2915 = vmatpush.msra.mxu0 0.0
        %2916 = vmatpush.msra.mxu0 0.0
        %2917 = vmatpush.msra.mxu0 0.0
        %2918 = vmatpush.msra.mxu0 0.0
        %2919 = vmatpush.msra.mxu0 0.0
        %2920 = vmatpush.msra.mxu0 0.0
        %v2921 = vand.u32 %v2741, 4294901760
        %2922 = vmatpush.msra.mxu0 %v2921
        %v2923 = vand.u32 %v2740, 4294901760
        %2924 = vmatpush.msra.mxu0 %v2923
        %v2925 = vand.u32 %v2739, 4294901760
        %2926 = vmatpush.msra.mxu0 %v2925
        %v2927 = vand.u32 %v2738, 4294901760
        %2928 = vmatpush.msra.mxu0 %v2927
        %v2929 = vand.u32 %v2747, 4294901760
        %2930 = vmatmul.f32.gmra.mxu0 %v2929
        %v2931 = vpop.f32.mrf.mxu0
        %v2932 = vadd.f32 %v2907, %v2931
        %2933 = vdwg.mxu0
        %v2934 = vmax.f32 %v2932, 0.0
        %v2935 = vld [vmem:[%s657] sm:$0xff]
        %v2936 = vld [vmem:[%s657 + $0x8] sm:$0xff]
        %v2937 = vld [vmem:[%s657 + $0x10] sm:$0xff]
        %v2938 = vld [vmem:[%s657 + $0x18] sm:$0xff]
        %v2939 = vld [vmem:[%s657 + $0x20] sm:$0xff]
        %v2940 = vld [vmem:[%s657 + $0x28] sm:$0xff]
        %v2941 = vld [vmem:[%s657 + $0x30] sm:$0xff]
        %v2942 = vld [vmem:[%s657 + $0x38] sm:$0xff]
        %v2943 = vld [vmem:[%s657 + $0x40] sm:$0xff]
        %v2944 = vld [vmem:[%s657 + $0x48] sm:$0xff]
        %v2945 = vld [vmem:[%s657 + $0x50] sm:$0xff]
        %v2946 = vld [vmem:[%s657 + $0x58] sm:$0xff]
        %v2947 = vld [vmem:[%s657 + $0x60] sm:$0xff]
        %v2948 = vld [vmem:[%s657 + $0x68] sm:$0xff]
        %v2949 = vld [vmem:[%s657 + $0x70] sm:$0xff]
        %v2950 = vld [vmem:[%s657 + $0x78] sm:$0xff]
        %v2951 = vld [vmem:[%s660] sm:$0x1]
        %v2953 = vperm.slane %v2951, 0
        %v2955 = vand.u32 %v2950, 4294901760
        %2956 = vmatpush.msra.mxu0 %v2955
        %v2957 = vand.u32 %v2949, 4294901760
        %2958 = vmatpush.msra.mxu0 %v2957
        %v2959 = vand.u32 %v2948, 4294901760
        %2960 = vmatpush.msra.mxu0 %v2959
        %v2961 = vand.u32 %v2947, 4294901760
        %2962 = vmatpush.msra.mxu0 %v2961
        %v2963 = vand.u32 %v2946, 4294901760
        %2964 = vmatpush.msra.mxu0 %v2963
        %v2965 = vand.u32 %v2945, 4294901760
        %2966 = vmatpush.msra.mxu0 %v2965
        %v2967 = vand.u32 %v2944, 4294901760
        %2968 = vmatpush.msra.mxu0 %v2967
        %v2969 = vand.u32 %v2943, 4294901760
        %2970 = vmatpush.msra.mxu0 %v2969
        %v2971 = vand.u32 %v2942, 4294901760
        %2972 = vmatpush.msra.mxu0 %v2971
        %v2973 = vand.u32 %v2941, 4294901760
        %2974 = vmatpush.msra.mxu0 %v2973
        %v2975 = vand.u32 %v2940, 4294901760
        %2976 = vmatpush.msra.mxu0 %v2975
        %v2977 = vand.u32 %v2939, 4294901760
        %2978 = vmatpush.msra.mxu0 %v2977
        %v2979 = vand.u32 %v2938, 4294901760
        %2980 = vmatpush.msra.mxu0 %v2979
        %v2981 = vand.u32 %v2937, 4294901760
        %2982 = vmatpush.msra.mxu0 %v2981
        %v2983 = vand.u32 %v2936, 4294901760
        %2984 = vmatpush.msra.mxu0 %v2983
        %v2985 = vand.u32 %v2935, 4294901760
        %2986 = vmatpush.msra.mxu0 %v2985
        %v2987 = vand.u32 %v2934, 4294901760
        %v2988 = vsub.f32 %v2934, %v2987
        %v2989 = vand.u32 %v2988, 4294901760
        %v2990 = vsub.f32 %v2988, %v2989
        %v2991 = vand.u32 %v2990, 4294901760
        %2992 = vmatmul.f32.gmra.mxu0 %v2991
        %v2993 = vpop.f32.mrf.mxu0
        %v2994 = vadd.f32 %v2953, %v2993
        %2995 = vdwg.mxu0
        %v2996 = vand.u32 %v2950, 4294901760
        %v2997 = vsub.f32 %v2950, %v2996
        %v2998 = vand.u32 %v2997, 4294901760
        %v2999 = vsub.f32 %v2997, %v2998
        %v3000 = vand.u32 %v2999, 4294901760
        %3001 = vmatpush.msra.mxu0 %v3000
        %v3002 = vand.u32 %v2949, 4294901760
        %v3003 = vsub.f32 %v2949, %v3002
        %v3004 = vand.u32 %v3003, 4294901760
        %v3005 = vsub.f32 %v3003, %v3004
        %v3006 = vand.u32 %v3005, 4294901760
        %3007 = vmatpush.msra.mxu0 %v3006
        %v3008 = vand.u32 %v2948, 4294901760
        %v3009 = vsub.f32 %v2948, %v3008
        %v3010 = vand.u32 %v3009, 4294901760
        %v3011 = vsub.f32 %v3009, %v3010
        %v3012 = vand.u32 %v3011, 4294901760
        %3013 = vmatpush.msra.mxu0 %v3012
        %v3014 = vand.u32 %v2947, 4294901760
        %v3015 = vsub.f32 %v2947, %v3014
        %v3016 = vand.u32 %v3015, 4294901760
        %v3017 = vsub.f32 %v3015, %v3016
        %v3018 = vand.u32 %v3017, 4294901760
        %3019 = vmatpush.msra.mxu0 %v3018
        %v3020 = vand.u32 %v2946, 4294901760
        %v3021 = vsub.f32 %v2946, %v3020
        %v3022 = vand.u32 %v3021, 4294901760
        %v3023 = vsub.f32 %v3021, %v3022
        %v3024 = vand.u32 %v3023, 4294901760
        %3025 = vmatpush.msra.mxu0 %v3024
        %v3026 = vand.u32 %v2945, 4294901760
        %v3027 = vsub.f32 %v2945, %v3026
        %v3028 = vand.u32 %v3027, 4294901760
        %v3029 = vsub.f32 %v3027, %v3028
        %v3030 = vand.u32 %v3029, 4294901760
        %3031 = vmatpush.msra.mxu0 %v3030
        %v3032 = vand.u32 %v2944, 4294901760
        %v3033 = vsub.f32 %v2944, %v3032
        %v3034 = vand.u32 %v3033, 4294901760
        %v3035 = vsub.f32 %v3033, %v3034
        %v3036 = vand.u32 %v3035, 4294901760
        %3037 = vmatpush.msra.mxu0 %v3036
        %v3038 = vand.u32 %v2943, 4294901760
        %v3039 = vsub.f32 %v2943, %v3038
        %v3040 = vand.u32 %v3039, 4294901760
        %v3041 = vsub.f32 %v3039, %v3040
        %v3042 = vand.u32 %v3041, 4294901760
        %3043 = vmatpush.msra.mxu0 %v3042
        %v3044 = vand.u32 %v2942, 4294901760
        %v3045 = vsub.f32 %v2942, %v3044
        %v3046 = vand.u32 %v3045, 4294901760
        %v3047 = vsub.f32 %v3045, %v3046
        %v3048 = vand.u32 %v3047, 4294901760
        %3049 = vmatpush.msra.mxu0 %v3048
        %v3050 = vand.u32 %v2941, 4294901760
        %v3051 = vsub.f32 %v2941, %v3050
        %v3052 = vand.u32 %v3051, 4294901760
        %v3053 = vsub.f32 %v3051, %v3052
        %v3054 = vand.u32 %v3053, 4294901760
        %3055 = vmatpush.msra.mxu0 %v3054
        %v3056 = vand.u32 %v2940, 4294901760
        %v3057 = vsub.f32 %v2940, %v3056
        %v3058 = vand.u32 %v3057, 4294901760
        %v3059 = vsub.f32 %v3057, %v3058
        %v3060 = vand.u32 %v3059, 4294901760
        %3061 = vmatpush.msra.mxu0 %v3060
        %v3062 = vand.u32 %v2939, 4294901760
        %v3063 = vsub.f32 %v2939, %v3062
        %v3064 = vand.u32 %v3063, 4294901760
        %v3065 = vsub.f32 %v3063, %v3064
        %v3066 = vand.u32 %v3065, 4294901760
        %3067 = vmatpush.msra.mxu0 %v3066
        %v3068 = vand.u32 %v2938, 4294901760
        %v3069 = vsub.f32 %v2938, %v3068
        %v3070 = vand.u32 %v3069, 4294901760
        %v3071 = vsub.f32 %v3069, %v3070
        %v3072 = vand.u32 %v3071, 4294901760
        %3073 = vmatpush.msra.mxu0 %v3072
        %v3074 = vand.u32 %v2937, 4294901760
        %v3075 = vsub.f32 %v2937, %v3074
        %v3076 = vand.u32 %v3075, 4294901760
        %v3077 = vsub.f32 %v3075, %v3076
        %v3078 = vand.u32 %v3077, 4294901760
        %3079 = vmatpush.msra.mxu0 %v3078
        %v3080 = vand.u32 %v2936, 4294901760
        %v3081 = vsub.f32 %v2936, %v3080
        %v3082 = vand.u32 %v3081, 4294901760
        %v3083 = vsub.f32 %v3081, %v3082
        %v3084 = vand.u32 %v3083, 4294901760
        %3085 = vmatpush.msra.mxu0 %v3084
        %v3086 = vand.u32 %v2935, 4294901760
        %v3087 = vsub.f32 %v2935, %v3086
        %v3088 = vand.u32 %v3087, 4294901760
        %v3089 = vsub.f32 %v3087, %v3088
        %v3090 = vand.u32 %v3089, 4294901760
        %3091 = vmatpush.msra.mxu0 %v3090
        %v3092 = vand.u32 %v2934, 4294901760
        %3093 = vmatmul.f32.gmra.mxu0 %v3092
        %v3094 = vpop.f32.mrf.mxu0
        %v3095 = vadd.f32 %v2994, %v3094
        %3096 = vdwg.mxu0
        %v3097 = vand.u32 %v2950, 4294901760
        %v3098 = vsub.f32 %v2950, %v3097
        %3099 = vmatpush.msra.mxu0 %v3098
        %v3100 = vand.u32 %v2949, 4294901760
        %v3101 = vsub.f32 %v2949, %v3100
        %3102 = vmatpush.msra.mxu0 %v3101
        %v3103 = vand.u32 %v2948, 4294901760
        %v3104 = vsub.f32 %v2948, %v3103
        %3105 = vmatpush.msra.mxu0 %v3104
        %v3106 = vand.u32 %v2947, 4294901760
        %v3107 = vsub.f32 %v2947, %v3106
        %3108 = vmatpush.msra.mxu0 %v3107
        %v3109 = vand.u32 %v2946, 4294901760
        %v3110 = vsub.f32 %v2946, %v3109
        %3111 = vmatpush.msra.mxu0 %v3110
        %v3112 = vand.u32 %v2945, 4294901760
        %v3113 = vsub.f32 %v2945, %v3112
        %3114 = vmatpush.msra.mxu0 %v3113
        %v3115 = vand.u32 %v2944, 4294901760
        %v3116 = vsub.f32 %v2944, %v3115
        %3117 = vmatpush.msra.mxu0 %v3116
        %v3118 = vand.u32 %v2943, 4294901760
        %v3119 = vsub.f32 %v2943, %v3118
        %3120 = vmatpush.msra.mxu0 %v3119
        %v3121 = vand.u32 %v2942, 4294901760
        %v3122 = vsub.f32 %v2942, %v3121
        %3123 = vmatpush.msra.mxu0 %v3122
        %v3124 = vand.u32 %v2941, 4294901760
        %v3125 = vsub.f32 %v2941, %v3124
        %3126 = vmatpush.msra.mxu0 %v3125
        %v3127 = vand.u32 %v2940, 4294901760
        %v3128 = vsub.f32 %v2940, %v3127
        %3129 = vmatpush.msra.mxu0 %v3128
        %v3130 = vand.u32 %v2939, 4294901760
        %v3131 = vsub.f32 %v2939, %v3130
        %3132 = vmatpush.msra.mxu0 %v3131
        %v3133 = vand.u32 %v2938, 4294901760
        %v3134 = vsub.f32 %v2938, %v3133
        %3135 = vmatpush.msra.mxu0 %v3134
        %v3136 = vand.u32 %v2937, 4294901760
        %v3137 = vsub.f32 %v2937, %v3136
        %3138 = vmatpush.msra.mxu0 %v3137
        %v3139 = vand.u32 %v2936, 4294901760
        %v3140 = vsub.f32 %v2936, %v3139
        %3141 = vmatpush.msra.mxu0 %v3140
        %v3142 = vand.u32 %v2935, 4294901760
        %v3143 = vsub.f32 %v2935, %v3142
        %3144 = vmatpush.msra.mxu0 %v3143
        %v3145 = vand.u32 %v2934, 4294901760
        %v3146 = vsub.f32 %v2934, %v3145
        %3147 = vmatmul.f32.gmra.mxu0 %v3146
        %v3148 = vpop.f32.mrf.mxu0
        %v3149 = vadd.f32 %v3095, %v3148
        %3150 = vdwg.mxu0
        %v3151 = vand.u32 %v2950, 4294901760
        %3152 = vmatpush.msra.mxu0 %v3151
        %v3153 = vand.u32 %v2949, 4294901760
        %3154 = vmatpush.msra.mxu0 %v3153
        %v3155 = vand.u32 %v2948, 4294901760
        %3156 = vmatpush.msra.mxu0 %v3155
        %v3157 = vand.u32 %v2947, 4294901760
        %3158 = vmatpush.msra.mxu0 %v3157
        %v3159 = vand.u32 %v2946, 4294901760
        %3160 = vmatpush.msra.mxu0 %v3159
        %v3161 = vand.u32 %v2945, 4294901760
        %3162 = vmatpush.msra.mxu0 %v3161
        %v3163 = vand.u32 %v2944, 4294901760
        %3164 = vmatpush.msra.mxu0 %v3163
        %v3165 = vand.u32 %v2943, 4294901760
        %3166 = vmatpush.msra.mxu0 %v3165
        %v3167 = vand.u32 %v2942, 4294901760
        %3168 = vmatpush.msra.mxu0 %v3167
        %v3169 = vand.u32 %v2941, 4294901760
        %3170 = vmatpush.msra.mxu0 %v3169
        %v3171 = vand.u32 %v2940, 4294901760
        %3172 = vmatpush.msra.mxu0 %v3171
        %v3173 = vand.u32 %v2939, 4294901760
        %3174 = vmatpush.msra.mxu0 %v3173
        %v3175 = vand.u32 %v2938, 4294901760
        %3176 = vmatpush.msra.mxu0 %v3175
        %v3177 = vand.u32 %v2937, 4294901760
        %3178 = vmatpush.msra.mxu0 %v3177
        %v3179 = vand.u32 %v2936, 4294901760
        %3180 = vmatpush.msra.mxu0 %v3179
        %v3181 = vand.u32 %v2935, 4294901760
        %3182 = vmatpush.msra.mxu0 %v3181
        %v3183 = vand.u32 %v2934, 4294901760
        %v3184 = vsub.f32 %v2934, %v3183
        %v3185 = vand.u32 %v3184, 4294901760
        %3186 = vmatmul.f32.gmra.mxu0 %v3185
        %v3187 = vpop.f32.mrf.mxu0
        %v3188 = vadd.f32 %v3149, %v3187
        %3189 = vdwg.mxu0
        %v3190 = vand.u32 %v2950, 4294901760
        %v3191 = vsub.f32 %v2950, %v3190
        %v3192 = vand.u32 %v3191, 4294901760
        %3193 = vmatpush.msra.mxu0 %v3192
        %v3194 = vand.u32 %v2949, 4294901760
        %v3195 = vsub.f32 %v2949, %v3194
        %v3196 = vand.u32 %v3195, 4294901760
        %3197 = vmatpush.msra.mxu0 %v3196
        %v3198 = vand.u32 %v2948, 4294901760
        %v3199 = vsub.f32 %v2948, %v3198
        %v3200 = vand.u32 %v3199, 4294901760
        %3201 = vmatpush.msra.mxu0 %v3200
        %v3202 = vand.u32 %v2947, 4294901760
        %v3203 = vsub.f32 %v2947, %v3202
        %v3204 = vand.u32 %v3203, 4294901760
        %3205 = vmatpush.msra.mxu0 %v3204
        %v3206 = vand.u32 %v2946, 4294901760
        %v3207 = vsub.f32 %v2946, %v3206
        %v3208 = vand.u32 %v3207, 4294901760
        %3209 = vmatpush.msra.mxu0 %v3208
        %v3210 = vand.u32 %v2945, 4294901760
        %v3211 = vsub.f32 %v2945, %v3210
        %v3212 = vand.u32 %v3211, 4294901760
        %3213 = vmatpush.msra.mxu0 %v3212
        %v3214 = vand.u32 %v2944, 4294901760
        %v3215 = vsub.f32 %v2944, %v3214
        %v3216 = vand.u32 %v3215, 4294901760
        %3217 = vmatpush.msra.mxu0 %v3216
        %v3218 = vand.u32 %v2943, 4294901760
        %v3219 = vsub.f32 %v2943, %v3218
        %v3220 = vand.u32 %v3219, 4294901760
        %3221 = vmatpush.msra.mxu0 %v3220
        %v3222 = vand.u32 %v2942, 4294901760
        %v3223 = vsub.f32 %v2942, %v3222
        %v3224 = vand.u32 %v3223, 4294901760
        %3225 = vmatpush.msra.mxu0 %v3224
        %v3226 = vand.u32 %v2941, 4294901760
        %v3227 = vsub.f32 %v2941, %v3226
        %v3228 = vand.u32 %v3227, 4294901760
        %3229 = vmatpush.msra.mxu0 %v3228
        %v3230 = vand.u32 %v2940, 4294901760
        %v3231 = vsub.f32 %v2940, %v3230
        %v3232 = vand.u32 %v3231, 4294901760
        %3233 = vmatpush.msra.mxu0 %v3232
        %v3234 = vand.u32 %v2939, 4294901760
        %v3235 = vsub.f32 %v2939, %v3234
        %v3236 = vand.u32 %v3235, 4294901760
        %3237 = vmatpush.msra.mxu0 %v3236
        %v3238 = vand.u32 %v2938, 4294901760
        %v3239 = vsub.f32 %v2938, %v3238
        %v3240 = vand.u32 %v3239, 4294901760
        %3241 = vmatpush.msra.mxu0 %v3240
        %v3242 = vand.u32 %v2937, 4294901760
        %v3243 = vsub.f32 %v2937, %v3242
        %v3244 = vand.u32 %v3243, 4294901760
        %3245 = vmatpush.msra.mxu0 %v3244
        %v3246 = vand.u32 %v2936, 4294901760
        %v3247 = vsub.f32 %v2936, %v3246
        %v3248 = vand.u32 %v3247, 4294901760
        %3249 = vmatpush.msra.mxu0 %v3248
        %v3250 = vand.u32 %v2935, 4294901760
        %v3251 = vsub.f32 %v2935, %v3250
        %v3252 = vand.u32 %v3251, 4294901760
        %3253 = vmatpush.msra.mxu0 %v3252
        %v3254 = vand.u32 %v2934, 4294901760
        %3255 = vmatmul.f32.gmra.mxu0 %v3254
        %v3256 = vpop.f32.mrf.mxu0
        %v3257 = vadd.f32 %v3188, %v3256
        %3258 = vdwg.mxu0
        %v3259 = vand.u32 %v2950, 4294901760
        %3260 = vmatpush.msra.mxu0 %v3259
        %v3261 = vand.u32 %v2949, 4294901760
        %3262 = vmatpush.msra.mxu0 %v3261
        %v3263 = vand.u32 %v2948, 4294901760
        %3264 = vmatpush.msra.mxu0 %v3263
        %v3265 = vand.u32 %v2947, 4294901760
        %3266 = vmatpush.msra.mxu0 %v3265
        %v3267 = vand.u32 %v2946, 4294901760
        %3268 = vmatpush.msra.mxu0 %v3267
        %v3269 = vand.u32 %v2945, 4294901760
        %3270 = vmatpush.msra.mxu0 %v3269
        %v3271 = vand.u32 %v2944, 4294901760
        %3272 = vmatpush.msra.mxu0 %v3271
        %v3273 = vand.u32 %v2943, 4294901760
        %3274 = vmatpush.msra.mxu0 %v3273
        %v3275 = vand.u32 %v2942, 4294901760
        %3276 = vmatpush.msra.mxu0 %v3275
        %v3277 = vand.u32 %v2941, 4294901760
        %3278 = vmatpush.msra.mxu0 %v3277
        %v3279 = vand.u32 %v2940, 4294901760
        %3280 = vmatpush.msra.mxu0 %v3279
        %v3281 = vand.u32 %v2939, 4294901760
        %3282 = vmatpush.msra.mxu0 %v3281
        %v3283 = vand.u32 %v2938, 4294901760
        %3284 = vmatpush.msra.mxu0 %v3283
        %v3285 = vand.u32 %v2937, 4294901760
        %3286 = vmatpush.msra.mxu0 %v3285
        %v3287 = vand.u32 %v2936, 4294901760
        %3288 = vmatpush.msra.mxu0 %v3287
        %v3289 = vand.u32 %v2935, 4294901760
        %3290 = vmatpush.msra.mxu0 %v3289
        %v3291 = vand.u32 %v2934, 4294901760
        %3292 = vmatmul.f32.gmra.mxu0 %v3291
        %v3293 = vpop.f32.mrf.mxu0
        %v3294 = vadd.f32 %v3257, %v3293
        %3295 = vdwg.mxu0
        %v3296 = vadd.f32 %v2737, %v3294
        %v3297 = vsel %vm683, %v3296, 0.0
        %3298 = vadd.xlane.f32.xlu0 %v3297
        %v3299 = vpop.xlane.xlu0 %3298
        %v3300 = vmul.f32 %v3299, %v2708
        %v3301 = vsub.f32 %v3296, %v3300
        %v3302 = vmul.f32 %v3301, %v3301
        %v3303 = vsel %vm683, %v3302, 0.0
        %3304 = vadd.xlane.f32.xlu0 %v3303
        %v3305 = vpop.xlane.xlu0 %3304
        %v3306 = vmul.f32 %v3305, %v2708
        %v3307 = vadd.f32 %v3306, 1e-05
        %v3308 = vrsqrt.pop %v3307
        %v3309 = vmul.f32 %v3308, %v3307
        %v3310 = vmul.f32 %v3309, %v3308
        %v3311 = vmul.f32 0.5, %v3310
        %v3312 = vsub.f32 1.5, %v3311
        %v3313 = vmul.f32 %v3308, %v3312
        %vm3314 = vweird.f32 %v3307
        %vm3315 = vweird.f32 %v3308
        %vm3316 = vmor %vm3314, %vm3315
        %v3317 = vsel %vm3316, %v3308, %v3313
        %v3318 = vmul.f32 %v3301, %v3317
        %v3319 = vld [vmem:[%s663] sm:$0x1]
        %v3321 = vperm.slane %v3319, 0
        %v3323 = vmul.f32 %v3318, %v3321
        %v3324 = vld [vmem:[%s666] sm:$0x1]
        %v3326 = vperm.slane %v3324, 0
        %v3328 = vadd.f32 %v3323, %v3326
        %3329 = vst.msk [vmem:[#allocation2] sm:$0xff] %vm683, %v3328
        %p3330 = scmp.eq.s32.totalorder %s33, 1
        // Predicated region
        $region81: #{tpu_custom_call.1} parent=75 // pred_check
          %p3331 = pneg %p3330
        $region82: #{tpu_custom_call.1} parent=75 // pred_check_branch
          %3333 = sbr.rel (%p3331) target = $region84
        $region83: #{tpu_custom_call.1} parent=75 // pred_region
          %3334 = vst.msk [vmem:[%s618] sm:$0xff] %vm683, %v3328
        $region84: #{tpu_custom_call.1} parent=75 // pred_fallthru
          _
        %s3335 = sand.u32 %s407, 1
        %s3336 = scalar_lea.sflag [#allocation4], %s3335
        %s3337 = sand.u32 %s407, 1
        %s3338 = smul.addr %s3337, 8
        %s3339 = scalar_lea.vmem [#allocation3], %s3338
        // Predicated region
        $region85: #{tpu_custom_call.1} parent=75 // pred_check
          %p3340 = pneg %p417
        $region86: #{tpu_custom_call.1} parent=75 // pred_check_branch
          %3342 = sbr.rel (%p3340) target = $region88
        $region87: #{tpu_custom_call.1} parent=75 // pred_region
          %3344 = vsyncadd %s3336, 0
          %s3345 = smul.addr %s32, 8
          %s3346 = scalar_lea.hbm %s14, %s3345
          %s3348 = sshll.u32 %s3339, 4
          %s3349 = int_to_ptr.vmem [resolvable:$true] %s3348
          %s3350 = sshll.u32 %s3346, 4
          %s3351 = int_to_ptr.hbm [resolvable:$true] %s3350
          %3353 = dma.vmem_to_hbm [thread:$0]  %s3349, 128, %s3351, %s3336
        $region88: #{tpu_custom_call.1} parent=75 // pred_fallthru
          _
      $region76: #{tpu_custom_call.1} parent=5 // pred_fallthru
        _
      %p3354 = scmp.le.s32.totalorder 2, %s23
      // Predicated region
      $region89: #{tpu_custom_call.1} parent=5 // pred_check
        %p3355 = pneg %p3354
      $region90: #{tpu_custom_call.1} parent=5 // pred_check_branch
        %3357 = sbr.rel (%p3355) target = $region92
      $region91: #{tpu_custom_call.1} parent=5 // pred_region
        %s3358 = ssub.s32 %s23, 2
        // Predicated region
        $region93: #{tpu_custom_call.1} parent=91 // pred_check
          %p3359 = pneg %p423
        $region94: #{tpu_custom_call.1} parent=91 // pred_check_branch
          %3361 = sbr.rel (%p3359) target = $region96
        $region95: #{tpu_custom_call.1} parent=91 // pred_region
          %s3362 = sand.u32 %s408, 1
          %s3363 = scalar_lea.sflag [#allocation4], %s3362
          %s3364 = sand.u32 %s408, 1
          %s3365 = smul.addr %s3364, 8
          %s3366 = scalar_lea.vmem [#allocation3], %s3365
          %3368 = dma.done %s3363, 128
        $region96: #{tpu_custom_call.1} parent=91 // pred_fallthru
          _
      $region92: #{tpu_custom_call.1} parent=5 // pred_fallthru
        _
    $region6: #{tpu_custom_call.1} parent=1 // loop_footer
      %s27 = sadd.s32 1, %s23
    $region7: #{tpu_custom_call.1} parent=1 // loop_footer_branch
      %22 = sbr.rel target = $region3
    $region8: #{tpu_custom_call.1} parent=1 // loop_exit
      _
    %3369 = vsyncpa [#allocation4], 1
    %s3370 = scalar_lea.sflag [#allocation4], 1
    %3371 = vsyncpa %s3370, 1

</llo_original>
